<compile_context>
chip_gen: v7x
topology: tpu7x:2x2x1
jax: 0.10.0
libtpu: 0.0.40
codegen_flags: <defaults>
</compile_context>

<pallas_src>
import functools

import jax
import jax.numpy as jnp
import numpy as np
from jax.experimental import pallas as pl
from jax.experimental.pallas import tpu as pltpu

EPS = 1e-5
_VMEM_LIMIT_BYTES = 48 * 1024 * 1024      # > 16/32 MiB scoped defaults, < v7x 64 MiB physical
_WEIGHT_TILE_BUDGET = 24 * 1024 * 1024    # cap on double-buffered weight tiles + resident x


def _pick_tile(dim, target):
    """Largest tile <= target that divides dim and respects the (8,128) lane rule."""
    if dim <= target:
        return dim
    t = (target // 128) * 128
    while t >= 128:
        if dim % t == 0:
            return t
        t -= 128
    return dim  # full-extent block: always layout-legal


# ---------------------------------------------------------------------------
# Fused kernel:
#   grid = (H // th,)  -- hidden-feature tiles; this axis is a reduction for
#   the second matmul, so it is "arbitrary" and the (M, N) output block is
#   resident (accumulated) across it.
#   Each hidden tile sees the FULL batch, so BN statistics are exact.
# ---------------------------------------------------------------------------
def _byol_fused_kernel(x_ref, w1_ref, g_ref, beta_ref, w2_ref, o_ref, acc_ref,
                       *, single_step):
    j = pl.program_id(0)

    # Layer 1 matmul for this hidden tile: (M, K) @ (K, th) -> (M, th) in f32.
    h = jnp.dot(x_ref[...], w1_ref[...], preferred_element_type=jnp.float32)
    # NOTE: the Linear bias b1 is omitted: train-mode BatchNorm subtracts the
    # per-feature batch mean, which cancels any per-feature constant exactly.

    # BatchNorm1d (training mode: batch mean, biased variance) + affine + ReLU.
    mean = jnp.mean(h, axis=0, keepdims=True)                  # (1, th)
    var = jnp.mean((h - mean) ** 2, axis=0, keepdims=True)     # biased variance
    y = (h - mean) * jax.lax.rsqrt(var + EPS)
    y = y * g_ref[...] + beta_ref[...]
    y = jnp.maximum(y, 0.0).astype(w2_ref.dtype)               # back to compute dtype

    # Layer 2 partial product: (M, th) @ (th, N), accumulated over hidden tiles.
    part = jnp.dot(y, w2_ref[...], preferred_element_type=jnp.float32)

    if single_step:
        # Only one reduction step: skip the accumulator round-trip entirely.
        o_ref[...] = part.astype(o_ref.dtype)
    else:
        @pl.when(j == 0)
        def _():
            acc_ref[...] = jnp.zeros_like(acc_ref)

        acc_ref[...] += part

        @pl.when(j == pl.num_programs(0) - 1)
        def _():
            o_ref[...] = acc_ref[...].astype(o_ref.dtype)


def byol_projector_fused(x, w1_t, gamma, beta, w2_t, *, th=2048, out_dtype=None):
    M, K = x.shape
    Kw, H = w1_t.shape
    Hw, N = w2_t.shape
    assert Kw == K and Hw == H
    out_dtype = x.dtype if out_dtype is None else out_dtype

    th = _pick_tile(H, th)
    # Shrink the hidden tile if double-buffered weight tiles + resident x would
    # exceed the VMEM budget (matters for v7x's 64 MiB VMEM at large input_dim).
    itm = jnp.dtype(w1_t.dtype).itemsize
    x_bytes = 2 * M * K * x.dtype.itemsize

    def _tile_bytes(t):
        return 2 * (K * t + t * N) * itm + x_bytes + M * N * 4

    while th > 128 and _tile_bytes(th) > _WEIGHT_TILE_BUDGET:
        th = _pick_tile(H, th // 2)

    n_steps = H // th
    single_step = n_steps == 1

    g2 = gamma.reshape(1, H).astype(jnp.float32)
    be2 = beta.reshape(1, H).astype(jnp.float32)

    kernel = functools.partial(_byol_fused_kernel, single_step=single_step)
    cost = pl.CostEstimate(
        flops=2 * M * H * K + 2 * M * H * N,
        transcendentals=H,  # one rsqrt per hidden feature
        bytes_accessed=(x.size * x.dtype.itemsize
                        + w1_t.size * w1_t.dtype.itemsize
                        + w2_t.size * w2_t.dtype.itemsize
                        + 2 * H * 4
                        + M * N * jnp.dtype(out_dtype).itemsize),
    )

    return pl.pallas_call(
        kernel,
        out_shape=jax.ShapeDtypeStruct((M, N), out_dtype),
        grid_spec=pltpu.PrefetchScalarGridSpec(
            num_scalar_prefetch=0,
            grid=(n_steps,),
            in_specs=[
                # x fully VMEM-resident (constant block index -> fetched once).
                pl.BlockSpec((M, K), lambda j: (0, 0)),
                # w1_t hidden-feature tile: contiguous th-wide rows per DMA.
                pl.BlockSpec((K, th), lambda j: (0, j)),
                pl.BlockSpec((1, th), lambda j: (0, j)),   # gamma
                pl.BlockSpec((1, th), lambda j: (0, j)),   # beta
                # w2_t tile for the same hidden slice.
                pl.BlockSpec((th, N), lambda j: (j, 0)),
            ],
            # Output block constant across the (reduction) grid axis.
            out_specs=pl.BlockSpec((M, N), lambda j: (0, 0)),
            scratch_shapes=[pltpu.VMEM((M, N), jnp.float32)],
        ),
        compiler_params=pltpu.CompilerParams(
            dimension_semantics=("arbitrary",),   # hidden axis is layer-2's reduction
            vmem_limit_bytes=_VMEM_LIMIT_BYTES,
        ),
        cost_estimate=cost,
    )(x, w1_t, g2, be2, w2_t)


# ---------------------------------------------------------------------------
# Parameter handling / forward
# ---------------------------------------------------------------------------
def prepare_params(params, compute_dtype=jnp.bfloat16):
    """Pre-cast weights to the compute dtype ONCE, outside the per-step forward.

    Removes the per-call f32->bf16 weight casts (separate XLA ops reading 2x
    and writing 1x the weight bytes) that previously dominated HBM traffic.
    """
    return {
        "w1_t": params["w1_t"].astype(compute_dtype),
        "gamma1": params["gamma1"].astype(jnp.float32),
        "beta1": params["beta1"].astype(jnp.float32),
        "w2_t": params["w2_t"].astype(compute_dtype),
        # b1 intentionally omitted: cancelled exactly by train-mode BatchNorm.
    }


def byol_projector(x, prepared, *, compute_dtype=jnp.bfloat16):
    """Linear(bias) -> BN1d(train) -> ReLU -> Linear(no bias), fully fused."""
    return byol_projector_fused(
        x.astype(compute_dtype),
        prepared["w1_t"],
        prepared["gamma1"],
        prepared["beta1"],
        prepared["w2_t"],
        out_dtype=x.dtype,
    )


def init_params(key, input_dim, out_dim, hidden_dim=4096, dtype=jnp.float32):
    """PyTorch-default init; Linear weights stored transposed as (in, out)."""
    k1, kb1, k2 = jax.random.split(key, 3)

    def lin_w(k, fan_in, fan_out):
        bound = 1.0 / np.sqrt(fan_in)
        w = jax.random.uniform(k, (fan_out, fan_in), dtype=dtype,
                               minval=-bound, maxval=bound)
        return w.T  # (in, out)

    bound1 = 1.0 / np.sqrt(input_dim)
    return {
        "w1_t": lin_w(k1, input_dim, hidden_dim),
        "b1": jax.random.uniform(kb1, (hidden_dim,), dtype=dtype,
                                 minval=-bound1, maxval=bound1),
        "gamma1": jnp.ones((hidden_dim,), dtype),    # BN1d default init
        "beta1": jnp.zeros((hidden_dim,), dtype),
        "w2_t": lin_w(k2, hidden_dim, out_dim),
    }


# Pure-JAX reference (full module semantics, including the bias that BN
# cancels; same bf16 input casts, f32 accumulation) for verification.
def _reference(x, params, *, compute_dtype=jnp.bfloat16):
    cd = compute_dtype
    h = jnp.dot(x.astype(cd), params["w1_t"].astype(cd),
                preferred_element_type=jnp.float32)
    h = h + params["b1"].astype(jnp.float32)
    mean = jnp.mean(h, axis=0, keepdims=True)
    var = jnp.mean((h - mean) ** 2, axis=0, keepdims=True)
    h = (h - mean) / jnp.sqrt(var + EPS) * params["gamma1"] + params["beta1"]
    h = jnp.maximum(h, 0.0).astype(cd)
    z = jnp.dot(h, params["w2_t"].astype(cd), preferred_element_type=jnp.float32)
    return z.astype(x.dtype)


if __name__ == "__main__":
    # Small batch / input_dim; hidden_dim=4096 and out_dim=256 are the module defaults.
    batch, input_dim, out_dim = 16, 512, 256

    key = jax.random.PRNGKey(0)
    kx, kp = jax.random.split(key)
    x = jax.random.normal(kx, (batch, input_dim), dtype=jnp.float32)
    params = init_params(kp, input_dim, out_dim)
    prepared = prepare_params(params, jnp.bfloat16)   # one-time weight cast

    fwd = jax.jit(functools.partial(byol_projector, compute_dtype=jnp.bfloat16))
    z = jax.block_until_ready(fwd(x, prepared))

    z_ref = _reference(x, params, compute_dtype=jnp.bfloat16)
    np.testing.assert_allclose(np.asarray(z), np.asarray(z_ref), rtol=5e-2, atol=5e-2)

    print("KERNEL_OK")
</pallas_src>

<mosaic_0001>
module attributes {stable_mosaic.version = 11 : i64} {
  func.func @_byol_fused_kernel(%arg0: i32, %arg1: memref<16x512xbf16, #tpu.memory_space<vmem>>, %arg2: memref<512x2048xbf16, #tpu.memory_space<vmem>>, %arg3: memref<1x2048xf32, #tpu.memory_space<vmem>>, %arg4: memref<1x2048xf32, #tpu.memory_space<vmem>>, %arg5: memref<2048x256xbf16, #tpu.memory_space<vmem>>, %arg6: memref<16x256xf32, #tpu.memory_space<vmem>>, %arg7: memref<16x256xf32, #tpu.memory_space<vmem>>) attributes {dimension_semantics = [#tpu.dimension_semantics<arbitrary>], iteration_bounds = array<i64: 2>, scalar_prefetch = 0 : i64, scratch_operands = 1 : i64, tpu.core_type = #tpu.core_type<tc>, window_params = [{pipeline_mode = #tpu.pipeline_mode<synchronous>, transform_indices = @transform_0, window_bounds = array<i64: 16, 512>}, {transform_indices = @transform_1, window_bounds = array<i64: 512, 2048>}, {transform_indices = @transform_2, window_bounds = array<i64: 1, 2048>}, {transform_indices = @transform_3, window_bounds = array<i64: 1, 2048>}, {transform_indices = @transform_4, window_bounds = array<i64: 2048, 256>}, {pipeline_mode = #tpu.pipeline_mode<synchronous>, transform_indices = @transform_5, window_bounds = array<i64: 16, 256>}]} {
    %c0 = arith.constant 0 : index
    %c0_0 = arith.constant 0 : index
    %0 = vector.load %arg1[%c0, %c0_0] : memref<16x512xbf16, #tpu.memory_space<vmem>>, vector<16x512xbf16>
    %c0_1 = arith.constant 0 : index
    %c0_2 = arith.constant 0 : index
    %1 = vector.load %arg2[%c0_1, %c0_2] : memref<512x2048xbf16, #tpu.memory_space<vmem>>, vector<512x2048xbf16>
    %cst = arith.constant dense<0.000000e+00> : vector<16x2048xf32>
    %2 = tpu.matmul %0, %1, %cst {dimension_numbers = #tpu.dot_dimension_numbers<[1], [0], [0], [1], [0, 0, 1, 1], [], []>} : vector<16x512xbf16>, vector<512x2048xbf16>, vector<16x2048xf32> -> vector<16x2048xf32>
    %cst_3 = arith.constant dense<0.000000e+00> : vector<2048xf32>
    %3 = vector.multi_reduction <add>, %2, %cst_3 [0] : vector<16x2048xf32> to vector<2048xf32>
    %4 = vector.shape_cast %3 : vector<2048xf32> to vector<1x2048xf32>
    %cst_4 = arith.constant 1.600000e+01 : f32
    %5 = vector.broadcast %cst_4 : f32 to vector<1x2048xf32>
    %6 = arith.divf %4, %5 : vector<1x2048xf32>
    %7 = vector.broadcast %6 : vector<1x2048xf32> to vector<16x2048xf32>
    %8 = arith.subf %2, %7 : vector<16x2048xf32>
    %9 = arith.mulf %8, %8 : vector<16x2048xf32>
    %cst_5 = arith.constant dense<0.000000e+00> : vector<2048xf32>
    %10 = vector.multi_reduction <add>, %9, %cst_5 [0] : vector<16x2048xf32> to vector<2048xf32>
    %11 = vector.shape_cast %10 : vector<2048xf32> to vector<1x2048xf32>
    %cst_6 = arith.constant 1.600000e+01 : f32
    %12 = vector.broadcast %cst_6 : f32 to vector<1x2048xf32>
    %13 = arith.divf %11, %12 : vector<1x2048xf32>
    %14 = vector.broadcast %6 : vector<1x2048xf32> to vector<16x2048xf32>
    %15 = arith.subf %2, %14 : vector<16x2048xf32>
    %cst_7 = arith.constant 9.99999974E-6 : f32
    %16 = vector.broadcast %cst_7 : f32 to vector<1x2048xf32>
    %17 = arith.addf %13, %16 : vector<1x2048xf32>
    %18 = math.rsqrt %17 : vector<1x2048xf32>
    %19 = vector.broadcast %18 : vector<1x2048xf32> to vector<16x2048xf32>
    %20 = arith.mulf %15, %19 : vector<16x2048xf32>
    %c0_8 = arith.constant 0 : index
    %c0_9 = arith.constant 0 : index
    %21 = vector.load %arg3[%c0_8, %c0_9] : memref<1x2048xf32, #tpu.memory_space<vmem>>, vector<1x2048xf32>
    %22 = vector.broadcast %21 : vector<1x2048xf32> to vector<16x2048xf32>
    %23 = arith.mulf %20, %22 : vector<16x2048xf32>
    %c0_10 = arith.constant 0 : index
    %c0_11 = arith.constant 0 : index
    %24 = vector.load %arg4[%c0_10, %c0_11] : memref<1x2048xf32, #tpu.memory_space<vmem>>, vector<1x2048xf32>
    %25 = vector.broadcast %24 : vector<1x2048xf32> to vector<16x2048xf32>
    %26 = arith.addf %23, %25 : vector<16x2048xf32>
    %cst_12 = arith.constant 0.000000e+00 : f32
    %27 = vector.broadcast %cst_12 : f32 to vector<16x2048xf32>
    %28 = arith.maximumf %26, %27 : vector<16x2048xf32>
    %29 = arith.truncf %28 : vector<16x2048xf32> to vector<16x2048xbf16>
    %c0_13 = arith.constant 0 : index
    %c0_14 = arith.constant 0 : index
    %30 = vector.load %arg5[%c0_13, %c0_14] : memref<2048x256xbf16, #tpu.memory_space<vmem>>, vector<2048x256xbf16>
    %cst_15 = arith.constant dense<0.000000e+00> : vector<16x256xf32>
    %31 = tpu.matmul %29, %30, %cst_15 {dimension_numbers = #tpu.dot_dimension_numbers<[1], [0], [0], [1], [0, 0, 1, 1], [], []>} : vector<16x2048xbf16>, vector<2048x256xbf16>, vector<16x256xf32> -> vector<16x256xf32>
    %c0_i32 = arith.constant 0 : i32
    %32 = arith.cmpi eq, %arg0, %c0_i32 : i32
    %33 = arith.extui %32 : i1 to i32
    %c0_i32_16 = arith.constant 0 : i32
    %34 = arith.cmpi ne, %33, %c0_i32_16 : i32
    scf.if %34 {
      %cst_22 = arith.constant 0.000000e+00 : f32
      %41 = vector.broadcast %cst_22 : f32 to vector<16x256xf32>
      %c0_23 = arith.constant 0 : index
      %c0_24 = arith.constant 0 : index
      %42 = vector.load %arg7[%c0_23, %c0_24] : memref<16x256xf32, #tpu.memory_space<vmem>>, vector<16x256xf32>
      tpu.vector_store %arg7[%c0_23, %c0_24], %41 {strides = array<i32>} : memref<16x256xf32, #tpu.memory_space<vmem>>, vector<16x256xf32>,
    } else {
    }
    %c0_17 = arith.constant 0 : index
    %c0_18 = arith.constant 0 : index
    %35 = vector.load %arg7[%c0_17, %c0_18] : memref<16x256xf32, #tpu.memory_space<vmem>>, vector<16x256xf32>
    %36 = arith.addf %35, %31 : vector<16x256xf32>
    %c0_19 = arith.constant 0 : index
    %c0_20 = arith.constant 0 : index
    %37 = vector.load %arg7[%c0_19, %c0_20] : memref<16x256xf32, #tpu.memory_space<vmem>>, vector<16x256xf32>
    tpu.vector_store %arg7[%c0_19, %c0_20], %36 {strides = array<i32>} : memref<16x256xf32, #tpu.memory_space<vmem>>, vector<16x256xf32>,
    %c1_i32 = arith.constant 1 : i32
    %38 = arith.cmpi eq, %arg0, %c1_i32 : i32
    %39 = arith.extui %38 : i1 to i32
    %c0_i32_21 = arith.constant 0 : i32
    %40 = arith.cmpi ne, %39, %c0_i32_21 : i32
    scf.if %40 {
      %c0_22 = arith.constant 0 : index
      %c0_23 = arith.constant 0 : index
      %41 = vector.load %arg7[%c0_22, %c0_23] : memref<16x256xf32, #tpu.memory_space<vmem>>, vector<16x256xf32>
      %c0_24 = arith.constant 0 : index
      %c0_25 = arith.constant 0 : index
      %42 = vector.load %arg6[%c0_24, %c0_25] : memref<16x256xf32, #tpu.memory_space<vmem>>, vector<16x256xf32>
      tpu.vector_store %arg6[%c0_24, %c0_25], %41 {strides = array<i32>} : memref<16x256xf32, #tpu.memory_space<vmem>>, vector<16x256xf32>,
    } else {
    }
    return
  }
  func.func @transform_0(%arg0: i32) -> (i32, i32) {
    %c0_i32 = arith.constant 0 : i32
    %c0_i32_0 = arith.constant 0 : i32
    %c0_i32_1 = arith.constant 0 : i32
    return %c0_i32, %c0_i32_0 : i32, i32
  }
  func.func @transform_1(%arg0: i32) -> (i32, i32) {
    %c0_i32 = arith.constant 0 : i32
    %c0_i32_0 = arith.constant 0 : i32
    return %c0_i32, %arg0 : i32, i32
  }
  func.func @transform_2(%arg0: i32) -> (i32, i32) {
    %c0_i32 = arith.constant 0 : i32
    %c0_i32_0 = arith.constant 0 : i32
    return %c0_i32, %arg0 : i32, i32
  }
  func.func @transform_3(%arg0: i32) -> (i32, i32) {
    %c0_i32 = arith.constant 0 : i32
    %c0_i32_0 = arith.constant 0 : i32
    return %c0_i32, %arg0 : i32, i32
  }
  func.func @transform_4(%arg0: i32) -> (i32, i32) {
    %c0_i32 = arith.constant 0 : i32
    %c0_i32_0 = arith.constant 0 : i32
    return %arg0, %c0_i32 : i32, i32
  }
  func.func @transform_5(%arg0: i32) -> (i32, i32) {
    %c0_i32 = arith.constant 0 : i32
    %c0_i32_0 = arith.constant 0 : i32
    %c0_i32_1 = arith.constant 0 : i32
    return %c0_i32, %c0_i32_0 : i32, i32
  }
}

</mosaic_0001>

<llo_original>
// kernel: byol_projector.1
$region0: #{byol_projector.1}
  #allocation0 [shape = 'u32[]', space=smem, size = 0x4, offset = 0x4, fixed_abs, tag = 'smem constant byte address 0x4 - core index']
  #allocation1 [shape = 'u32[144,128]{1,0:T(1,128)}', space=vmem, size = 0x12000, scoped, tag = 'internal scratch']
  #allocation2 [shape = 'f32[16,256]{1,0:T(8,128)}', space=vmem, size = 0x4000, scoped, tag = 'scratch operand']
  %s0 = inlined_call_operand.vmem [shape: bf16[16,512], index: 0, kind: input, shape index: {}]
  %s1 = inlined_call_operand.hbm [shape: bf16[512,4096], index: 1, kind: input, shape index: {}]
  %s2 = inlined_call_operand.hbm [shape: f32[1,4096], index: 2, kind: input, shape index: {}]
  %s3 = inlined_call_operand.hbm [shape: f32[1,4096], index: 3, kind: input, shape index: {}]
  %s4 = inlined_call_operand.hbm [shape: bf16[4096,256], index: 4, kind: input, shape index: {}]
  %s5 = inlined_call_operand.hbm [shape: f32[16,256], index: 5, kind: output, shape index: {}]
  %s6 = sld [smem:[#allocation0]]
  $region77: #{byol_projector.1} parent=0
    _
  %s8 = ssub.s32 1, %s6
  %s9 = scalar_select 0, %s8, %s6
  $region1: #{byol_projector.1} parent=0
    #allocation3 [shape = 'u8[4194304]{0}', space=vmem, size = 0x400000, scoped, tag = 'input window, operand 1']
    #allocation4 [shape = 's32[2]{0}', space=sflag, size = 0x8, scoped, tag = 'scoped memory for byol_projector.1']
    #allocation5 [shape = 's32[2]{0}', space=sflag, size = 0x8, scoped, tag = 'scoped memory for byol_projector.1']
    #allocation6 [shape = 'u8[16384]{0}', space=vmem, size = 0x4000, scoped, tag = 'input window, operand 2']
    #allocation7 [shape = 's32[2]{0}', space=sflag, size = 0x8, scoped, tag = 'scoped memory for byol_projector.1']
    #allocation8 [shape = 'u8[16384]{0}', space=vmem, size = 0x4000, scoped, tag = 'input window, operand 3']
    #allocation9 [shape = 'u8[2097152]{0}', space=vmem, size = 0x200000, scoped, tag = 'input window, operand 4']
    #allocation10 [shape = 's32[2]{0}', space=sflag, size = 0x8, scoped, tag = 'scoped memory for byol_projector.1']
    #allocation11 [shape = 'u8[16384]{0}', space=vmem, size = 0x4000, scoped, tag = 'output window, operand 0, single buffered']
    %10 = vsyncpa [#allocation4], 0
    %s11 = scalar_lea.sflag [#allocation4], 1
    %12 = vsyncpa %s11, 0
    %13 = vsyncpa [#allocation7], 0
    %s14 = scalar_lea.sflag [#allocation7], 1
    %15 = vsyncpa %s14, 0
    %16 = vsyncpa [#allocation10], 0
    %s17 = scalar_lea.sflag [#allocation10], 1
    %18 = vsyncpa %s17, 0
    %19 = vsyncpa [#allocation5], 0
    loop: start=0, step=1, limit=4
    $region2: #{byol_projector.1} parent=1 // loop_pre_header
      _
    $region3: #{byol_projector.1} parent=1 // loop_header
      %s21 = sphi 0, %s25
      %p22 = scmp.ge.s32.totalorder %s21, 4
      %s29 = sphi 0, %s29
      %s31 = sphi 0, %s29
      %s32 = sphi 0, %s31
      %s46 = sphi 0, %s32
      %s52 = sphi 0, %s54
      %s55 = sphi 0, %s52
      %s56 = sphi 0, %s55
      %s72 = sphi 0, %s56
      %s78 = sphi 0, %s80
      %s81 = sphi 0, %s78
      %s82 = sphi 0, %s81
      %s98 = sphi 0, %s82
      %s104 = sphi 0, %s106
      %s107 = sphi 0, %s104
      %s108 = sphi 0, %s107
      %s124 = sphi 0, %s108
      %s130 = sphi 0, %s132
      %s133 = sphi 0, %s130
      %s134 = sphi 0, %s133
      %s150 = sphi 0, %s134
      %s154 = sphi 0, %s154
      %s156 = sphi 0, %s154
      %s157 = sphi 0, %s156
      %s171 = sphi 0, %s157
    $region4: #{byol_projector.1} parent=1 // loop_header_branch
      %24 = sbr.rel (%p22) target = $region8
    $region5: #{byol_projector.1} parent=1 // loop_body
      %s26 = ssub.s32 %s21, 1
      %s27 = ssub.s32 %s21, 2
      %s28 = sadd.s32 %s21, 1
      %s30 = sadd.s32 %s29, 1
      %p33 = scmp.eq.s32.totalorder %s21, 1
      %p34 = scmp.ne.s32.totalorder %s29, %s31
      %p35 = scmp.eq.s32.totalorder %s21, 0
      %p36 = por %p34, %p35
      %p37 = scmp.ne.s32.totalorder %s29, %s31
      %p38 = scmp.eq.s32.totalorder %s26, 1
      %p39 = por %p37, %p38
      %p40 = scmp.ne.s32.totalorder %s31, %s32
      %p41 = scmp.eq.s32.totalorder %s26, 0
      %p42 = por %p40, %p41
      %p43 = scmp.ne.s32.totalorder %s31, %s32
      %p44 = scmp.eq.s32.totalorder %s27, 1
      %p45 = por %p43, %p44
      %p47 = scmp.ne.s32.totalorder %s32, %s46
      %p48 = scmp.eq.s32.totalorder %s27, 0
      %p49 = por %p47, %p48
      %s50 = ssub.s32 %s21, %s28
      %p51 = scmp.eq.s32.totalorder %s50, 0
      %s53 = sadd.s32 %s52, 1
      %s54 = scalar_select %p51, %s52, %s53
      %p57 = pneg %p51
      %p58 = scmp.eq.s32.totalorder %s21, 1
      %p59 = por %p57, %p58
      %p60 = scmp.ne.s32.totalorder %s52, %s55
      %p61 = scmp.eq.s32.totalorder %s21, 0
      %p62 = por %p60, %p61
      %p63 = scmp.ne.s32.totalorder %s52, %s55
      %p64 = scmp.eq.s32.totalorder %s26, 1
      %p65 = por %p63, %p64
      %p66 = scmp.ne.s32.totalorder %s55, %s56
      %p67 = scmp.eq.s32.totalorder %s26, 0
      %p68 = por %p66, %p67
      %p69 = scmp.ne.s32.totalorder %s55, %s56
      %p70 = scmp.eq.s32.totalorder %s27, 1
      %p71 = por %p69, %p70
      %p73 = scmp.ne.s32.totalorder %s56, %s72
      %p74 = scmp.eq.s32.totalorder %s27, 0
      %p75 = por %p73, %p74
      %s76 = ssub.s32 %s21, %s28
      %p77 = scmp.eq.s32.totalorder %s76, 0
      %s79 = sadd.s32 %s78, 1
      %s80 = scalar_select %p77, %s78, %s79
      %p83 = pneg %p77
      %p84 = scmp.eq.s32.totalorder %s21, 1
      %p85 = por %p83, %p84
      %p86 = scmp.ne.s32.totalorder %s78, %s81
      %p87 = scmp.eq.s32.totalorder %s21, 0
      %p88 = por %p86, %p87
      %p89 = scmp.ne.s32.totalorder %s78, %s81
      %p90 = scmp.eq.s32.totalorder %s26, 1
      %p91 = por %p89, %p90
      %p92 = scmp.ne.s32.totalorder %s81, %s82
      %p93 = scmp.eq.s32.totalorder %s26, 0
      %p94 = por %p92, %p93
      %p95 = scmp.ne.s32.totalorder %s81, %s82
      %p96 = scmp.eq.s32.totalorder %s27, 1
      %p97 = por %p95, %p96
      %p99 = scmp.ne.s32.totalorder %s82, %s98
      %p100 = scmp.eq.s32.totalorder %s27, 0
      %p101 = por %p99, %p100
      %s102 = ssub.s32 %s21, %s28
      %p103 = scmp.eq.s32.totalorder %s102, 0
      %s105 = sadd.s32 %s104, 1
      %s106 = scalar_select %p103, %s104, %s105
      %p109 = pneg %p103
      %p110 = scmp.eq.s32.totalorder %s21, 1
      %p111 = por %p109, %p110
      %p112 = scmp.ne.s32.totalorder %s104, %s107
      %p113 = scmp.eq.s32.totalorder %s21, 0
      %p114 = por %p112, %p113
      %p115 = scmp.ne.s32.totalorder %s104, %s107
      %p116 = scmp.eq.s32.totalorder %s26, 1
      %p117 = por %p115, %p116
      %p118 = scmp.ne.s32.totalorder %s107, %s108
      %p119 = scmp.eq.s32.totalorder %s26, 0
      %p120 = por %p118, %p119
      %p121 = scmp.ne.s32.totalorder %s107, %s108
      %p122 = scmp.eq.s32.totalorder %s27, 1
      %p123 = por %p121, %p122
      %p125 = scmp.ne.s32.totalorder %s108, %s124
      %p126 = scmp.eq.s32.totalorder %s27, 0
      %p127 = por %p125, %p126
      %s128 = ssub.s32 %s21, %s28
      %p129 = scmp.eq.s32.totalorder %s128, 0
      %s131 = sadd.s32 %s130, 1
      %s132 = scalar_select %p129, %s130, %s131
      %p135 = pneg %p129
      %p136 = scmp.eq.s32.totalorder %s21, 1
      %p137 = por %p135, %p136
      %p138 = scmp.ne.s32.totalorder %s130, %s133
      %p139 = scmp.eq.s32.totalorder %s21, 0
      %p140 = por %p138, %p139
      %p141 = scmp.ne.s32.totalorder %s130, %s133
      %p142 = scmp.eq.s32.totalorder %s26, 1
      %p143 = por %p141, %p142
      %p144 = scmp.ne.s32.totalorder %s133, %s134
      %p145 = scmp.eq.s32.totalorder %s26, 0
      %p146 = por %p144, %p145
      %p147 = scmp.ne.s32.totalorder %s133, %s134
      %p148 = scmp.eq.s32.totalorder %s27, 1
      %p149 = por %p147, %p148
      %p151 = scmp.ne.s32.totalorder %s134, %s150
      %p152 = scmp.eq.s32.totalorder %s27, 0
      %p153 = por %p151, %p152
      %s155 = sadd.s32 %s154, 1
      %p158 = scmp.eq.s32.totalorder %s21, 1
      %p159 = scmp.ne.s32.totalorder %s154, %s156
      %p160 = scmp.eq.s32.totalorder %s21, 0
      %p161 = por %p159, %p160
      %p162 = scmp.ne.s32.totalorder %s154, %s156
      %p163 = scmp.eq.s32.totalorder %s26, 1
      %p164 = por %p162, %p163
      %p165 = scmp.ne.s32.totalorder %s156, %s157
      %p166 = scmp.eq.s32.totalorder %s26, 0
      %p167 = por %p165, %p166
      %p168 = scmp.ne.s32.totalorder %s156, %s157
      %p169 = scmp.eq.s32.totalorder %s27, 1
      %p170 = por %p168, %p169
      %p172 = scmp.ne.s32.totalorder %s157, %s171
      %p173 = scmp.eq.s32.totalorder %s27, 0
      %p174 = por %p172, %p173
      %p175 = scmp.le.s32.totalorder 1, %s21
      %p176 = scmp.lt.s32.totalorder %s21, 3
      %p177 = pnand %p175, %p176
      %p178 = pneg %p177
      // Predicated region
      $region9: #{byol_projector.1} parent=5 // pred_check
        _
      $region10: #{byol_projector.1} parent=5 // pred_check_branch
        %180 = sbr.rel (%p177) target = $region12
      $region11: #{byol_projector.1} parent=5 // pred_region
        %s181 = ssub.s32 %s21, 1
        // Predicated region
        $region13: #{byol_projector.1} parent=11 // pred_check
          %p182 = pneg %p42
        $region14: #{byol_projector.1} parent=11 // pred_check_branch
          %184 = sbr.rel (%p182) target = $region16
        $region15: #{byol_projector.1} parent=11 // pred_region
          _
        $region16: #{byol_projector.1} parent=11 // pred_fallthru
          _
      $region12: #{byol_projector.1} parent=5 // pred_fallthru
        _
      %p185 = scmp.lt.s32.totalorder %s21, 2
      // Predicated region
      $region17: #{byol_projector.1} parent=5 // pred_check
        %p186 = pneg %p185
      $region18: #{byol_projector.1} parent=5 // pred_check_branch
        %188 = sbr.rel (%p186) target = $region20
      $region19: #{byol_projector.1} parent=5 // pred_region
        // Predicated region
        $region21: #{byol_projector.1} parent=19 // pred_check
          %p189 = pneg %p62
        $region22: #{byol_projector.1} parent=19 // pred_check_branch
          %191 = sbr.rel (%p189) target = $region24
        $region23: #{byol_projector.1} parent=19 // pred_region
          %s192 = sand.u32 %s52, 1
          %s193 = scalar_lea.sflag [#allocation4], %s192
          %s194 = sand.u32 %s52, 1
          %s195 = smul.addr %s194, 4096
          %s196 = scalar_lea.vmem [#allocation3], %s195
          %s197 = smul.u32 16, %s21
          %s199 = ssub.s32 65536, 65536
          %200 = vsyncadd %s193, %s199
          %s201 = smul.addr %s197, 64
          %s202 = scalar_lea.hbm %s1, %s201
          %s203 = sshll.u32 %s196, 4
          %s204 = int_to_ptr.vmem [resolvable:$true] %s203
          %209 = dma.hbm_to_vmem [thread:$0]  %s202, 65536, %s204, %s193, 2048, 1024, 64
        $region24: #{byol_projector.1} parent=19 // pred_fallthru
          _
        // Predicated region
        $region25: #{byol_projector.1} parent=19 // pred_check
          %p210 = pneg %p88
        $region26: #{byol_projector.1} parent=19 // pred_check_branch
          %212 = sbr.rel (%p210) target = $region28
        $region27: #{byol_projector.1} parent=19 // pred_region
          %s213 = sand.u32 %s21, 1
          %s214 = scalar_lea.sflag [#allocation7], %s213
          %s215 = sand.u32 %s78, 1
          %s216 = smul.addr %s215, 16
          %s217 = scalar_lea.vmem [#allocation6], %s216
          %s218 = smul.u32 16, %s21
          %s220 = ssub.s32 256, 256
          %221 = vsyncadd %s214, %s220
          %s222 = smul.addr %s218, 16
          %s223 = scalar_lea.hbm %s2, %s222
          %s225 = sshll.u32 %s217, 4
          %s226 = int_to_ptr.vmem [resolvable:$true] %s225
          %228 = dma.hbm_to_vmem [thread:$0]  %s223, 256, %s226, %s214
        $region28: #{byol_projector.1} parent=19 // pred_fallthru
          _
        // Predicated region
        $region29: #{byol_projector.1} parent=19 // pred_check
          %p229 = pneg %p114
        $region30: #{byol_projector.1} parent=19 // pred_check_branch
          %231 = sbr.rel (%p229) target = $region32
        $region31: #{byol_projector.1} parent=19 // pred_region
          %s232 = sand.u32 %s21, 1
          %s233 = scalar_lea.sflag [#allocation7], %s232
          %s234 = sand.u32 %s104, 1
          %s235 = smul.addr %s234, 16
          %s236 = scalar_lea.vmem [#allocation8], %s235
          %s237 = smul.u32 16, %s21
          %s239 = ssub.s32 256, 256
          %240 = vsyncadd %s233, %s239
          %s241 = smul.addr %s237, 16
          %s242 = scalar_lea.hbm %s3, %s241
          %s244 = sshll.u32 %s236, 4
          %s245 = int_to_ptr.vmem [resolvable:$true] %s244
          %247 = dma.hbm_to_vmem [thread:$0]  %s242, 256, %s245, %s233
        $region32: #{byol_projector.1} parent=19 // pred_fallthru
          _
        // Predicated region
        $region33: #{byol_projector.1} parent=19 // pred_check
          %p248 = pneg %p140
        $region34: #{byol_projector.1} parent=19 // pred_check_branch
          %250 = sbr.rel (%p248) target = $region36
        $region35: #{byol_projector.1} parent=19 // pred_region
          %s251 = sand.u32 %s130, 1
          %s252 = scalar_lea.sflag [#allocation10], %s251
          %s253 = sand.u32 %s130, 1
          %s254 = smul.addr %s253, 2048
          %s255 = scalar_lea.vmem [#allocation9], %s254
          %s256 = smul.u32 256, %s21
          %s258 = ssub.s32 32768, 32768
          %259 = vsyncadd %s252, %s258
          %s260 = smul.addr %s256, 2
          %s261 = smul.addr %s260, 64
          %s262 = scalar_lea.hbm %s4, %s261
          %s263 = sshll.u32 %s255, 4
          %s264 = int_to_ptr.vmem [resolvable:$true] %s263
          %269 = dma.hbm_to_vmem [thread:$0]  %s262, 32768, %s264, %s252, 128, 128, 8
        $region36: #{byol_projector.1} parent=19 // pred_fallthru
          _
      $region20: #{byol_projector.1} parent=5 // pred_fallthru
        _
      %p270 = scmp.le.s32.totalorder 1, %s21
      %p271 = scmp.lt.s32.totalorder %s21, 3
      %p272 = pnand %p270, %p271
      %p273 = pneg %p272
      // Predicated region
      $region37: #{byol_projector.1} parent=5 // pred_check
        _
      $region38: #{byol_projector.1} parent=5 // pred_check_branch
        %275 = sbr.rel (%p272) target = $region40
      $region39: #{byol_projector.1} parent=5 // pred_region
        %s276 = ssub.s32 %s21, 1
        %s277 = sand.u32 %s55, 1
        %s278 = scalar_lea.sflag [#allocation4], %s277
        %s279 = sand.u32 %s55, 1
        %s280 = smul.addr %s279, 4096
        %s281 = scalar_lea.vmem [#allocation3], %s280
        // Predicated region
        $region41: #{byol_projector.1} parent=39 // pred_check
          %p282 = pneg %p68
        $region42: #{byol_projector.1} parent=39 // pred_check_branch
          %284 = sbr.rel (%p282) target = $region44
        $region43: #{byol_projector.1} parent=39 // pred_region
          %285 = dma.done %s278, 65536
        $region44: #{byol_projector.1} parent=39 // pred_fallthru
          _
        %s286 = sand.u32 %s26, 1
        %s287 = scalar_lea.sflag [#allocation7], %s286
        %s288 = sand.u32 %s81, 1
        %s289 = smul.addr %s288, 16
        %s290 = scalar_lea.vmem [#allocation6], %s289
        // Predicated region
        $region45: #{byol_projector.1} parent=39 // pred_check
          %p291 = pneg %p94
        $region46: #{byol_projector.1} parent=39 // pred_check_branch
          %293 = sbr.rel (%p291) target = $region48
        $region47: #{byol_projector.1} parent=39 // pred_region
          %294 = dma.done %s287, 256
        $region48: #{byol_projector.1} parent=39 // pred_fallthru
          _
        %s295 = sand.u32 %s26, 1
        %s296 = scalar_lea.sflag [#allocation7], %s295
        %s297 = sand.u32 %s107, 1
        %s298 = smul.addr %s297, 16
        %s299 = scalar_lea.vmem [#allocation8], %s298
        // Predicated region
        $region49: #{byol_projector.1} parent=39 // pred_check
          %p300 = pneg %p120
        $region50: #{byol_projector.1} parent=39 // pred_check_branch
          %302 = sbr.rel (%p300) target = $region52
        $region51: #{byol_projector.1} parent=39 // pred_region
          %303 = dma.done %s296, 256
        $region52: #{byol_projector.1} parent=39 // pred_fallthru
          _
        %s304 = sand.u32 %s133, 1
        %s305 = scalar_lea.sflag [#allocation10], %s304
        %s306 = sand.u32 %s133, 1
        %s307 = smul.addr %s306, 2048
        %s308 = scalar_lea.vmem [#allocation9], %s307
        // Predicated region
        $region53: #{byol_projector.1} parent=39 // pred_check
          %p309 = pneg %p146
        $region54: #{byol_projector.1} parent=39 // pred_check_branch
          %311 = sbr.rel (%p309) target = $region56
        $region55: #{byol_projector.1} parent=39 // pred_region
          %312 = dma.done %s305, 32768
        $region56: #{byol_projector.1} parent=39 // pred_fallthru
          _
        %p313 = pneg %p42
        %p314 = pneg %p39
        %s315 = sand.u32 %s55, 1
        %s316 = scalar_lea.sflag [#allocation4], %s315
        %s317 = sand.u32 %s55, 1
        %s318 = smul.addr %s317, 4096
        %s319 = scalar_lea.vmem [#allocation3], %s318
        %p320 = pneg %p68
        %p321 = pneg %p65
        %s322 = sand.u32 %s26, 1
        %s323 = scalar_lea.sflag [#allocation7], %s322
        %s324 = sand.u32 %s81, 1
        %s325 = smul.addr %s324, 16
        %s326 = scalar_lea.vmem [#allocation6], %s325
        %p327 = pneg %p94
        %p328 = pneg %p91
        %s329 = sand.u32 %s26, 1
        %s330 = scalar_lea.sflag [#allocation7], %s329
        %s331 = sand.u32 %s107, 1
        %s332 = smul.addr %s331, 16
        %s333 = scalar_lea.vmem [#allocation8], %s332
        %p334 = pneg %p120
        %p335 = pneg %p117
        %s336 = sand.u32 %s133, 1
        %s337 = scalar_lea.sflag [#allocation10], %s336
        %s338 = sand.u32 %s133, 1
        %s339 = smul.addr %s338, 2048
        %s340 = scalar_lea.vmem [#allocation9], %s339
        %p341 = pneg %p146
        %p342 = pneg %p143
        %p343 = pneg %p167
        %p344 = pneg %p164
        %s345 = smul.u32 16, %s26
        %s346 = smul.u32 16, %s26
        %s347 = smul.u32 16, %s26
        %s348 = smul.u32 256, %s26
        %v349 = vld [vmem:[%s0] sm:$0xff]
        %v350 = vld [vmem:[%s0 + $0x8] sm:$0xff]
        %v351 = vld [vmem:[%s0 + $0x10] sm:$0xff]
        %v352 = vld [vmem:[%s0 + $0x18] sm:$0xff]
        %v353 = vld [vmem:[%s281] sm:$0xff]
        %v354 = vld [vmem:[%s281 + $0x8] sm:$0xff]
        %v355 = vld [vmem:[%s281 + $0x10] sm:$0xff]
        %v356 = vld [vmem:[%s281 + $0x18] sm:$0xff]
        %v357 = vld [vmem:[%s281 + $0x20] sm:$0xff]
        %v358 = vld [vmem:[%s281 + $0x28] sm:$0xff]
        %v359 = vld [vmem:[%s281 + $0x30] sm:$0xff]
        %v360 = vld [vmem:[%s281 + $0x38] sm:$0xff]
        %v361 = vld [vmem:[%s281 + $0x40] sm:$0xff]
        %v362 = vld [vmem:[%s281 + $0x48] sm:$0xff]
        %v363 = vld [vmem:[%s281 + $0x50] sm:$0xff]
        %v364 = vld [vmem:[%s281 + $0x58] sm:$0xff]
        %v365 = vld [vmem:[%s281 + $0x60] sm:$0xff]
        %v366 = vld [vmem:[%s281 + $0x68] sm:$0xff]
        %v367 = vld [vmem:[%s281 + $0x70] sm:$0xff]
        %v368 = vld [vmem:[%s281 + $0x78] sm:$0xff]
        %v369 = vld [vmem:[%s281 + $0x80] sm:$0xff]
        %v370 = vld [vmem:[%s281 + $0x88] sm:$0xff]
        %v371 = vld [vmem:[%s281 + $0x90] sm:$0xff]
        %v372 = vld [vmem:[%s281 + $0x98] sm:$0xff]
        %v373 = vld [vmem:[%s281 + $0xa0] sm:$0xff]
        %v374 = vld [vmem:[%s281 + $0xa8] sm:$0xff]
        %v375 = vld [vmem:[%s281 + $0xb0] sm:$0xff]
        %v376 = vld [vmem:[%s281 + $0xb8] sm:$0xff]
        %v377 = vld [vmem:[%s281 + $0xc0] sm:$0xff]
        %v378 = vld [vmem:[%s281 + $0xc8] sm:$0xff]
        %v379 = vld [vmem:[%s281 + $0xd0] sm:$0xff]
        %v380 = vld [vmem:[%s281 + $0xd8] sm:$0xff]
        %v381 = vld [vmem:[%s281 + $0xe0] sm:$0xff]
        %v382 = vld [vmem:[%s281 + $0xe8] sm:$0xff]
        %v383 = vld [vmem:[%s281 + $0xf0] sm:$0xff]
        %v384 = vld [vmem:[%s281 + $0xf8] sm:$0xff]
        %v385 = vld [vmem:[%s281 + $0x100] sm:$0xff]
        %v386 = vld [vmem:[%s281 + $0x108] sm:$0xff]
        %v387 = vld [vmem:[%s281 + $0x110] sm:$0xff]
        %v388 = vld [vmem:[%s281 + $0x118] sm:$0xff]
        %v389 = vld [vmem:[%s281 + $0x120] sm:$0xff]
        %v390 = vld [vmem:[%s281 + $0x128] sm:$0xff]
        %v391 = vld [vmem:[%s281 + $0x130] sm:$0xff]
        %v392 = vld [vmem:[%s281 + $0x138] sm:$0xff]
        %v393 = vld [vmem:[%s281 + $0x140] sm:$0xff]
        %v394 = vld [vmem:[%s281 + $0x148] sm:$0xff]
        %v395 = vld [vmem:[%s281 + $0x150] sm:$0xff]
        %v396 = vld [vmem:[%s281 + $0x158] sm:$0xff]
        %v397 = vld [vmem:[%s281 + $0x160] sm:$0xff]
        %v398 = vld [vmem:[%s281 + $0x168] sm:$0xff]
        %v399 = vld [vmem:[%s281 + $0x170] sm:$0xff]
        %v400 = vld [vmem:[%s281 + $0x178] sm:$0xff]
        %v401 = vld [vmem:[%s281 + $0x180] sm:$0xff]
        %v402 = vld [vmem:[%s281 + $0x188] sm:$0xff]
        %v403 = vld [vmem:[%s281 + $0x190] sm:$0xff]
        %v404 = vld [vmem:[%s281 + $0x198] sm:$0xff]
        %v405 = vld [vmem:[%s281 + $0x1a0] sm:$0xff]
        %v406 = vld [vmem:[%s281 + $0x1a8] sm:$0xff]
        %v407 = vld [vmem:[%s281 + $0x1b0] sm:$0xff]
        %v408 = vld [vmem:[%s281 + $0x1b8] sm:$0xff]
        %v409 = vld [vmem:[%s281 + $0x1c0] sm:$0xff]
        %v410 = vld [vmem:[%s281 + $0x1c8] sm:$0xff]
        %v411 = vld [vmem:[%s281 + $0x1d0] sm:$0xff]
        %v412 = vld [vmem:[%s281 + $0x1d8] sm:$0xff]
        %v413 = vld [vmem:[%s281 + $0x1e0] sm:$0xff]
        %v414 = vld [vmem:[%s281 + $0x1e8] sm:$0xff]
        %v415 = vld [vmem:[%s281 + $0x1f0] sm:$0xff]
        %v416 = vld [vmem:[%s281 + $0x1f8] sm:$0xff]
        %v417 = vld [vmem:[%s281 + $0x200] sm:$0xff]
        %v418 = vld [vmem:[%s281 + $0x208] sm:$0xff]
        %v419 = vld [vmem:[%s281 + $0x210] sm:$0xff]
        %v420 = vld [vmem:[%s281 + $0x218] sm:$0xff]
        %v421 = vld [vmem:[%s281 + $0x220] sm:$0xff]
        %v422 = vld [vmem:[%s281 + $0x228] sm:$0xff]
        %v423 = vld [vmem:[%s281 + $0x230] sm:$0xff]
        %v424 = vld [vmem:[%s281 + $0x238] sm:$0xff]
        %v425 = vld [vmem:[%s281 + $0x240] sm:$0xff]
        %v426 = vld [vmem:[%s281 + $0x248] sm:$0xff]
        %v427 = vld [vmem:[%s281 + $0x250] sm:$0xff]
        %v428 = vld [vmem:[%s281 + $0x258] sm:$0xff]
        %v429 = vld [vmem:[%s281 + $0x260] sm:$0xff]
        %v430 = vld [vmem:[%s281 + $0x268] sm:$0xff]
        %v431 = vld [vmem:[%s281 + $0x270] sm:$0xff]
        %v432 = vld [vmem:[%s281 + $0x278] sm:$0xff]
        %v433 = vld [vmem:[%s281 + $0x280] sm:$0xff]
        %v434 = vld [vmem:[%s281 + $0x288] sm:$0xff]
        %v435 = vld [vmem:[%s281 + $0x290] sm:$0xff]
        %v436 = vld [vmem:[%s281 + $0x298] sm:$0xff]
        %v437 = vld [vmem:[%s281 + $0x2a0] sm:$0xff]
        %v438 = vld [vmem:[%s281 + $0x2a8] sm:$0xff]
        %v439 = vld [vmem:[%s281 + $0x2b0] sm:$0xff]
        %v440 = vld [vmem:[%s281 + $0x2b8] sm:$0xff]
        %v441 = vld [vmem:[%s281 + $0x2c0] sm:$0xff]
        %v442 = vld [vmem:[%s281 + $0x2c8] sm:$0xff]
        %v443 = vld [vmem:[%s281 + $0x2d0] sm:$0xff]
        %v444 = vld [vmem:[%s281 + $0x2d8] sm:$0xff]
        %v445 = vld [vmem:[%s281 + $0x2e0] sm:$0xff]
        %v446 = vld [vmem:[%s281 + $0x2e8] sm:$0xff]
        %v447 = vld [vmem:[%s281 + $0x2f0] sm:$0xff]
        %v448 = vld [vmem:[%s281 + $0x2f8] sm:$0xff]
        %v449 = vld [vmem:[%s281 + $0x300] sm:$0xff]
        %v450 = vld [vmem:[%s281 + $0x308] sm:$0xff]
        %v451 = vld [vmem:[%s281 + $0x310] sm:$0xff]
        %v452 = vld [vmem:[%s281 + $0x318] sm:$0xff]
        %v453 = vld [vmem:[%s281 + $0x320] sm:$0xff]
        %v454 = vld [vmem:[%s281 + $0x328] sm:$0xff]
        %v455 = vld [vmem:[%s281 + $0x330] sm:$0xff]
        %v456 = vld [vmem:[%s281 + $0x338] sm:$0xff]
        %v457 = vld [vmem:[%s281 + $0x340] sm:$0xff]
        %v458 = vld [vmem:[%s281 + $0x348] sm:$0xff]
        %v459 = vld [vmem:[%s281 + $0x350] sm:$0xff]
        %v460 = vld [vmem:[%s281 + $0x358] sm:$0xff]
        %v461 = vld [vmem:[%s281 + $0x360] sm:$0xff]
        %v462 = vld [vmem:[%s281 + $0x368] sm:$0xff]
        %v463 = vld [vmem:[%s281 + $0x370] sm:$0xff]
        %v464 = vld [vmem:[%s281 + $0x378] sm:$0xff]
        %v465 = vld [vmem:[%s281 + $0x380] sm:$0xff]
        %v466 = vld [vmem:[%s281 + $0x388] sm:$0xff]
        %v467 = vld [vmem:[%s281 + $0x390] sm:$0xff]
        %v468 = vld [vmem:[%s281 + $0x398] sm:$0xff]
        %v469 = vld [vmem:[%s281 + $0x3a0] sm:$0xff]
        %v470 = vld [vmem:[%s281 + $0x3a8] sm:$0xff]
        %v471 = vld [vmem:[%s281 + $0x3b0] sm:$0xff]
        %v472 = vld [vmem:[%s281 + $0x3b8] sm:$0xff]
        %v473 = vld [vmem:[%s281 + $0x3c0] sm:$0xff]
        %v474 = vld [vmem:[%s281 + $0x3c8] sm:$0xff]
        %v475 = vld [vmem:[%s281 + $0x3d0] sm:$0xff]
        %v476 = vld [vmem:[%s281 + $0x3d8] sm:$0xff]
        %v477 = vld [vmem:[%s281 + $0x3e0] sm:$0xff]
        %v478 = vld [vmem:[%s281 + $0x3e8] sm:$0xff]
        %v479 = vld [vmem:[%s281 + $0x3f0] sm:$0xff]
        %v480 = vld [vmem:[%s281 + $0x3f8] sm:$0xff]
        %v481 = vld [vmem:[%s281 + $0x400] sm:$0xff]
        %v482 = vld [vmem:[%s281 + $0x408] sm:$0xff]
        %v483 = vld [vmem:[%s281 + $0x410] sm:$0xff]
        %v484 = vld [vmem:[%s281 + $0x418] sm:$0xff]
        %v485 = vld [vmem:[%s281 + $0x420] sm:$0xff]
        %v486 = vld [vmem:[%s281 + $0x428] sm:$0xff]
        %v487 = vld [vmem:[%s281 + $0x430] sm:$0xff]
        %v488 = vld [vmem:[%s281 + $0x438] sm:$0xff]
        %v489 = vld [vmem:[%s281 + $0x440] sm:$0xff]
        %v490 = vld [vmem:[%s281 + $0x448] sm:$0xff]
        %v491 = vld [vmem:[%s281 + $0x450] sm:$0xff]
        %v492 = vld [vmem:[%s281 + $0x458] sm:$0xff]
        %v493 = vld [vmem:[%s281 + $0x460] sm:$0xff]
        %v494 = vld [vmem:[%s281 + $0x468] sm:$0xff]
        %v495 = vld [vmem:[%s281 + $0x470] sm:$0xff]
        %v496 = vld [vmem:[%s281 + $0x478] sm:$0xff]
        %v497 = vld [vmem:[%s281 + $0x480] sm:$0xff]
        %v498 = vld [vmem:[%s281 + $0x488] sm:$0xff]
        %v499 = vld [vmem:[%s281 + $0x490] sm:$0xff]
        %v500 = vld [vmem:[%s281 + $0x498] sm:$0xff]
        %v501 = vld [vmem:[%s281 + $0x4a0] sm:$0xff]
        %v502 = vld [vmem:[%s281 + $0x4a8] sm:$0xff]
        %v503 = vld [vmem:[%s281 + $0x4b0] sm:$0xff]
        %v504 = vld [vmem:[%s281 + $0x4b8] sm:$0xff]
        %v505 = vld [vmem:[%s281 + $0x4c0] sm:$0xff]
        %v506 = vld [vmem:[%s281 + $0x4c8] sm:$0xff]
        %v507 = vld [vmem:[%s281 + $0x4d0] sm:$0xff]
        %v508 = vld [vmem:[%s281 + $0x4d8] sm:$0xff]
        %v509 = vld [vmem:[%s281 + $0x4e0] sm:$0xff]
        %v510 = vld [vmem:[%s281 + $0x4e8] sm:$0xff]
        %v511 = vld [vmem:[%s281 + $0x4f0] sm:$0xff]
        %v512 = vld [vmem:[%s281 + $0x4f8] sm:$0xff]
        %v513 = vld [vmem:[%s281 + $0x500] sm:$0xff]
        %v514 = vld [vmem:[%s281 + $0x508] sm:$0xff]
        %v515 = vld [vmem:[%s281 + $0x510] sm:$0xff]
        %v516 = vld [vmem:[%s281 + $0x518] sm:$0xff]
        %v517 = vld [vmem:[%s281 + $0x520] sm:$0xff]
        %v518 = vld [vmem:[%s281 + $0x528] sm:$0xff]
        %v519 = vld [vmem:[%s281 + $0x530] sm:$0xff]
        %v520 = vld [vmem:[%s281 + $0x538] sm:$0xff]
        %v521 = vld [vmem:[%s281 + $0x540] sm:$0xff]
        %v522 = vld [vmem:[%s281 + $0x548] sm:$0xff]
        %v523 = vld [vmem:[%s281 + $0x550] sm:$0xff]
        %v524 = vld [vmem:[%s281 + $0x558] sm:$0xff]
        %v525 = vld [vmem:[%s281 + $0x560] sm:$0xff]
        %v526 = vld [vmem:[%s281 + $0x568] sm:$0xff]
        %v527 = vld [vmem:[%s281 + $0x570] sm:$0xff]
        %v528 = vld [vmem:[%s281 + $0x578] sm:$0xff]
        %v529 = vld [vmem:[%s281 + $0x580] sm:$0xff]
        %v530 = vld [vmem:[%s281 + $0x588] sm:$0xff]
        %v531 = vld [vmem:[%s281 + $0x590] sm:$0xff]
        %v532 = vld [vmem:[%s281 + $0x598] sm:$0xff]
        %v533 = vld [vmem:[%s281 + $0x5a0] sm:$0xff]
        %v534 = vld [vmem:[%s281 + $0x5a8] sm:$0xff]
        %v535 = vld [vmem:[%s281 + $0x5b0] sm:$0xff]
        %v536 = vld [vmem:[%s281 + $0x5b8] sm:$0xff]
        %v537 = vld [vmem:[%s281 + $0x5c0] sm:$0xff]
        %v538 = vld [vmem:[%s281 + $0x5c8] sm:$0xff]
        %v539 = vld [vmem:[%s281 + $0x5d0] sm:$0xff]
        %v540 = vld [vmem:[%s281 + $0x5d8] sm:$0xff]
        %v541 = vld [vmem:[%s281 + $0x5e0] sm:$0xff]
        %v542 = vld [vmem:[%s281 + $0x5e8] sm:$0xff]
        %v543 = vld [vmem:[%s281 + $0x5f0] sm:$0xff]
        %v544 = vld [vmem:[%s281 + $0x5f8] sm:$0xff]
        %v545 = vld [vmem:[%s281 + $0x600] sm:$0xff]
        %v546 = vld [vmem:[%s281 + $0x608] sm:$0xff]
        %v547 = vld [vmem:[%s281 + $0x610] sm:$0xff]
        %v548 = vld [vmem:[%s281 + $0x618] sm:$0xff]
        %v549 = vld [vmem:[%s281 + $0x620] sm:$0xff]
        %v550 = vld [vmem:[%s281 + $0x628] sm:$0xff]
        %v551 = vld [vmem:[%s281 + $0x630] sm:$0xff]
        %v552 = vld [vmem:[%s281 + $0x638] sm:$0xff]
        %v553 = vld [vmem:[%s281 + $0x640] sm:$0xff]
        %v554 = vld [vmem:[%s281 + $0x648] sm:$0xff]
        %v555 = vld [vmem:[%s281 + $0x650] sm:$0xff]
        %v556 = vld [vmem:[%s281 + $0x658] sm:$0xff]
        %v557 = vld [vmem:[%s281 + $0x660] sm:$0xff]
        %v558 = vld [vmem:[%s281 + $0x668] sm:$0xff]
        %v559 = vld [vmem:[%s281 + $0x670] sm:$0xff]
        %v560 = vld [vmem:[%s281 + $0x678] sm:$0xff]
        %v561 = vld [vmem:[%s281 + $0x680] sm:$0xff]
        %v562 = vld [vmem:[%s281 + $0x688] sm:$0xff]
        %v563 = vld [vmem:[%s281 + $0x690] sm:$0xff]
        %v564 = vld [vmem:[%s281 + $0x698] sm:$0xff]
        %v565 = vld [vmem:[%s281 + $0x6a0] sm:$0xff]
        %v566 = vld [vmem:[%s281 + $0x6a8] sm:$0xff]
        %v567 = vld [vmem:[%s281 + $0x6b0] sm:$0xff]
        %v568 = vld [vmem:[%s281 + $0x6b8] sm:$0xff]
        %v569 = vld [vmem:[%s281 + $0x6c0] sm:$0xff]
        %v570 = vld [vmem:[%s281 + $0x6c8] sm:$0xff]
        %v571 = vld [vmem:[%s281 + $0x6d0] sm:$0xff]
        %v572 = vld [vmem:[%s281 + $0x6d8] sm:$0xff]
        %v573 = vld [vmem:[%s281 + $0x6e0] sm:$0xff]
        %v574 = vld [vmem:[%s281 + $0x6e8] sm:$0xff]
        %v575 = vld [vmem:[%s281 + $0x6f0] sm:$0xff]
        %v576 = vld [vmem:[%s281 + $0x6f8] sm:$0xff]
        %v577 = vld [vmem:[%s281 + $0x700] sm:$0xff]
        %v578 = vld [vmem:[%s281 + $0x708] sm:$0xff]
        %v579 = vld [vmem:[%s281 + $0x710] sm:$0xff]
        %v580 = vld [vmem:[%s281 + $0x718] sm:$0xff]
        %v581 = vld [vmem:[%s281 + $0x720] sm:$0xff]
        %v582 = vld [vmem:[%s281 + $0x728] sm:$0xff]
        %v583 = vld [vmem:[%s281 + $0x730] sm:$0xff]
        %v584 = vld [vmem:[%s281 + $0x738] sm:$0xff]
        %v585 = vld [vmem:[%s281 + $0x740] sm:$0xff]
        %v586 = vld [vmem:[%s281 + $0x748] sm:$0xff]
        %v587 = vld [vmem:[%s281 + $0x750] sm:$0xff]
        %v588 = vld [vmem:[%s281 + $0x758] sm:$0xff]
        %v589 = vld [vmem:[%s281 + $0x760] sm:$0xff]
        %v590 = vld [vmem:[%s281 + $0x768] sm:$0xff]
        %v591 = vld [vmem:[%s281 + $0x770] sm:$0xff]
        %v592 = vld [vmem:[%s281 + $0x778] sm:$0xff]
        %v593 = vld [vmem:[%s281 + $0x780] sm:$0xff]
        %v594 = vld [vmem:[%s281 + $0x788] sm:$0xff]
        %v595 = vld [vmem:[%s281 + $0x790] sm:$0xff]
        %v596 = vld [vmem:[%s281 + $0x798] sm:$0xff]
        %v597 = vld [vmem:[%s281 + $0x7a0] sm:$0xff]
        %v598 = vld [vmem:[%s281 + $0x7a8] sm:$0xff]
        %v599 = vld [vmem:[%s281 + $0x7b0] sm:$0xff]
        %v600 = vld [vmem:[%s281 + $0x7b8] sm:$0xff]
        %v601 = vld [vmem:[%s281 + $0x7c0] sm:$0xff]
        %v602 = vld [vmem:[%s281 + $0x7c8] sm:$0xff]
        %v603 = vld [vmem:[%s281 + $0x7d0] sm:$0xff]
        %v604 = vld [vmem:[%s281 + $0x7d8] sm:$0xff]
        %v605 = vld [vmem:[%s281 + $0x7e0] sm:$0xff]
        %v606 = vld [vmem:[%s281 + $0x7e8] sm:$0xff]
        %v607 = vld [vmem:[%s281 + $0x7f0] sm:$0xff]
        %v608 = vld [vmem:[%s281 + $0x7f8] sm:$0xff]
        %v609 = vld [vmem:[%s281 + $0x800] sm:$0xff]
        %v610 = vld [vmem:[%s281 + $0x808] sm:$0xff]
        %v611 = vld [vmem:[%s281 + $0x810] sm:$0xff]
        %v612 = vld [vmem:[%s281 + $0x818] sm:$0xff]
        %v613 = vld [vmem:[%s281 + $0x820] sm:$0xff]
        %v614 = vld [vmem:[%s281 + $0x828] sm:$0xff]
        %v615 = vld [vmem:[%s281 + $0x830] sm:$0xff]
        %v616 = vld [vmem:[%s281 + $0x838] sm:$0xff]
        %v617 = vld [vmem:[%s281 + $0x840] sm:$0xff]
        %v618 = vld [vmem:[%s281 + $0x848] sm:$0xff]
        %v619 = vld [vmem:[%s281 + $0x850] sm:$0xff]
        %v620 = vld [vmem:[%s281 + $0x858] sm:$0xff]
        %v621 = vld [vmem:[%s281 + $0x860] sm:$0xff]
        %v622 = vld [vmem:[%s281 + $0x868] sm:$0xff]
        %v623 = vld [vmem:[%s281 + $0x870] sm:$0xff]
        %v624 = vld [vmem:[%s281 + $0x878] sm:$0xff]
        %v625 = vld [vmem:[%s281 + $0x880] sm:$0xff]
        %v626 = vld [vmem:[%s281 + $0x888] sm:$0xff]
        %v627 = vld [vmem:[%s281 + $0x890] sm:$0xff]
        %v628 = vld [vmem:[%s281 + $0x898] sm:$0xff]
        %v629 = vld [vmem:[%s281 + $0x8a0] sm:$0xff]
        %v630 = vld [vmem:[%s281 + $0x8a8] sm:$0xff]
        %v631 = vld [vmem:[%s281 + $0x8b0] sm:$0xff]
        %v632 = vld [vmem:[%s281 + $0x8b8] sm:$0xff]
        %v633 = vld [vmem:[%s281 + $0x8c0] sm:$0xff]
        %v634 = vld [vmem:[%s281 + $0x8c8] sm:$0xff]
        %v635 = vld [vmem:[%s281 + $0x8d0] sm:$0xff]
        %v636 = vld [vmem:[%s281 + $0x8d8] sm:$0xff]
        %v637 = vld [vmem:[%s281 + $0x8e0] sm:$0xff]
        %v638 = vld [vmem:[%s281 + $0x8e8] sm:$0xff]
        %v639 = vld [vmem:[%s281 + $0x8f0] sm:$0xff]
        %v640 = vld [vmem:[%s281 + $0x8f8] sm:$0xff]
        %v641 = vld [vmem:[%s281 + $0x900] sm:$0xff]
        %v642 = vld [vmem:[%s281 + $0x908] sm:$0xff]
        %v643 = vld [vmem:[%s281 + $0x910] sm:$0xff]
        %v644 = vld [vmem:[%s281 + $0x918] sm:$0xff]
        %v645 = vld [vmem:[%s281 + $0x920] sm:$0xff]
        %v646 = vld [vmem:[%s281 + $0x928] sm:$0xff]
        %v647 = vld [vmem:[%s281 + $0x930] sm:$0xff]
        %v648 = vld [vmem:[%s281 + $0x938] sm:$0xff]
        %v649 = vld [vmem:[%s281 + $0x940] sm:$0xff]
        %v650 = vld [vmem:[%s281 + $0x948] sm:$0xff]
        %v651 = vld [vmem:[%s281 + $0x950] sm:$0xff]
        %v652 = vld [vmem:[%s281 + $0x958] sm:$0xff]
        %v653 = vld [vmem:[%s281 + $0x960] sm:$0xff]
        %v654 = vld [vmem:[%s281 + $0x968] sm:$0xff]
        %v655 = vld [vmem:[%s281 + $0x970] sm:$0xff]
        %v656 = vld [vmem:[%s281 + $0x978] sm:$0xff]
        %v657 = vld [vmem:[%s281 + $0x980] sm:$0xff]
        %v658 = vld [vmem:[%s281 + $0x988] sm:$0xff]
        %v659 = vld [vmem:[%s281 + $0x990] sm:$0xff]
        %v660 = vld [vmem:[%s281 + $0x998] sm:$0xff]
        %v661 = vld [vmem:[%s281 + $0x9a0] sm:$0xff]
        %v662 = vld [vmem:[%s281 + $0x9a8] sm:$0xff]
        %v663 = vld [vmem:[%s281 + $0x9b0] sm:$0xff]
        %v664 = vld [vmem:[%s281 + $0x9b8] sm:$0xff]
        %v665 = vld [vmem:[%s281 + $0x9c0] sm:$0xff]
        %v666 = vld [vmem:[%s281 + $0x9c8] sm:$0xff]
        %v667 = vld [vmem:[%s281 + $0x9d0] sm:$0xff]
        %v668 = vld [vmem:[%s281 + $0x9d8] sm:$0xff]
        %v669 = vld [vmem:[%s281 + $0x9e0] sm:$0xff]
        %v670 = vld [vmem:[%s281 + $0x9e8] sm:$0xff]
        %v671 = vld [vmem:[%s281 + $0x9f0] sm:$0xff]
        %v672 = vld [vmem:[%s281 + $0x9f8] sm:$0xff]
        %v673 = vld [vmem:[%s281 + $0xa00] sm:$0xff]
        %v674 = vld [vmem:[%s281 + $0xa08] sm:$0xff]
        %v675 = vld [vmem:[%s281 + $0xa10] sm:$0xff]
        %v676 = vld [vmem:[%s281 + $0xa18] sm:$0xff]
        %v677 = vld [vmem:[%s281 + $0xa20] sm:$0xff]
        %v678 = vld [vmem:[%s281 + $0xa28] sm:$0xff]
        %v679 = vld [vmem:[%s281 + $0xa30] sm:$0xff]
        %v680 = vld [vmem:[%s281 + $0xa38] sm:$0xff]
        %v681 = vld [vmem:[%s281 + $0xa40] sm:$0xff]
        %v682 = vld [vmem:[%s281 + $0xa48] sm:$0xff]
        %v683 = vld [vmem:[%s281 + $0xa50] sm:$0xff]
        %v684 = vld [vmem:[%s281 + $0xa58] sm:$0xff]
        %v685 = vld [vmem:[%s281 + $0xa60] sm:$0xff]
        %v686 = vld [vmem:[%s281 + $0xa68] sm:$0xff]
        %v687 = vld [vmem:[%s281 + $0xa70] sm:$0xff]
        %v688 = vld [vmem:[%s281 + $0xa78] sm:$0xff]
        %v689 = vld [vmem:[%s281 + $0xa80] sm:$0xff]
        %v690 = vld [vmem:[%s281 + $0xa88] sm:$0xff]
        %v691 = vld [vmem:[%s281 + $0xa90] sm:$0xff]
        %v692 = vld [vmem:[%s281 + $0xa98] sm:$0xff]
        %v693 = vld [vmem:[%s281 + $0xaa0] sm:$0xff]
        %v694 = vld [vmem:[%s281 + $0xaa8] sm:$0xff]
        %v695 = vld [vmem:[%s281 + $0xab0] sm:$0xff]
        %v696 = vld [vmem:[%s281 + $0xab8] sm:$0xff]
        %v697 = vld [vmem:[%s281 + $0xac0] sm:$0xff]
        %v698 = vld [vmem:[%s281 + $0xac8] sm:$0xff]
        %v699 = vld [vmem:[%s281 + $0xad0] sm:$0xff]
        %v700 = vld [vmem:[%s281 + $0xad8] sm:$0xff]
        %v701 = vld [vmem:[%s281 + $0xae0] sm:$0xff]
        %v702 = vld [vmem:[%s281 + $0xae8] sm:$0xff]
        %v703 = vld [vmem:[%s281 + $0xaf0] sm:$0xff]
        %v704 = vld [vmem:[%s281 + $0xaf8] sm:$0xff]
        %v705 = vld [vmem:[%s281 + $0xb00] sm:$0xff]
        %v706 = vld [vmem:[%s281 + $0xb08] sm:$0xff]
        %v707 = vld [vmem:[%s281 + $0xb10] sm:$0xff]
        %v708 = vld [vmem:[%s281 + $0xb18] sm:$0xff]
        %v709 = vld [vmem:[%s281 + $0xb20] sm:$0xff]
        %v710 = vld [vmem:[%s281 + $0xb28] sm:$0xff]
        %v711 = vld [vmem:[%s281 + $0xb30] sm:$0xff]
        %v712 = vld [vmem:[%s281 + $0xb38] sm:$0xff]
        %v713 = vld [vmem:[%s281 + $0xb40] sm:$0xff]
        %v714 = vld [vmem:[%s281 + $0xb48] sm:$0xff]
        %v715 = vld [vmem:[%s281 + $0xb50] sm:$0xff]
        %v716 = vld [vmem:[%s281 + $0xb58] sm:$0xff]
        %v717 = vld [vmem:[%s281 + $0xb60] sm:$0xff]
        %v718 = vld [vmem:[%s281 + $0xb68] sm:$0xff]
        %v719 = vld [vmem:[%s281 + $0xb70] sm:$0xff]
        %v720 = vld [vmem:[%s281 + $0xb78] sm:$0xff]
        %v721 = vld [vmem:[%s281 + $0xb80] sm:$0xff]
        %v722 = vld [vmem:[%s281 + $0xb88] sm:$0xff]
        %v723 = vld [vmem:[%s281 + $0xb90] sm:$0xff]
        %v724 = vld [vmem:[%s281 + $0xb98] sm:$0xff]
        %v725 = vld [vmem:[%s281 + $0xba0] sm:$0xff]
        %v726 = vld [vmem:[%s281 + $0xba8] sm:$0xff]
        %v727 = vld [vmem:[%s281 + $0xbb0] sm:$0xff]
        %v728 = vld [vmem:[%s281 + $0xbb8] sm:$0xff]
        %v729 = vld [vmem:[%s281 + $0xbc0] sm:$0xff]
        %v730 = vld [vmem:[%s281 + $0xbc8] sm:$0xff]
        %v731 = vld [vmem:[%s281 + $0xbd0] sm:$0xff]
        %v732 = vld [vmem:[%s281 + $0xbd8] sm:$0xff]
        %v733 = vld [vmem:[%s281 + $0xbe0] sm:$0xff]
        %v734 = vld [vmem:[%s281 + $0xbe8] sm:$0xff]
        %v735 = vld [vmem:[%s281 + $0xbf0] sm:$0xff]
        %v736 = vld [vmem:[%s281 + $0xbf8] sm:$0xff]
        %v737 = vld [vmem:[%s281 + $0xc00] sm:$0xff]
        %v738 = vld [vmem:[%s281 + $0xc08] sm:$0xff]
        %v739 = vld [vmem:[%s281 + $0xc10] sm:$0xff]
        %v740 = vld [vmem:[%s281 + $0xc18] sm:$0xff]
        %v741 = vld [vmem:[%s281 + $0xc20] sm:$0xff]
        %v742 = vld [vmem:[%s281 + $0xc28] sm:$0xff]
        %v743 = vld [vmem:[%s281 + $0xc30] sm:$0xff]
        %v744 = vld [vmem:[%s281 + $0xc38] sm:$0xff]
        %v745 = vld [vmem:[%s281 + $0xc40] sm:$0xff]
        %v746 = vld [vmem:[%s281 + $0xc48] sm:$0xff]
        %v747 = vld [vmem:[%s281 + $0xc50] sm:$0xff]
        %v748 = vld [vmem:[%s281 + $0xc58] sm:$0xff]
        %v749 = vld [vmem:[%s281 + $0xc60] sm:$0xff]
        %v750 = vld [vmem:[%s281 + $0xc68] sm:$0xff]
        %v751 = vld [vmem:[%s281 + $0xc70] sm:$0xff]
        %v752 = vld [vmem:[%s281 + $0xc78] sm:$0xff]
        %v753 = vld [vmem:[%s281 + $0xc80] sm:$0xff]
        %v754 = vld [vmem:[%s281 + $0xc88] sm:$0xff]
        %v755 = vld [vmem:[%s281 + $0xc90] sm:$0xff]
        %v756 = vld [vmem:[%s281 + $0xc98] sm:$0xff]
        %v757 = vld [vmem:[%s281 + $0xca0] sm:$0xff]
        %v758 = vld [vmem:[%s281 + $0xca8] sm:$0xff]
        %v759 = vld [vmem:[%s281 + $0xcb0] sm:$0xff]
        %v760 = vld [vmem:[%s281 + $0xcb8] sm:$0xff]
        %v761 = vld [vmem:[%s281 + $0xcc0] sm:$0xff]
        %v762 = vld [vmem:[%s281 + $0xcc8] sm:$0xff]
        %v763 = vld [vmem:[%s281 + $0xcd0] sm:$0xff]
        %v764 = vld [vmem:[%s281 + $0xcd8] sm:$0xff]
        %v765 = vld [vmem:[%s281 + $0xce0] sm:$0xff]
        %v766 = vld [vmem:[%s281 + $0xce8] sm:$0xff]
        %v767 = vld [vmem:[%s281 + $0xcf0] sm:$0xff]
        %v768 = vld [vmem:[%s281 + $0xcf8] sm:$0xff]
        %v769 = vld [vmem:[%s281 + $0xd00] sm:$0xff]
        %v770 = vld [vmem:[%s281 + $0xd08] sm:$0xff]
        %v771 = vld [vmem:[%s281 + $0xd10] sm:$0xff]
        %v772 = vld [vmem:[%s281 + $0xd18] sm:$0xff]
        %v773 = vld [vmem:[%s281 + $0xd20] sm:$0xff]
        %v774 = vld [vmem:[%s281 + $0xd28] sm:$0xff]
        %v775 = vld [vmem:[%s281 + $0xd30] sm:$0xff]
        %v776 = vld [vmem:[%s281 + $0xd38] sm:$0xff]
        %v777 = vld [vmem:[%s281 + $0xd40] sm:$0xff]
        %v778 = vld [vmem:[%s281 + $0xd48] sm:$0xff]
        %v779 = vld [vmem:[%s281 + $0xd50] sm:$0xff]
        %v780 = vld [vmem:[%s281 + $0xd58] sm:$0xff]
        %v781 = vld [vmem:[%s281 + $0xd60] sm:$0xff]
        %v782 = vld [vmem:[%s281 + $0xd68] sm:$0xff]
        %v783 = vld [vmem:[%s281 + $0xd70] sm:$0xff]
        %v784 = vld [vmem:[%s281 + $0xd78] sm:$0xff]
        %v785 = vld [vmem:[%s281 + $0xd80] sm:$0xff]
        %v786 = vld [vmem:[%s281 + $0xd88] sm:$0xff]
        %v787 = vld [vmem:[%s281 + $0xd90] sm:$0xff]
        %v788 = vld [vmem:[%s281 + $0xd98] sm:$0xff]
        %v789 = vld [vmem:[%s281 + $0xda0] sm:$0xff]
        %v790 = vld [vmem:[%s281 + $0xda8] sm:$0xff]
        %v791 = vld [vmem:[%s281 + $0xdb0] sm:$0xff]
        %v792 = vld [vmem:[%s281 + $0xdb8] sm:$0xff]
        %v793 = vld [vmem:[%s281 + $0xdc0] sm:$0xff]
        %v794 = vld [vmem:[%s281 + $0xdc8] sm:$0xff]
        %v795 = vld [vmem:[%s281 + $0xdd0] sm:$0xff]
        %v796 = vld [vmem:[%s281 + $0xdd8] sm:$0xff]
        %v797 = vld [vmem:[%s281 + $0xde0] sm:$0xff]
        %v798 = vld [vmem:[%s281 + $0xde8] sm:$0xff]
        %v799 = vld [vmem:[%s281 + $0xdf0] sm:$0xff]
        %v800 = vld [vmem:[%s281 + $0xdf8] sm:$0xff]
        %v801 = vld [vmem:[%s281 + $0xe00] sm:$0xff]
        %v802 = vld [vmem:[%s281 + $0xe08] sm:$0xff]
        %v803 = vld [vmem:[%s281 + $0xe10] sm:$0xff]
        %v804 = vld [vmem:[%s281 + $0xe18] sm:$0xff]
        %v805 = vld [vmem:[%s281 + $0xe20] sm:$0xff]
        %v806 = vld [vmem:[%s281 + $0xe28] sm:$0xff]
        %v807 = vld [vmem:[%s281 + $0xe30] sm:$0xff]
        %v808 = vld [vmem:[%s281 + $0xe38] sm:$0xff]
        %v809 = vld [vmem:[%s281 + $0xe40] sm:$0xff]
        %v810 = vld [vmem:[%s281 + $0xe48] sm:$0xff]
        %v811 = vld [vmem:[%s281 + $0xe50] sm:$0xff]
        %v812 = vld [vmem:[%s281 + $0xe58] sm:$0xff]
        %v813 = vld [vmem:[%s281 + $0xe60] sm:$0xff]
        %v814 = vld [vmem:[%s281 + $0xe68] sm:$0xff]
        %v815 = vld [vmem:[%s281 + $0xe70] sm:$0xff]
        %v816 = vld [vmem:[%s281 + $0xe78] sm:$0xff]
        %v817 = vld [vmem:[%s281 + $0xe80] sm:$0xff]
        %v818 = vld [vmem:[%s281 + $0xe88] sm:$0xff]
        %v819 = vld [vmem:[%s281 + $0xe90] sm:$0xff]
        %v820 = vld [vmem:[%s281 + $0xe98] sm:$0xff]
        %v821 = vld [vmem:[%s281 + $0xea0] sm:$0xff]
        %v822 = vld [vmem:[%s281 + $0xea8] sm:$0xff]
        %v823 = vld [vmem:[%s281 + $0xeb0] sm:$0xff]
        %v824 = vld [vmem:[%s281 + $0xeb8] sm:$0xff]
        %v825 = vld [vmem:[%s281 + $0xec0] sm:$0xff]
        %v826 = vld [vmem:[%s281 + $0xec8] sm:$0xff]
        %v827 = vld [vmem:[%s281 + $0xed0] sm:$0xff]
        %v828 = vld [vmem:[%s281 + $0xed8] sm:$0xff]
        %v829 = vld [vmem:[%s281 + $0xee0] sm:$0xff]
        %v830 = vld [vmem:[%s281 + $0xee8] sm:$0xff]
        %v831 = vld [vmem:[%s281 + $0xef0] sm:$0xff]
        %v832 = vld [vmem:[%s281 + $0xef8] sm:$0xff]
        %v833 = vld [vmem:[%s281 + $0xf00] sm:$0xff]
        %v834 = vld [vmem:[%s281 + $0xf08] sm:$0xff]
        %v835 = vld [vmem:[%s281 + $0xf10] sm:$0xff]
        %v836 = vld [vmem:[%s281 + $0xf18] sm:$0xff]
        %v837 = vld [vmem:[%s281 + $0xf20] sm:$0xff]
        %v838 = vld [vmem:[%s281 + $0xf28] sm:$0xff]
        %v839 = vld [vmem:[%s281 + $0xf30] sm:$0xff]
        %v840 = vld [vmem:[%s281 + $0xf38] sm:$0xff]
        %v841 = vld [vmem:[%s281 + $0xf40] sm:$0xff]
        %v842 = vld [vmem:[%s281 + $0xf48] sm:$0xff]
        %v843 = vld [vmem:[%s281 + $0xf50] sm:$0xff]
        %v844 = vld [vmem:[%s281 + $0xf58] sm:$0xff]
        %v845 = vld [vmem:[%s281 + $0xf60] sm:$0xff]
        %v846 = vld [vmem:[%s281 + $0xf68] sm:$0xff]
        %v847 = vld [vmem:[%s281 + $0xf70] sm:$0xff]
        %v848 = vld [vmem:[%s281 + $0xf78] sm:$0xff]
        %v849 = vld [vmem:[%s281 + $0xf80] sm:$0xff]
        %v850 = vld [vmem:[%s281 + $0xf88] sm:$0xff]
        %v851 = vld [vmem:[%s281 + $0xf90] sm:$0xff]
        %v852 = vld [vmem:[%s281 + $0xf98] sm:$0xff]
        %v853 = vld [vmem:[%s281 + $0xfa0] sm:$0xff]
        %v854 = vld [vmem:[%s281 + $0xfa8] sm:$0xff]
        %v855 = vld [vmem:[%s281 + $0xfb0] sm:$0xff]
        %v856 = vld [vmem:[%s281 + $0xfb8] sm:$0xff]
        %v857 = vld [vmem:[%s281 + $0xfc0] sm:$0xff]
        %v858 = vld [vmem:[%s281 + $0xfc8] sm:$0xff]
        %v859 = vld [vmem:[%s281 + $0xfd0] sm:$0xff]
        %v860 = vld [vmem:[%s281 + $0xfd8] sm:$0xff]
        %v861 = vld [vmem:[%s281 + $0xfe0] sm:$0xff]
        %v862 = vld [vmem:[%s281 + $0xfe8] sm:$0xff]
        %v863 = vld [vmem:[%s281 + $0xff0] sm:$0xff]
        %v864 = vld [vmem:[%s281 + $0xff8] sm:$0xff]
        %v869 = vunpack.c.l.b16 %v349
        %v870 = vunpack.c.h.b16 %v349
        %v871 = vunpack.c.l.b16 %v350
        %v872 = vunpack.c.h.b16 %v350
        %v873 = vunpack.c.l.b16 %v351
        %v874 = vunpack.c.h.b16 %v351
        %v875 = vunpack.c.l.b16 %v352
        %v876 = vunpack.c.h.b16 %v352
        %v877 = vpack.c.b16 %v873, %v869
        %v878 = vpack.c.b16 %v874, %v870
        %v879 = vpack.c.b16 %v875, %v871
        %v880 = vpack.c.b16 %v876, %v872
        %v1397 = vunpack.c.l.b16 %v353
        %v1398 = vunpack.c.h.b16 %v353
        %v1399 = vunpack.c.l.b16 %v354
        %v1400 = vunpack.c.h.b16 %v354
        %v1401 = vunpack.c.l.b16 %v355
        %v1402 = vunpack.c.h.b16 %v355
        %v1403 = vunpack.c.l.b16 %v356
        %v1404 = vunpack.c.h.b16 %v356
        %v1405 = vunpack.c.l.b16 %v357
        %v1406 = vunpack.c.h.b16 %v357
        %v1407 = vunpack.c.l.b16 %v358
        %v1408 = vunpack.c.h.b16 %v358
        %v1409 = vunpack.c.l.b16 %v359
        %v1410 = vunpack.c.h.b16 %v359
        %v1411 = vunpack.c.l.b16 %v360
        %v1412 = vunpack.c.h.b16 %v360
        %v1413 = vunpack.c.l.b16 %v361
        %v1414 = vunpack.c.h.b16 %v361
        %v1415 = vunpack.c.l.b16 %v362
        %v1416 = vunpack.c.h.b16 %v362
        %v1417 = vunpack.c.l.b16 %v363
        %v1418 = vunpack.c.h.b16 %v363
        %v1419 = vunpack.c.l.b16 %v364
        %v1420 = vunpack.c.h.b16 %v364
        %v1421 = vunpack.c.l.b16 %v365
        %v1422 = vunpack.c.h.b16 %v365
        %v1423 = vunpack.c.l.b16 %v366
        %v1424 = vunpack.c.h.b16 %v366
        %v1425 = vunpack.c.l.b16 %v367
        %v1426 = vunpack.c.h.b16 %v367
        %v1427 = vunpack.c.l.b16 %v368
        %v1428 = vunpack.c.h.b16 %v368
        %v1429 = vunpack.c.l.b16 %v369
        %v1430 = vunpack.c.h.b16 %v369
        %v1431 = vunpack.c.l.b16 %v370
        %v1432 = vunpack.c.h.b16 %v370
        %v1433 = vunpack.c.l.b16 %v371
        %v1434 = vunpack.c.h.b16 %v371
        %v1435 = vunpack.c.l.b16 %v372
        %v1436 = vunpack.c.h.b16 %v372
        %v1437 = vunpack.c.l.b16 %v373
        %v1438 = vunpack.c.h.b16 %v373
        %v1439 = vunpack.c.l.b16 %v374
        %v1440 = vunpack.c.h.b16 %v374
        %v1441 = vunpack.c.l.b16 %v375
        %v1442 = vunpack.c.h.b16 %v375
        %v1443 = vunpack.c.l.b16 %v376
        %v1444 = vunpack.c.h.b16 %v376
        %v1445 = vunpack.c.l.b16 %v377
        %v1446 = vunpack.c.h.b16 %v377
        %v1447 = vunpack.c.l.b16 %v378
        %v1448 = vunpack.c.h.b16 %v378
        %v1449 = vunpack.c.l.b16 %v379
        %v1450 = vunpack.c.h.b16 %v379
        %v1451 = vunpack.c.l.b16 %v380
        %v1452 = vunpack.c.h.b16 %v380
        %v1453 = vunpack.c.l.b16 %v381
        %v1454 = vunpack.c.h.b16 %v381
        %v1455 = vunpack.c.l.b16 %v382
        %v1456 = vunpack.c.h.b16 %v382
        %v1457 = vunpack.c.l.b16 %v383
        %v1458 = vunpack.c.h.b16 %v383
        %v1459 = vunpack.c.l.b16 %v384
        %v1460 = vunpack.c.h.b16 %v384
        %v1461 = vunpack.c.l.b16 %v385
        %v1462 = vunpack.c.h.b16 %v385
        %v1463 = vunpack.c.l.b16 %v386
        %v1464 = vunpack.c.h.b16 %v386
        %v1465 = vunpack.c.l.b16 %v387
        %v1466 = vunpack.c.h.b16 %v387
        %v1467 = vunpack.c.l.b16 %v388
        %v1468 = vunpack.c.h.b16 %v388
        %v1469 = vunpack.c.l.b16 %v389
        %v1470 = vunpack.c.h.b16 %v389
        %v1471 = vunpack.c.l.b16 %v390
        %v1472 = vunpack.c.h.b16 %v390
        %v1473 = vunpack.c.l.b16 %v391
        %v1474 = vunpack.c.h.b16 %v391
        %v1475 = vunpack.c.l.b16 %v392
        %v1476 = vunpack.c.h.b16 %v392
        %v1477 = vunpack.c.l.b16 %v393
        %v1478 = vunpack.c.h.b16 %v393
        %v1479 = vunpack.c.l.b16 %v394
        %v1480 = vunpack.c.h.b16 %v394
        %v1481 = vunpack.c.l.b16 %v395
        %v1482 = vunpack.c.h.b16 %v395
        %v1483 = vunpack.c.l.b16 %v396
        %v1484 = vunpack.c.h.b16 %v396
        %v1485 = vunpack.c.l.b16 %v397
        %v1486 = vunpack.c.h.b16 %v397
        %v1487 = vunpack.c.l.b16 %v398
        %v1488 = vunpack.c.h.b16 %v398
        %v1489 = vunpack.c.l.b16 %v399
        %v1490 = vunpack.c.h.b16 %v399
        %v1491 = vunpack.c.l.b16 %v400
        %v1492 = vunpack.c.h.b16 %v400
        %v1493 = vunpack.c.l.b16 %v401
        %v1494 = vunpack.c.h.b16 %v401
        %v1495 = vunpack.c.l.b16 %v402
        %v1496 = vunpack.c.h.b16 %v402
        %v1497 = vunpack.c.l.b16 %v403
        %v1498 = vunpack.c.h.b16 %v403
        %v1499 = vunpack.c.l.b16 %v404
        %v1500 = vunpack.c.h.b16 %v404
        %v1501 = vunpack.c.l.b16 %v405
        %v1502 = vunpack.c.h.b16 %v405
        %v1503 = vunpack.c.l.b16 %v406
        %v1504 = vunpack.c.h.b16 %v406
        %v1505 = vunpack.c.l.b16 %v407
        %v1506 = vunpack.c.h.b16 %v407
        %v1507 = vunpack.c.l.b16 %v408
        %v1508 = vunpack.c.h.b16 %v408
        %v1509 = vunpack.c.l.b16 %v409
        %v1510 = vunpack.c.h.b16 %v409
        %v1511 = vunpack.c.l.b16 %v410
        %v1512 = vunpack.c.h.b16 %v410
        %v1513 = vunpack.c.l.b16 %v411
        %v1514 = vunpack.c.h.b16 %v411
        %v1515 = vunpack.c.l.b16 %v412
        %v1516 = vunpack.c.h.b16 %v412
        %v1517 = vunpack.c.l.b16 %v413
        %v1518 = vunpack.c.h.b16 %v413
        %v1519 = vunpack.c.l.b16 %v414
        %v1520 = vunpack.c.h.b16 %v414
        %v1521 = vunpack.c.l.b16 %v415
        %v1522 = vunpack.c.h.b16 %v415
        %v1523 = vunpack.c.l.b16 %v416
        %v1524 = vunpack.c.h.b16 %v416
        %v1525 = vunpack.c.l.b16 %v417
        %v1526 = vunpack.c.h.b16 %v417
        %v1527 = vunpack.c.l.b16 %v418
        %v1528 = vunpack.c.h.b16 %v418
        %v1529 = vunpack.c.l.b16 %v419
        %v1530 = vunpack.c.h.b16 %v419
        %v1531 = vunpack.c.l.b16 %v420
        %v1532 = vunpack.c.h.b16 %v420
        %v1533 = vunpack.c.l.b16 %v421
        %v1534 = vunpack.c.h.b16 %v421
        %v1535 = vunpack.c.l.b16 %v422
        %v1536 = vunpack.c.h.b16 %v422
        %v1537 = vunpack.c.l.b16 %v423
        %v1538 = vunpack.c.h.b16 %v423
        %v1539 = vunpack.c.l.b16 %v424
        %v1540 = vunpack.c.h.b16 %v424
        %v1541 = vunpack.c.l.b16 %v425
        %v1542 = vunpack.c.h.b16 %v425
        %v1543 = vunpack.c.l.b16 %v426
        %v1544 = vunpack.c.h.b16 %v426
        %v1545 = vunpack.c.l.b16 %v427
        %v1546 = vunpack.c.h.b16 %v427
        %v1547 = vunpack.c.l.b16 %v428
        %v1548 = vunpack.c.h.b16 %v428
        %v1549 = vunpack.c.l.b16 %v429
        %v1550 = vunpack.c.h.b16 %v429
        %v1551 = vunpack.c.l.b16 %v430
        %v1552 = vunpack.c.h.b16 %v430
        %v1553 = vunpack.c.l.b16 %v431
        %v1554 = vunpack.c.h.b16 %v431
        %v1555 = vunpack.c.l.b16 %v432
        %v1556 = vunpack.c.h.b16 %v432
        %v1557 = vunpack.c.l.b16 %v433
        %v1558 = vunpack.c.h.b16 %v433
        %v1559 = vunpack.c.l.b16 %v434
        %v1560 = vunpack.c.h.b16 %v434
        %v1561 = vunpack.c.l.b16 %v435
        %v1562 = vunpack.c.h.b16 %v435
        %v1563 = vunpack.c.l.b16 %v436
        %v1564 = vunpack.c.h.b16 %v436
        %v1565 = vunpack.c.l.b16 %v437
        %v1566 = vunpack.c.h.b16 %v437
        %v1567 = vunpack.c.l.b16 %v438
        %v1568 = vunpack.c.h.b16 %v438
        %v1569 = vunpack.c.l.b16 %v439
        %v1570 = vunpack.c.h.b16 %v439
        %v1571 = vunpack.c.l.b16 %v440
        %v1572 = vunpack.c.h.b16 %v440
        %v1573 = vunpack.c.l.b16 %v441
        %v1574 = vunpack.c.h.b16 %v441
        %v1575 = vunpack.c.l.b16 %v442
        %v1576 = vunpack.c.h.b16 %v442
        %v1577 = vunpack.c.l.b16 %v443
        %v1578 = vunpack.c.h.b16 %v443
        %v1579 = vunpack.c.l.b16 %v444
        %v1580 = vunpack.c.h.b16 %v444
        %v1581 = vunpack.c.l.b16 %v445
        %v1582 = vunpack.c.h.b16 %v445
        %v1583 = vunpack.c.l.b16 %v446
        %v1584 = vunpack.c.h.b16 %v446
        %v1585 = vunpack.c.l.b16 %v447
        %v1586 = vunpack.c.h.b16 %v447
        %v1587 = vunpack.c.l.b16 %v448
        %v1588 = vunpack.c.h.b16 %v448
        %v1589 = vunpack.c.l.b16 %v449
        %v1590 = vunpack.c.h.b16 %v449
        %v1591 = vunpack.c.l.b16 %v450
        %v1592 = vunpack.c.h.b16 %v450
        %v1593 = vunpack.c.l.b16 %v451
        %v1594 = vunpack.c.h.b16 %v451
        %v1595 = vunpack.c.l.b16 %v452
        %v1596 = vunpack.c.h.b16 %v452
        %v1597 = vunpack.c.l.b16 %v453
        %v1598 = vunpack.c.h.b16 %v453
        %v1599 = vunpack.c.l.b16 %v454
        %v1600 = vunpack.c.h.b16 %v454
        %v1601 = vunpack.c.l.b16 %v455
        %v1602 = vunpack.c.h.b16 %v455
        %v1603 = vunpack.c.l.b16 %v456
        %v1604 = vunpack.c.h.b16 %v456
        %v1605 = vunpack.c.l.b16 %v457
        %v1606 = vunpack.c.h.b16 %v457
        %v1607 = vunpack.c.l.b16 %v458
        %v1608 = vunpack.c.h.b16 %v458
        %v1609 = vunpack.c.l.b16 %v459
        %v1610 = vunpack.c.h.b16 %v459
        %v1611 = vunpack.c.l.b16 %v460
        %v1612 = vunpack.c.h.b16 %v460
        %v1613 = vunpack.c.l.b16 %v461
        %v1614 = vunpack.c.h.b16 %v461
        %v1615 = vunpack.c.l.b16 %v462
        %v1616 = vunpack.c.h.b16 %v462
        %v1617 = vunpack.c.l.b16 %v463
        %v1618 = vunpack.c.h.b16 %v463
        %v1619 = vunpack.c.l.b16 %v464
        %v1620 = vunpack.c.h.b16 %v464
        %v1621 = vunpack.c.l.b16 %v465
        %v1622 = vunpack.c.h.b16 %v465
        %v1623 = vunpack.c.l.b16 %v466
        %v1624 = vunpack.c.h.b16 %v466
        %v1625 = vunpack.c.l.b16 %v467
        %v1626 = vunpack.c.h.b16 %v467
        %v1627 = vunpack.c.l.b16 %v468
        %v1628 = vunpack.c.h.b16 %v468
        %v1629 = vunpack.c.l.b16 %v469
        %v1630 = vunpack.c.h.b16 %v469
        %v1631 = vunpack.c.l.b16 %v470
        %v1632 = vunpack.c.h.b16 %v470
        %v1633 = vunpack.c.l.b16 %v471
        %v1634 = vunpack.c.h.b16 %v471
        %v1635 = vunpack.c.l.b16 %v472
        %v1636 = vunpack.c.h.b16 %v472
        %v1637 = vunpack.c.l.b16 %v473
        %v1638 = vunpack.c.h.b16 %v473
        %v1639 = vunpack.c.l.b16 %v474
        %v1640 = vunpack.c.h.b16 %v474
        %v1641 = vunpack.c.l.b16 %v475
        %v1642 = vunpack.c.h.b16 %v475
        %v1643 = vunpack.c.l.b16 %v476
        %v1644 = vunpack.c.h.b16 %v476
        %v1645 = vunpack.c.l.b16 %v477
        %v1646 = vunpack.c.h.b16 %v477
        %v1647 = vunpack.c.l.b16 %v478
        %v1648 = vunpack.c.h.b16 %v478
        %v1649 = vunpack.c.l.b16 %v479
        %v1650 = vunpack.c.h.b16 %v479
        %v1651 = vunpack.c.l.b16 %v480
        %v1652 = vunpack.c.h.b16 %v480
        %v1653 = vunpack.c.l.b16 %v481
        %v1654 = vunpack.c.h.b16 %v481
        %v1655 = vunpack.c.l.b16 %v482
        %v1656 = vunpack.c.h.b16 %v482
        %v1657 = vunpack.c.l.b16 %v483
        %v1658 = vunpack.c.h.b16 %v483
        %v1659 = vunpack.c.l.b16 %v484
        %v1660 = vunpack.c.h.b16 %v484
        %v1661 = vunpack.c.l.b16 %v485
        %v1662 = vunpack.c.h.b16 %v485
        %v1663 = vunpack.c.l.b16 %v486
        %v1664 = vunpack.c.h.b16 %v486
        %v1665 = vunpack.c.l.b16 %v487
        %v1666 = vunpack.c.h.b16 %v487
        %v1667 = vunpack.c.l.b16 %v488
        %v1668 = vunpack.c.h.b16 %v488
        %v1669 = vunpack.c.l.b16 %v489
        %v1670 = vunpack.c.h.b16 %v489
        %v1671 = vunpack.c.l.b16 %v490
        %v1672 = vunpack.c.h.b16 %v490
        %v1673 = vunpack.c.l.b16 %v491
        %v1674 = vunpack.c.h.b16 %v491
        %v1675 = vunpack.c.l.b16 %v492
        %v1676 = vunpack.c.h.b16 %v492
        %v1677 = vunpack.c.l.b16 %v493
        %v1678 = vunpack.c.h.b16 %v493
        %v1679 = vunpack.c.l.b16 %v494
        %v1680 = vunpack.c.h.b16 %v494
        %v1681 = vunpack.c.l.b16 %v495
        %v1682 = vunpack.c.h.b16 %v495
        %v1683 = vunpack.c.l.b16 %v496
        %v1684 = vunpack.c.h.b16 %v496
        %v1685 = vunpack.c.l.b16 %v497
        %v1686 = vunpack.c.h.b16 %v497
        %v1687 = vunpack.c.l.b16 %v498
        %v1688 = vunpack.c.h.b16 %v498
        %v1689 = vunpack.c.l.b16 %v499
        %v1690 = vunpack.c.h.b16 %v499
        %v1691 = vunpack.c.l.b16 %v500
        %v1692 = vunpack.c.h.b16 %v500
        %v1693 = vunpack.c.l.b16 %v501
        %v1694 = vunpack.c.h.b16 %v501
        %v1695 = vunpack.c.l.b16 %v502
        %v1696 = vunpack.c.h.b16 %v502
        %v1697 = vunpack.c.l.b16 %v503
        %v1698 = vunpack.c.h.b16 %v503
        %v1699 = vunpack.c.l.b16 %v504
        %v1700 = vunpack.c.h.b16 %v504
        %v1701 = vunpack.c.l.b16 %v505
        %v1702 = vunpack.c.h.b16 %v505
        %v1703 = vunpack.c.l.b16 %v506
        %v1704 = vunpack.c.h.b16 %v506
        %v1705 = vunpack.c.l.b16 %v507
        %v1706 = vunpack.c.h.b16 %v507
        %v1707 = vunpack.c.l.b16 %v508
        %v1708 = vunpack.c.h.b16 %v508
        %v1709 = vunpack.c.l.b16 %v509
        %v1710 = vunpack.c.h.b16 %v509
        %v1711 = vunpack.c.l.b16 %v510
        %v1712 = vunpack.c.h.b16 %v510
        %v1713 = vunpack.c.l.b16 %v511
        %v1714 = vunpack.c.h.b16 %v511
        %v1715 = vunpack.c.l.b16 %v512
        %v1716 = vunpack.c.h.b16 %v512
        %v1717 = vunpack.c.l.b16 %v513
        %v1718 = vunpack.c.h.b16 %v513
        %v1719 = vunpack.c.l.b16 %v514
        %v1720 = vunpack.c.h.b16 %v514
        %v1721 = vunpack.c.l.b16 %v515
        %v1722 = vunpack.c.h.b16 %v515
        %v1723 = vunpack.c.l.b16 %v516
        %v1724 = vunpack.c.h.b16 %v516
        %v1725 = vunpack.c.l.b16 %v517
        %v1726 = vunpack.c.h.b16 %v517
        %v1727 = vunpack.c.l.b16 %v518
        %v1728 = vunpack.c.h.b16 %v518
        %v1729 = vunpack.c.l.b16 %v519
        %v1730 = vunpack.c.h.b16 %v519
        %v1731 = vunpack.c.l.b16 %v520
        %v1732 = vunpack.c.h.b16 %v520
        %v1733 = vunpack.c.l.b16 %v521
        %v1734 = vunpack.c.h.b16 %v521
        %v1735 = vunpack.c.l.b16 %v522
        %v1736 = vunpack.c.h.b16 %v522
        %v1737 = vunpack.c.l.b16 %v523
        %v1738 = vunpack.c.h.b16 %v523
        %v1739 = vunpack.c.l.b16 %v524
        %v1740 = vunpack.c.h.b16 %v524
        %v1741 = vunpack.c.l.b16 %v525
        %v1742 = vunpack.c.h.b16 %v525
        %v1743 = vunpack.c.l.b16 %v526
        %v1744 = vunpack.c.h.b16 %v526
        %v1745 = vunpack.c.l.b16 %v527
        %v1746 = vunpack.c.h.b16 %v527
        %v1747 = vunpack.c.l.b16 %v528
        %v1748 = vunpack.c.h.b16 %v528
        %v1749 = vunpack.c.l.b16 %v529
        %v1750 = vunpack.c.h.b16 %v529
        %v1751 = vunpack.c.l.b16 %v530
        %v1752 = vunpack.c.h.b16 %v530
        %v1753 = vunpack.c.l.b16 %v531
        %v1754 = vunpack.c.h.b16 %v531
        %v1755 = vunpack.c.l.b16 %v532
        %v1756 = vunpack.c.h.b16 %v532
        %v1757 = vunpack.c.l.b16 %v533
        %v1758 = vunpack.c.h.b16 %v533
        %v1759 = vunpack.c.l.b16 %v534
        %v1760 = vunpack.c.h.b16 %v534
        %v1761 = vunpack.c.l.b16 %v535
        %v1762 = vunpack.c.h.b16 %v535
        %v1763 = vunpack.c.l.b16 %v536
        %v1764 = vunpack.c.h.b16 %v536
        %v1765 = vunpack.c.l.b16 %v537
        %v1766 = vunpack.c.h.b16 %v537
        %v1767 = vunpack.c.l.b16 %v538
        %v1768 = vunpack.c.h.b16 %v538
        %v1769 = vunpack.c.l.b16 %v539
        %v1770 = vunpack.c.h.b16 %v539
        %v1771 = vunpack.c.l.b16 %v540
        %v1772 = vunpack.c.h.b16 %v540
        %v1773 = vunpack.c.l.b16 %v541
        %v1774 = vunpack.c.h.b16 %v541
        %v1775 = vunpack.c.l.b16 %v542
        %v1776 = vunpack.c.h.b16 %v542
        %v1777 = vunpack.c.l.b16 %v543
        %v1778 = vunpack.c.h.b16 %v543
        %v1779 = vunpack.c.l.b16 %v544
        %v1780 = vunpack.c.h.b16 %v544
        %v1781 = vunpack.c.l.b16 %v545
        %v1782 = vunpack.c.h.b16 %v545
        %v1783 = vunpack.c.l.b16 %v546
        %v1784 = vunpack.c.h.b16 %v546
        %v1785 = vunpack.c.l.b16 %v547
        %v1786 = vunpack.c.h.b16 %v547
        %v1787 = vunpack.c.l.b16 %v548
        %v1788 = vunpack.c.h.b16 %v548
        %v1789 = vunpack.c.l.b16 %v549
        %v1790 = vunpack.c.h.b16 %v549
        %v1791 = vunpack.c.l.b16 %v550
        %v1792 = vunpack.c.h.b16 %v550
        %v1793 = vunpack.c.l.b16 %v551
        %v1794 = vunpack.c.h.b16 %v551
        %v1795 = vunpack.c.l.b16 %v552
        %v1796 = vunpack.c.h.b16 %v552
        %v1797 = vunpack.c.l.b16 %v553
        %v1798 = vunpack.c.h.b16 %v553
        %v1799 = vunpack.c.l.b16 %v554
        %v1800 = vunpack.c.h.b16 %v554
        %v1801 = vunpack.c.l.b16 %v555
        %v1802 = vunpack.c.h.b16 %v555
        %v1803 = vunpack.c.l.b16 %v556
        %v1804 = vunpack.c.h.b16 %v556
        %v1805 = vunpack.c.l.b16 %v557
        %v1806 = vunpack.c.h.b16 %v557
        %v1807 = vunpack.c.l.b16 %v558
        %v1808 = vunpack.c.h.b16 %v558
        %v1809 = vunpack.c.l.b16 %v559
        %v1810 = vunpack.c.h.b16 %v559
        %v1811 = vunpack.c.l.b16 %v560
        %v1812 = vunpack.c.h.b16 %v560
        %v1813 = vunpack.c.l.b16 %v561
        %v1814 = vunpack.c.h.b16 %v561
        %v1815 = vunpack.c.l.b16 %v562
        %v1816 = vunpack.c.h.b16 %v562
        %v1817 = vunpack.c.l.b16 %v563
        %v1818 = vunpack.c.h.b16 %v563
        %v1819 = vunpack.c.l.b16 %v564
        %v1820 = vunpack.c.h.b16 %v564
        %v1821 = vunpack.c.l.b16 %v565
        %v1822 = vunpack.c.h.b16 %v565
        %v1823 = vunpack.c.l.b16 %v566
        %v1824 = vunpack.c.h.b16 %v566
        %v1825 = vunpack.c.l.b16 %v567
        %v1826 = vunpack.c.h.b16 %v567
        %v1827 = vunpack.c.l.b16 %v568
        %v1828 = vunpack.c.h.b16 %v568
        %v1829 = vunpack.c.l.b16 %v569
        %v1830 = vunpack.c.h.b16 %v569
        %v1831 = vunpack.c.l.b16 %v570
        %v1832 = vunpack.c.h.b16 %v570
        %v1833 = vunpack.c.l.b16 %v571
        %v1834 = vunpack.c.h.b16 %v571
        %v1835 = vunpack.c.l.b16 %v572
        %v1836 = vunpack.c.h.b16 %v572
        %v1837 = vunpack.c.l.b16 %v573
        %v1838 = vunpack.c.h.b16 %v573
        %v1839 = vunpack.c.l.b16 %v574
        %v1840 = vunpack.c.h.b16 %v574
        %v1841 = vunpack.c.l.b16 %v575
        %v1842 = vunpack.c.h.b16 %v575
        %v1843 = vunpack.c.l.b16 %v576
        %v1844 = vunpack.c.h.b16 %v576
        %v1845 = vunpack.c.l.b16 %v577
        %v1846 = vunpack.c.h.b16 %v577
        %v1847 = vunpack.c.l.b16 %v578
        %v1848 = vunpack.c.h.b16 %v578
        %v1849 = vunpack.c.l.b16 %v579
        %v1850 = vunpack.c.h.b16 %v579
        %v1851 = vunpack.c.l.b16 %v580
        %v1852 = vunpack.c.h.b16 %v580
        %v1853 = vunpack.c.l.b16 %v581
        %v1854 = vunpack.c.h.b16 %v581
        %v1855 = vunpack.c.l.b16 %v582
        %v1856 = vunpack.c.h.b16 %v582
        %v1857 = vunpack.c.l.b16 %v583
        %v1858 = vunpack.c.h.b16 %v583
        %v1859 = vunpack.c.l.b16 %v584
        %v1860 = vunpack.c.h.b16 %v584
        %v1861 = vunpack.c.l.b16 %v585
        %v1862 = vunpack.c.h.b16 %v585
        %v1863 = vunpack.c.l.b16 %v586
        %v1864 = vunpack.c.h.b16 %v586
        %v1865 = vunpack.c.l.b16 %v587
        %v1866 = vunpack.c.h.b16 %v587
        %v1867 = vunpack.c.l.b16 %v588
        %v1868 = vunpack.c.h.b16 %v588
        %v1869 = vunpack.c.l.b16 %v589
        %v1870 = vunpack.c.h.b16 %v589
        %v1871 = vunpack.c.l.b16 %v590
        %v1872 = vunpack.c.h.b16 %v590
        %v1873 = vunpack.c.l.b16 %v591
        %v1874 = vunpack.c.h.b16 %v591
        %v1875 = vunpack.c.l.b16 %v592
        %v1876 = vunpack.c.h.b16 %v592
        %v1877 = vunpack.c.l.b16 %v593
        %v1878 = vunpack.c.h.b16 %v593
        %v1879 = vunpack.c.l.b16 %v594
        %v1880 = vunpack.c.h.b16 %v594
        %v1881 = vunpack.c.l.b16 %v595
        %v1882 = vunpack.c.h.b16 %v595
        %v1883 = vunpack.c.l.b16 %v596
        %v1884 = vunpack.c.h.b16 %v596
        %v1885 = vunpack.c.l.b16 %v597
        %v1886 = vunpack.c.h.b16 %v597
        %v1887 = vunpack.c.l.b16 %v598
        %v1888 = vunpack.c.h.b16 %v598
        %v1889 = vunpack.c.l.b16 %v599
        %v1890 = vunpack.c.h.b16 %v599
        %v1891 = vunpack.c.l.b16 %v600
        %v1892 = vunpack.c.h.b16 %v600
        %v1893 = vunpack.c.l.b16 %v601
        %v1894 = vunpack.c.h.b16 %v601
        %v1895 = vunpack.c.l.b16 %v602
        %v1896 = vunpack.c.h.b16 %v602
        %v1897 = vunpack.c.l.b16 %v603
        %v1898 = vunpack.c.h.b16 %v603
        %v1899 = vunpack.c.l.b16 %v604
        %v1900 = vunpack.c.h.b16 %v604
        %v1901 = vunpack.c.l.b16 %v605
        %v1902 = vunpack.c.h.b16 %v605
        %v1903 = vunpack.c.l.b16 %v606
        %v1904 = vunpack.c.h.b16 %v606
        %v1905 = vunpack.c.l.b16 %v607
        %v1906 = vunpack.c.h.b16 %v607
        %v1907 = vunpack.c.l.b16 %v608
        %v1908 = vunpack.c.h.b16 %v608
        %v1909 = vunpack.c.l.b16 %v609
        %v1910 = vunpack.c.h.b16 %v609
        %v1911 = vunpack.c.l.b16 %v610
        %v1912 = vunpack.c.h.b16 %v610
        %v1913 = vunpack.c.l.b16 %v611
        %v1914 = vunpack.c.h.b16 %v611
        %v1915 = vunpack.c.l.b16 %v612
        %v1916 = vunpack.c.h.b16 %v612
        %v1917 = vunpack.c.l.b16 %v613
        %v1918 = vunpack.c.h.b16 %v613
        %v1919 = vunpack.c.l.b16 %v614
        %v1920 = vunpack.c.h.b16 %v614
        %v1921 = vunpack.c.l.b16 %v615
        %v1922 = vunpack.c.h.b16 %v615
        %v1923 = vunpack.c.l.b16 %v616
        %v1924 = vunpack.c.h.b16 %v616
        %v1925 = vunpack.c.l.b16 %v617
        %v1926 = vunpack.c.h.b16 %v617
        %v1927 = vunpack.c.l.b16 %v618
        %v1928 = vunpack.c.h.b16 %v618
        %v1929 = vunpack.c.l.b16 %v619
        %v1930 = vunpack.c.h.b16 %v619
        %v1931 = vunpack.c.l.b16 %v620
        %v1932 = vunpack.c.h.b16 %v620
        %v1933 = vunpack.c.l.b16 %v621
        %v1934 = vunpack.c.h.b16 %v621
        %v1935 = vunpack.c.l.b16 %v622
        %v1936 = vunpack.c.h.b16 %v622
        %v1937 = vunpack.c.l.b16 %v623
        %v1938 = vunpack.c.h.b16 %v623
        %v1939 = vunpack.c.l.b16 %v624
        %v1940 = vunpack.c.h.b16 %v624
        %v1941 = vunpack.c.l.b16 %v625
        %v1942 = vunpack.c.h.b16 %v625
        %v1943 = vunpack.c.l.b16 %v626
        %v1944 = vunpack.c.h.b16 %v626
        %v1945 = vunpack.c.l.b16 %v627
        %v1946 = vunpack.c.h.b16 %v627
        %v1947 = vunpack.c.l.b16 %v628
        %v1948 = vunpack.c.h.b16 %v628
        %v1949 = vunpack.c.l.b16 %v629
        %v1950 = vunpack.c.h.b16 %v629
        %v1951 = vunpack.c.l.b16 %v630
        %v1952 = vunpack.c.h.b16 %v630
        %v1953 = vunpack.c.l.b16 %v631
        %v1954 = vunpack.c.h.b16 %v631
        %v1955 = vunpack.c.l.b16 %v632
        %v1956 = vunpack.c.h.b16 %v632
        %v1957 = vunpack.c.l.b16 %v633
        %v1958 = vunpack.c.h.b16 %v633
        %v1959 = vunpack.c.l.b16 %v634
        %v1960 = vunpack.c.h.b16 %v634
        %v1961 = vunpack.c.l.b16 %v635
        %v1962 = vunpack.c.h.b16 %v635
        %v1963 = vunpack.c.l.b16 %v636
        %v1964 = vunpack.c.h.b16 %v636
        %v1965 = vunpack.c.l.b16 %v637
        %v1966 = vunpack.c.h.b16 %v637
        %v1967 = vunpack.c.l.b16 %v638
        %v1968 = vunpack.c.h.b16 %v638
        %v1969 = vunpack.c.l.b16 %v639
        %v1970 = vunpack.c.h.b16 %v639
        %v1971 = vunpack.c.l.b16 %v640
        %v1972 = vunpack.c.h.b16 %v640
        %v1973 = vunpack.c.l.b16 %v641
        %v1974 = vunpack.c.h.b16 %v641
        %v1975 = vunpack.c.l.b16 %v642
        %v1976 = vunpack.c.h.b16 %v642
        %v1977 = vunpack.c.l.b16 %v643
        %v1978 = vunpack.c.h.b16 %v643
        %v1979 = vunpack.c.l.b16 %v644
        %v1980 = vunpack.c.h.b16 %v644
        %v1981 = vunpack.c.l.b16 %v645
        %v1982 = vunpack.c.h.b16 %v645
        %v1983 = vunpack.c.l.b16 %v646
        %v1984 = vunpack.c.h.b16 %v646
        %v1985 = vunpack.c.l.b16 %v647
        %v1986 = vunpack.c.h.b16 %v647
        %v1987 = vunpack.c.l.b16 %v648
        %v1988 = vunpack.c.h.b16 %v648
        %v1989 = vunpack.c.l.b16 %v649
        %v1990 = vunpack.c.h.b16 %v649
        %v1991 = vunpack.c.l.b16 %v650
        %v1992 = vunpack.c.h.b16 %v650
        %v1993 = vunpack.c.l.b16 %v651
        %v1994 = vunpack.c.h.b16 %v651
        %v1995 = vunpack.c.l.b16 %v652
        %v1996 = vunpack.c.h.b16 %v652
        %v1997 = vunpack.c.l.b16 %v653
        %v1998 = vunpack.c.h.b16 %v653
        %v1999 = vunpack.c.l.b16 %v654
        %v2000 = vunpack.c.h.b16 %v654
        %v2001 = vunpack.c.l.b16 %v655
        %v2002 = vunpack.c.h.b16 %v655
        %v2003 = vunpack.c.l.b16 %v656
        %v2004 = vunpack.c.h.b16 %v656
        %v2005 = vunpack.c.l.b16 %v657
        %v2006 = vunpack.c.h.b16 %v657
        %v2007 = vunpack.c.l.b16 %v658
        %v2008 = vunpack.c.h.b16 %v658
        %v2009 = vunpack.c.l.b16 %v659
        %v2010 = vunpack.c.h.b16 %v659
        %v2011 = vunpack.c.l.b16 %v660
        %v2012 = vunpack.c.h.b16 %v660
        %v2013 = vunpack.c.l.b16 %v661
        %v2014 = vunpack.c.h.b16 %v661
        %v2015 = vunpack.c.l.b16 %v662
        %v2016 = vunpack.c.h.b16 %v662
        %v2017 = vunpack.c.l.b16 %v663
        %v2018 = vunpack.c.h.b16 %v663
        %v2019 = vunpack.c.l.b16 %v664
        %v2020 = vunpack.c.h.b16 %v664
        %v2021 = vunpack.c.l.b16 %v665
        %v2022 = vunpack.c.h.b16 %v665
        %v2023 = vunpack.c.l.b16 %v666
        %v2024 = vunpack.c.h.b16 %v666
        %v2025 = vunpack.c.l.b16 %v667
        %v2026 = vunpack.c.h.b16 %v667
        %v2027 = vunpack.c.l.b16 %v668
        %v2028 = vunpack.c.h.b16 %v668
        %v2029 = vunpack.c.l.b16 %v669
        %v2030 = vunpack.c.h.b16 %v669
        %v2031 = vunpack.c.l.b16 %v670
        %v2032 = vunpack.c.h.b16 %v670
        %v2033 = vunpack.c.l.b16 %v671
        %v2034 = vunpack.c.h.b16 %v671
        %v2035 = vunpack.c.l.b16 %v672
        %v2036 = vunpack.c.h.b16 %v672
        %v2037 = vunpack.c.l.b16 %v673
        %v2038 = vunpack.c.h.b16 %v673
        %v2039 = vunpack.c.l.b16 %v674
        %v2040 = vunpack.c.h.b16 %v674
        %v2041 = vunpack.c.l.b16 %v675
        %v2042 = vunpack.c.h.b16 %v675
        %v2043 = vunpack.c.l.b16 %v676
        %v2044 = vunpack.c.h.b16 %v676
        %v2045 = vunpack.c.l.b16 %v677
        %v2046 = vunpack.c.h.b16 %v677
        %v2047 = vunpack.c.l.b16 %v678
        %v2048 = vunpack.c.h.b16 %v678
        %v2049 = vunpack.c.l.b16 %v679
        %v2050 = vunpack.c.h.b16 %v679
        %v2051 = vunpack.c.l.b16 %v680
        %v2052 = vunpack.c.h.b16 %v680
        %v2053 = vunpack.c.l.b16 %v681
        %v2054 = vunpack.c.h.b16 %v681
        %v2055 = vunpack.c.l.b16 %v682
        %v2056 = vunpack.c.h.b16 %v682
        %v2057 = vunpack.c.l.b16 %v683
        %v2058 = vunpack.c.h.b16 %v683
        %v2059 = vunpack.c.l.b16 %v684
        %v2060 = vunpack.c.h.b16 %v684
        %v2061 = vunpack.c.l.b16 %v685
        %v2062 = vunpack.c.h.b16 %v685
        %v2063 = vunpack.c.l.b16 %v686
        %v2064 = vunpack.c.h.b16 %v686
        %v2065 = vunpack.c.l.b16 %v687
        %v2066 = vunpack.c.h.b16 %v687
        %v2067 = vunpack.c.l.b16 %v688
        %v2068 = vunpack.c.h.b16 %v688
        %v2069 = vunpack.c.l.b16 %v689
        %v2070 = vunpack.c.h.b16 %v689
        %v2071 = vunpack.c.l.b16 %v690
        %v2072 = vunpack.c.h.b16 %v690
        %v2073 = vunpack.c.l.b16 %v691
        %v2074 = vunpack.c.h.b16 %v691
        %v2075 = vunpack.c.l.b16 %v692
        %v2076 = vunpack.c.h.b16 %v692
        %v2077 = vunpack.c.l.b16 %v693
        %v2078 = vunpack.c.h.b16 %v693
        %v2079 = vunpack.c.l.b16 %v694
        %v2080 = vunpack.c.h.b16 %v694
        %v2081 = vunpack.c.l.b16 %v695
        %v2082 = vunpack.c.h.b16 %v695
        %v2083 = vunpack.c.l.b16 %v696
        %v2084 = vunpack.c.h.b16 %v696
        %v2085 = vunpack.c.l.b16 %v697
        %v2086 = vunpack.c.h.b16 %v697
        %v2087 = vunpack.c.l.b16 %v698
        %v2088 = vunpack.c.h.b16 %v698
        %v2089 = vunpack.c.l.b16 %v699
        %v2090 = vunpack.c.h.b16 %v699
        %v2091 = vunpack.c.l.b16 %v700
        %v2092 = vunpack.c.h.b16 %v700
        %v2093 = vunpack.c.l.b16 %v701
        %v2094 = vunpack.c.h.b16 %v701
        %v2095 = vunpack.c.l.b16 %v702
        %v2096 = vunpack.c.h.b16 %v702
        %v2097 = vunpack.c.l.b16 %v703
        %v2098 = vunpack.c.h.b16 %v703
        %v2099 = vunpack.c.l.b16 %v704
        %v2100 = vunpack.c.h.b16 %v704
        %v2101 = vunpack.c.l.b16 %v705
        %v2102 = vunpack.c.h.b16 %v705
        %v2103 = vunpack.c.l.b16 %v706
        %v2104 = vunpack.c.h.b16 %v706
        %v2105 = vunpack.c.l.b16 %v707
        %v2106 = vunpack.c.h.b16 %v707
        %v2107 = vunpack.c.l.b16 %v708
        %v2108 = vunpack.c.h.b16 %v708
        %v2109 = vunpack.c.l.b16 %v709
        %v2110 = vunpack.c.h.b16 %v709
        %v2111 = vunpack.c.l.b16 %v710
        %v2112 = vunpack.c.h.b16 %v710
        %v2113 = vunpack.c.l.b16 %v711
        %v2114 = vunpack.c.h.b16 %v711
        %v2115 = vunpack.c.l.b16 %v712
        %v2116 = vunpack.c.h.b16 %v712
        %v2117 = vunpack.c.l.b16 %v713
        %v2118 = vunpack.c.h.b16 %v713
        %v2119 = vunpack.c.l.b16 %v714
        %v2120 = vunpack.c.h.b16 %v714
        %v2121 = vunpack.c.l.b16 %v715
        %v2122 = vunpack.c.h.b16 %v715
        %v2123 = vunpack.c.l.b16 %v716
        %v2124 = vunpack.c.h.b16 %v716
        %v2125 = vunpack.c.l.b16 %v717
        %v2126 = vunpack.c.h.b16 %v717
        %v2127 = vunpack.c.l.b16 %v718
        %v2128 = vunpack.c.h.b16 %v718
        %v2129 = vunpack.c.l.b16 %v719
        %v2130 = vunpack.c.h.b16 %v719
        %v2131 = vunpack.c.l.b16 %v720
        %v2132 = vunpack.c.h.b16 %v720
        %v2133 = vunpack.c.l.b16 %v721
        %v2134 = vunpack.c.h.b16 %v721
        %v2135 = vunpack.c.l.b16 %v722
        %v2136 = vunpack.c.h.b16 %v722
        %v2137 = vunpack.c.l.b16 %v723
        %v2138 = vunpack.c.h.b16 %v723
        %v2139 = vunpack.c.l.b16 %v724
        %v2140 = vunpack.c.h.b16 %v724
        %v2141 = vunpack.c.l.b16 %v725
        %v2142 = vunpack.c.h.b16 %v725
        %v2143 = vunpack.c.l.b16 %v726
        %v2144 = vunpack.c.h.b16 %v726
        %v2145 = vunpack.c.l.b16 %v727
        %v2146 = vunpack.c.h.b16 %v727
        %v2147 = vunpack.c.l.b16 %v728
        %v2148 = vunpack.c.h.b16 %v728
        %v2149 = vunpack.c.l.b16 %v729
        %v2150 = vunpack.c.h.b16 %v729
        %v2151 = vunpack.c.l.b16 %v730
        %v2152 = vunpack.c.h.b16 %v730
        %v2153 = vunpack.c.l.b16 %v731
        %v2154 = vunpack.c.h.b16 %v731
        %v2155 = vunpack.c.l.b16 %v732
        %v2156 = vunpack.c.h.b16 %v732
        %v2157 = vunpack.c.l.b16 %v733
        %v2158 = vunpack.c.h.b16 %v733
        %v2159 = vunpack.c.l.b16 %v734
        %v2160 = vunpack.c.h.b16 %v734
        %v2161 = vunpack.c.l.b16 %v735
        %v2162 = vunpack.c.h.b16 %v735
        %v2163 = vunpack.c.l.b16 %v736
        %v2164 = vunpack.c.h.b16 %v736
        %v2165 = vunpack.c.l.b16 %v737
        %v2166 = vunpack.c.h.b16 %v737
        %v2167 = vunpack.c.l.b16 %v738
        %v2168 = vunpack.c.h.b16 %v738
        %v2169 = vunpack.c.l.b16 %v739
        %v2170 = vunpack.c.h.b16 %v739
        %v2171 = vunpack.c.l.b16 %v740
        %v2172 = vunpack.c.h.b16 %v740
        %v2173 = vunpack.c.l.b16 %v741
        %v2174 = vunpack.c.h.b16 %v741
        %v2175 = vunpack.c.l.b16 %v742
        %v2176 = vunpack.c.h.b16 %v742
        %v2177 = vunpack.c.l.b16 %v743
        %v2178 = vunpack.c.h.b16 %v743
        %v2179 = vunpack.c.l.b16 %v744
        %v2180 = vunpack.c.h.b16 %v744
        %v2181 = vunpack.c.l.b16 %v745
        %v2182 = vunpack.c.h.b16 %v745
        %v2183 = vunpack.c.l.b16 %v746
        %v2184 = vunpack.c.h.b16 %v746
        %v2185 = vunpack.c.l.b16 %v747
        %v2186 = vunpack.c.h.b16 %v747
        %v2187 = vunpack.c.l.b16 %v748
        %v2188 = vunpack.c.h.b16 %v748
        %v2189 = vunpack.c.l.b16 %v749
        %v2190 = vunpack.c.h.b16 %v749
        %v2191 = vunpack.c.l.b16 %v750
        %v2192 = vunpack.c.h.b16 %v750
        %v2193 = vunpack.c.l.b16 %v751
        %v2194 = vunpack.c.h.b16 %v751
        %v2195 = vunpack.c.l.b16 %v752
        %v2196 = vunpack.c.h.b16 %v752
        %v2197 = vunpack.c.l.b16 %v753
        %v2198 = vunpack.c.h.b16 %v753
        %v2199 = vunpack.c.l.b16 %v754
        %v2200 = vunpack.c.h.b16 %v754
        %v2201 = vunpack.c.l.b16 %v755
        %v2202 = vunpack.c.h.b16 %v755
        %v2203 = vunpack.c.l.b16 %v756
        %v2204 = vunpack.c.h.b16 %v756
        %v2205 = vunpack.c.l.b16 %v757
        %v2206 = vunpack.c.h.b16 %v757
        %v2207 = vunpack.c.l.b16 %v758
        %v2208 = vunpack.c.h.b16 %v758
        %v2209 = vunpack.c.l.b16 %v759
        %v2210 = vunpack.c.h.b16 %v759
        %v2211 = vunpack.c.l.b16 %v760
        %v2212 = vunpack.c.h.b16 %v760
        %v2213 = vunpack.c.l.b16 %v761
        %v2214 = vunpack.c.h.b16 %v761
        %v2215 = vunpack.c.l.b16 %v762
        %v2216 = vunpack.c.h.b16 %v762
        %v2217 = vunpack.c.l.b16 %v763
        %v2218 = vunpack.c.h.b16 %v763
        %v2219 = vunpack.c.l.b16 %v764
        %v2220 = vunpack.c.h.b16 %v764
        %v2221 = vunpack.c.l.b16 %v765
        %v2222 = vunpack.c.h.b16 %v765
        %v2223 = vunpack.c.l.b16 %v766
        %v2224 = vunpack.c.h.b16 %v766
        %v2225 = vunpack.c.l.b16 %v767
        %v2226 = vunpack.c.h.b16 %v767
        %v2227 = vunpack.c.l.b16 %v768
        %v2228 = vunpack.c.h.b16 %v768
        %v2229 = vunpack.c.l.b16 %v769
        %v2230 = vunpack.c.h.b16 %v769
        %v2231 = vunpack.c.l.b16 %v770
        %v2232 = vunpack.c.h.b16 %v770
        %v2233 = vunpack.c.l.b16 %v771
        %v2234 = vunpack.c.h.b16 %v771
        %v2235 = vunpack.c.l.b16 %v772
        %v2236 = vunpack.c.h.b16 %v772
        %v2237 = vunpack.c.l.b16 %v773
        %v2238 = vunpack.c.h.b16 %v773
        %v2239 = vunpack.c.l.b16 %v774
        %v2240 = vunpack.c.h.b16 %v774
        %v2241 = vunpack.c.l.b16 %v775
        %v2242 = vunpack.c.h.b16 %v775
        %v2243 = vunpack.c.l.b16 %v776
        %v2244 = vunpack.c.h.b16 %v776
        %v2245 = vunpack.c.l.b16 %v777
        %v2246 = vunpack.c.h.b16 %v777
        %v2247 = vunpack.c.l.b16 %v778
        %v2248 = vunpack.c.h.b16 %v778
        %v2249 = vunpack.c.l.b16 %v779
        %v2250 = vunpack.c.h.b16 %v779
        %v2251 = vunpack.c.l.b16 %v780
        %v2252 = vunpack.c.h.b16 %v780
        %v2253 = vunpack.c.l.b16 %v781
        %v2254 = vunpack.c.h.b16 %v781
        %v2255 = vunpack.c.l.b16 %v782
        %v2256 = vunpack.c.h.b16 %v782
        %v2257 = vunpack.c.l.b16 %v783
        %v2258 = vunpack.c.h.b16 %v783
        %v2259 = vunpack.c.l.b16 %v784
        %v2260 = vunpack.c.h.b16 %v784
        %v2261 = vunpack.c.l.b16 %v785
        %v2262 = vunpack.c.h.b16 %v785
        %v2263 = vunpack.c.l.b16 %v786
        %v2264 = vunpack.c.h.b16 %v786
        %v2265 = vunpack.c.l.b16 %v787
        %v2266 = vunpack.c.h.b16 %v787
        %v2267 = vunpack.c.l.b16 %v788
        %v2268 = vunpack.c.h.b16 %v788
        %v2269 = vunpack.c.l.b16 %v789
        %v2270 = vunpack.c.h.b16 %v789
        %v2271 = vunpack.c.l.b16 %v790
        %v2272 = vunpack.c.h.b16 %v790
        %v2273 = vunpack.c.l.b16 %v791
        %v2274 = vunpack.c.h.b16 %v791
        %v2275 = vunpack.c.l.b16 %v792
        %v2276 = vunpack.c.h.b16 %v792
        %v2277 = vunpack.c.l.b16 %v793
        %v2278 = vunpack.c.h.b16 %v793
        %v2279 = vunpack.c.l.b16 %v794
        %v2280 = vunpack.c.h.b16 %v794
        %v2281 = vunpack.c.l.b16 %v795
        %v2282 = vunpack.c.h.b16 %v795
        %v2283 = vunpack.c.l.b16 %v796
        %v2284 = vunpack.c.h.b16 %v796
        %v2285 = vunpack.c.l.b16 %v797
        %v2286 = vunpack.c.h.b16 %v797
        %v2287 = vunpack.c.l.b16 %v798
        %v2288 = vunpack.c.h.b16 %v798
        %v2289 = vunpack.c.l.b16 %v799
        %v2290 = vunpack.c.h.b16 %v799
        %v2291 = vunpack.c.l.b16 %v800
        %v2292 = vunpack.c.h.b16 %v800
        %v2293 = vunpack.c.l.b16 %v801
        %v2294 = vunpack.c.h.b16 %v801
        %v2295 = vunpack.c.l.b16 %v802
        %v2296 = vunpack.c.h.b16 %v802
        %v2297 = vunpack.c.l.b16 %v803
        %v2298 = vunpack.c.h.b16 %v803
        %v2299 = vunpack.c.l.b16 %v804
        %v2300 = vunpack.c.h.b16 %v804
        %v2301 = vunpack.c.l.b16 %v805
        %v2302 = vunpack.c.h.b16 %v805
        %v2303 = vunpack.c.l.b16 %v806
        %v2304 = vunpack.c.h.b16 %v806
        %v2305 = vunpack.c.l.b16 %v807
        %v2306 = vunpack.c.h.b16 %v807
        %v2307 = vunpack.c.l.b16 %v808
        %v2308 = vunpack.c.h.b16 %v808
        %v2309 = vunpack.c.l.b16 %v809
        %v2310 = vunpack.c.h.b16 %v809
        %v2311 = vunpack.c.l.b16 %v810
        %v2312 = vunpack.c.h.b16 %v810
        %v2313 = vunpack.c.l.b16 %v811
        %v2314 = vunpack.c.h.b16 %v811
        %v2315 = vunpack.c.l.b16 %v812
        %v2316 = vunpack.c.h.b16 %v812
        %v2317 = vunpack.c.l.b16 %v813
        %v2318 = vunpack.c.h.b16 %v813
        %v2319 = vunpack.c.l.b16 %v814
        %v2320 = vunpack.c.h.b16 %v814
        %v2321 = vunpack.c.l.b16 %v815
        %v2322 = vunpack.c.h.b16 %v815
        %v2323 = vunpack.c.l.b16 %v816
        %v2324 = vunpack.c.h.b16 %v816
        %v2325 = vunpack.c.l.b16 %v817
        %v2326 = vunpack.c.h.b16 %v817
        %v2327 = vunpack.c.l.b16 %v818
        %v2328 = vunpack.c.h.b16 %v818
        %v2329 = vunpack.c.l.b16 %v819
        %v2330 = vunpack.c.h.b16 %v819
        %v2331 = vunpack.c.l.b16 %v820
        %v2332 = vunpack.c.h.b16 %v820
        %v2333 = vunpack.c.l.b16 %v821
        %v2334 = vunpack.c.h.b16 %v821
        %v2335 = vunpack.c.l.b16 %v822
        %v2336 = vunpack.c.h.b16 %v822
        %v2337 = vunpack.c.l.b16 %v823
        %v2338 = vunpack.c.h.b16 %v823
        %v2339 = vunpack.c.l.b16 %v824
        %v2340 = vunpack.c.h.b16 %v824
        %v2341 = vunpack.c.l.b16 %v825
        %v2342 = vunpack.c.h.b16 %v825
        %v2343 = vunpack.c.l.b16 %v826
        %v2344 = vunpack.c.h.b16 %v826
        %v2345 = vunpack.c.l.b16 %v827
        %v2346 = vunpack.c.h.b16 %v827
        %v2347 = vunpack.c.l.b16 %v828
        %v2348 = vunpack.c.h.b16 %v828
        %v2349 = vunpack.c.l.b16 %v829
        %v2350 = vunpack.c.h.b16 %v829
        %v2351 = vunpack.c.l.b16 %v830
        %v2352 = vunpack.c.h.b16 %v830
        %v2353 = vunpack.c.l.b16 %v831
        %v2354 = vunpack.c.h.b16 %v831
        %v2355 = vunpack.c.l.b16 %v832
        %v2356 = vunpack.c.h.b16 %v832
        %v2357 = vunpack.c.l.b16 %v833
        %v2358 = vunpack.c.h.b16 %v833
        %v2359 = vunpack.c.l.b16 %v834
        %v2360 = vunpack.c.h.b16 %v834
        %v2361 = vunpack.c.l.b16 %v835
        %v2362 = vunpack.c.h.b16 %v835
        %v2363 = vunpack.c.l.b16 %v836
        %v2364 = vunpack.c.h.b16 %v836
        %v2365 = vunpack.c.l.b16 %v837
        %v2366 = vunpack.c.h.b16 %v837
        %v2367 = vunpack.c.l.b16 %v838
        %v2368 = vunpack.c.h.b16 %v838
        %v2369 = vunpack.c.l.b16 %v839
        %v2370 = vunpack.c.h.b16 %v839
        %v2371 = vunpack.c.l.b16 %v840
        %v2372 = vunpack.c.h.b16 %v840
        %v2373 = vunpack.c.l.b16 %v841
        %v2374 = vunpack.c.h.b16 %v841
        %v2375 = vunpack.c.l.b16 %v842
        %v2376 = vunpack.c.h.b16 %v842
        %v2377 = vunpack.c.l.b16 %v843
        %v2378 = vunpack.c.h.b16 %v843
        %v2379 = vunpack.c.l.b16 %v844
        %v2380 = vunpack.c.h.b16 %v844
        %v2381 = vunpack.c.l.b16 %v845
        %v2382 = vunpack.c.h.b16 %v845
        %v2383 = vunpack.c.l.b16 %v846
        %v2384 = vunpack.c.h.b16 %v846
        %v2385 = vunpack.c.l.b16 %v847
        %v2386 = vunpack.c.h.b16 %v847
        %v2387 = vunpack.c.l.b16 %v848
        %v2388 = vunpack.c.h.b16 %v848
        %v2389 = vunpack.c.l.b16 %v849
        %v2390 = vunpack.c.h.b16 %v849
        %v2391 = vunpack.c.l.b16 %v850
        %v2392 = vunpack.c.h.b16 %v850
        %v2393 = vunpack.c.l.b16 %v851
        %v2394 = vunpack.c.h.b16 %v851
        %v2395 = vunpack.c.l.b16 %v852
        %v2396 = vunpack.c.h.b16 %v852
        %v2397 = vunpack.c.l.b16 %v853
        %v2398 = vunpack.c.h.b16 %v853
        %v2399 = vunpack.c.l.b16 %v854
        %v2400 = vunpack.c.h.b16 %v854
        %v2401 = vunpack.c.l.b16 %v855
        %v2402 = vunpack.c.h.b16 %v855
        %v2403 = vunpack.c.l.b16 %v856
        %v2404 = vunpack.c.h.b16 %v856
        %v2405 = vunpack.c.l.b16 %v857
        %v2406 = vunpack.c.h.b16 %v857
        %v2407 = vunpack.c.l.b16 %v858
        %v2408 = vunpack.c.h.b16 %v858
        %v2409 = vunpack.c.l.b16 %v859
        %v2410 = vunpack.c.h.b16 %v859
        %v2411 = vunpack.c.l.b16 %v860
        %v2412 = vunpack.c.h.b16 %v860
        %v2413 = vunpack.c.l.b16 %v861
        %v2414 = vunpack.c.h.b16 %v861
        %v2415 = vunpack.c.l.b16 %v862
        %v2416 = vunpack.c.h.b16 %v862
        %v2417 = vunpack.c.l.b16 %v863
        %v2418 = vunpack.c.h.b16 %v863
        %v2419 = vunpack.c.l.b16 %v864
        %v2420 = vunpack.c.h.b16 %v864
        %v2421 = vpack.c.b16 %v1413, %v1397
        %v2422 = vpack.c.b16 %v1414, %v1398
        %v2423 = vpack.c.b16 %v1415, %v1399
        %v2424 = vpack.c.b16 %v1416, %v1400
        %v2425 = vpack.c.b16 %v1417, %v1401
        %v2426 = vpack.c.b16 %v1418, %v1402
        %v2427 = vpack.c.b16 %v1419, %v1403
        %v2428 = vpack.c.b16 %v1420, %v1404
        %v2429 = vpack.c.b16 %v1421, %v1405
        %v2430 = vpack.c.b16 %v1422, %v1406
        %v2431 = vpack.c.b16 %v1423, %v1407
        %v2432 = vpack.c.b16 %v1424, %v1408
        %v2433 = vpack.c.b16 %v1425, %v1409
        %v2434 = vpack.c.b16 %v1426, %v1410
        %v2435 = vpack.c.b16 %v1427, %v1411
        %v2436 = vpack.c.b16 %v1428, %v1412
        %v2437 = vpack.c.b16 %v1445, %v1429
        %v2438 = vpack.c.b16 %v1446, %v1430
        %v2439 = vpack.c.b16 %v1447, %v1431
        %v2440 = vpack.c.b16 %v1448, %v1432
        %v2441 = vpack.c.b16 %v1449, %v1433
        %v2442 = vpack.c.b16 %v1450, %v1434
        %v2443 = vpack.c.b16 %v1451, %v1435
        %v2444 = vpack.c.b16 %v1452, %v1436
        %v2445 = vpack.c.b16 %v1453, %v1437
        %v2446 = vpack.c.b16 %v1454, %v1438
        %v2447 = vpack.c.b16 %v1455, %v1439
        %v2448 = vpack.c.b16 %v1456, %v1440
        %v2449 = vpack.c.b16 %v1457, %v1441
        %v2450 = vpack.c.b16 %v1458, %v1442
        %v2451 = vpack.c.b16 %v1459, %v1443
        %v2452 = vpack.c.b16 %v1460, %v1444
        %v2453 = vpack.c.b16 %v1477, %v1461
        %v2454 = vpack.c.b16 %v1478, %v1462
        %v2455 = vpack.c.b16 %v1479, %v1463
        %v2456 = vpack.c.b16 %v1480, %v1464
        %v2457 = vpack.c.b16 %v1481, %v1465
        %v2458 = vpack.c.b16 %v1482, %v1466
        %v2459 = vpack.c.b16 %v1483, %v1467
        %v2460 = vpack.c.b16 %v1484, %v1468
        %v2461 = vpack.c.b16 %v1485, %v1469
        %v2462 = vpack.c.b16 %v1486, %v1470
        %v2463 = vpack.c.b16 %v1487, %v1471
        %v2464 = vpack.c.b16 %v1488, %v1472
        %v2465 = vpack.c.b16 %v1489, %v1473
        %v2466 = vpack.c.b16 %v1490, %v1474
        %v2467 = vpack.c.b16 %v1491, %v1475
        %v2468 = vpack.c.b16 %v1492, %v1476
        %v2469 = vpack.c.b16 %v1509, %v1493
        %v2470 = vpack.c.b16 %v1510, %v1494
        %v2471 = vpack.c.b16 %v1511, %v1495
        %v2472 = vpack.c.b16 %v1512, %v1496
        %v2473 = vpack.c.b16 %v1513, %v1497
        %v2474 = vpack.c.b16 %v1514, %v1498
        %v2475 = vpack.c.b16 %v1515, %v1499
        %v2476 = vpack.c.b16 %v1516, %v1500
        %v2477 = vpack.c.b16 %v1517, %v1501
        %v2478 = vpack.c.b16 %v1518, %v1502
        %v2479 = vpack.c.b16 %v1519, %v1503
        %v2480 = vpack.c.b16 %v1520, %v1504
        %v2481 = vpack.c.b16 %v1521, %v1505
        %v2482 = vpack.c.b16 %v1522, %v1506
        %v2483 = vpack.c.b16 %v1523, %v1507
        %v2484 = vpack.c.b16 %v1524, %v1508
        %v2485 = vpack.c.b16 %v1541, %v1525
        %v2486 = vpack.c.b16 %v1542, %v1526
        %v2487 = vpack.c.b16 %v1543, %v1527
        %v2488 = vpack.c.b16 %v1544, %v1528
        %v2489 = vpack.c.b16 %v1545, %v1529
        %v2490 = vpack.c.b16 %v1546, %v1530
        %v2491 = vpack.c.b16 %v1547, %v1531
        %v2492 = vpack.c.b16 %v1548, %v1532
        %v2493 = vpack.c.b16 %v1549, %v1533
        %v2494 = vpack.c.b16 %v1550, %v1534
        %v2495 = vpack.c.b16 %v1551, %v1535
        %v2496 = vpack.c.b16 %v1552, %v1536
        %v2497 = vpack.c.b16 %v1553, %v1537
        %v2498 = vpack.c.b16 %v1554, %v1538
        %v2499 = vpack.c.b16 %v1555, %v1539
        %v2500 = vpack.c.b16 %v1556, %v1540
        %v2501 = vpack.c.b16 %v1573, %v1557
        %v2502 = vpack.c.b16 %v1574, %v1558
        %v2503 = vpack.c.b16 %v1575, %v1559
        %v2504 = vpack.c.b16 %v1576, %v1560
        %v2505 = vpack.c.b16 %v1577, %v1561
        %v2506 = vpack.c.b16 %v1578, %v1562
        %v2507 = vpack.c.b16 %v1579, %v1563
        %v2508 = vpack.c.b16 %v1580, %v1564
        %v2509 = vpack.c.b16 %v1581, %v1565
        %v2510 = vpack.c.b16 %v1582, %v1566
        %v2511 = vpack.c.b16 %v1583, %v1567
        %v2512 = vpack.c.b16 %v1584, %v1568
        %v2513 = vpack.c.b16 %v1585, %v1569
        %v2514 = vpack.c.b16 %v1586, %v1570
        %v2515 = vpack.c.b16 %v1587, %v1571
        %v2516 = vpack.c.b16 %v1588, %v1572
        %v2517 = vpack.c.b16 %v1605, %v1589
        %v2518 = vpack.c.b16 %v1606, %v1590
        %v2519 = vpack.c.b16 %v1607, %v1591
        %v2520 = vpack.c.b16 %v1608, %v1592
        %v2521 = vpack.c.b16 %v1609, %v1593
        %v2522 = vpack.c.b16 %v1610, %v1594
        %v2523 = vpack.c.b16 %v1611, %v1595
        %v2524 = vpack.c.b16 %v1612, %v1596
        %v2525 = vpack.c.b16 %v1613, %v1597
        %v2526 = vpack.c.b16 %v1614, %v1598
        %v2527 = vpack.c.b16 %v1615, %v1599
        %v2528 = vpack.c.b16 %v1616, %v1600
        %v2529 = vpack.c.b16 %v1617, %v1601
        %v2530 = vpack.c.b16 %v1618, %v1602
        %v2531 = vpack.c.b16 %v1619, %v1603
        %v2532 = vpack.c.b16 %v1620, %v1604
        %v2533 = vpack.c.b16 %v1637, %v1621
        %v2534 = vpack.c.b16 %v1638, %v1622
        %v2535 = vpack.c.b16 %v1639, %v1623
        %v2536 = vpack.c.b16 %v1640, %v1624
        %v2537 = vpack.c.b16 %v1641, %v1625
        %v2538 = vpack.c.b16 %v1642, %v1626
        %v2539 = vpack.c.b16 %v1643, %v1627
        %v2540 = vpack.c.b16 %v1644, %v1628
        %v2541 = vpack.c.b16 %v1645, %v1629
        %v2542 = vpack.c.b16 %v1646, %v1630
        %v2543 = vpack.c.b16 %v1647, %v1631
        %v2544 = vpack.c.b16 %v1648, %v1632
        %v2545 = vpack.c.b16 %v1649, %v1633
        %v2546 = vpack.c.b16 %v1650, %v1634
        %v2547 = vpack.c.b16 %v1651, %v1635
        %v2548 = vpack.c.b16 %v1652, %v1636
        %v2549 = vpack.c.b16 %v1669, %v1653
        %v2550 = vpack.c.b16 %v1670, %v1654
        %v2551 = vpack.c.b16 %v1671, %v1655
        %v2552 = vpack.c.b16 %v1672, %v1656
        %v2553 = vpack.c.b16 %v1673, %v1657
        %v2554 = vpack.c.b16 %v1674, %v1658
        %v2555 = vpack.c.b16 %v1675, %v1659
        %v2556 = vpack.c.b16 %v1676, %v1660
        %v2557 = vpack.c.b16 %v1677, %v1661
        %v2558 = vpack.c.b16 %v1678, %v1662
        %v2559 = vpack.c.b16 %v1679, %v1663
        %v2560 = vpack.c.b16 %v1680, %v1664
        %v2561 = vpack.c.b16 %v1681, %v1665
        %v2562 = vpack.c.b16 %v1682, %v1666
        %v2563 = vpack.c.b16 %v1683, %v1667
        %v2564 = vpack.c.b16 %v1684, %v1668
        %v2565 = vpack.c.b16 %v1701, %v1685
        %v2566 = vpack.c.b16 %v1702, %v1686
        %v2567 = vpack.c.b16 %v1703, %v1687
        %v2568 = vpack.c.b16 %v1704, %v1688
        %v2569 = vpack.c.b16 %v1705, %v1689
        %v2570 = vpack.c.b16 %v1706, %v1690
        %v2571 = vpack.c.b16 %v1707, %v1691
        %v2572 = vpack.c.b16 %v1708, %v1692
        %v2573 = vpack.c.b16 %v1709, %v1693
        %v2574 = vpack.c.b16 %v1710, %v1694
        %v2575 = vpack.c.b16 %v1711, %v1695
        %v2576 = vpack.c.b16 %v1712, %v1696
        %v2577 = vpack.c.b16 %v1713, %v1697
        %v2578 = vpack.c.b16 %v1714, %v1698
        %v2579 = vpack.c.b16 %v1715, %v1699
        %v2580 = vpack.c.b16 %v1716, %v1700
        %v2581 = vpack.c.b16 %v1733, %v1717
        %v2582 = vpack.c.b16 %v1734, %v1718
        %v2583 = vpack.c.b16 %v1735, %v1719
        %v2584 = vpack.c.b16 %v1736, %v1720
        %v2585 = vpack.c.b16 %v1737, %v1721
        %v2586 = vpack.c.b16 %v1738, %v1722
        %v2587 = vpack.c.b16 %v1739, %v1723
        %v2588 = vpack.c.b16 %v1740, %v1724
        %v2589 = vpack.c.b16 %v1741, %v1725
        %v2590 = vpack.c.b16 %v1742, %v1726
        %v2591 = vpack.c.b16 %v1743, %v1727
        %v2592 = vpack.c.b16 %v1744, %v1728
        %v2593 = vpack.c.b16 %v1745, %v1729
        %v2594 = vpack.c.b16 %v1746, %v1730
        %v2595 = vpack.c.b16 %v1747, %v1731
        %v2596 = vpack.c.b16 %v1748, %v1732
        %v2597 = vpack.c.b16 %v1765, %v1749
        %v2598 = vpack.c.b16 %v1766, %v1750
        %v2599 = vpack.c.b16 %v1767, %v1751
        %v2600 = vpack.c.b16 %v1768, %v1752
        %v2601 = vpack.c.b16 %v1769, %v1753
        %v2602 = vpack.c.b16 %v1770, %v1754
        %v2603 = vpack.c.b16 %v1771, %v1755
        %v2604 = vpack.c.b16 %v1772, %v1756
        %v2605 = vpack.c.b16 %v1773, %v1757
        %v2606 = vpack.c.b16 %v1774, %v1758
        %v2607 = vpack.c.b16 %v1775, %v1759
        %v2608 = vpack.c.b16 %v1776, %v1760
        %v2609 = vpack.c.b16 %v1777, %v1761
        %v2610 = vpack.c.b16 %v1778, %v1762
        %v2611 = vpack.c.b16 %v1779, %v1763
        %v2612 = vpack.c.b16 %v1780, %v1764
        %v2613 = vpack.c.b16 %v1797, %v1781
        %v2614 = vpack.c.b16 %v1798, %v1782
        %v2615 = vpack.c.b16 %v1799, %v1783
        %v2616 = vpack.c.b16 %v1800, %v1784
        %v2617 = vpack.c.b16 %v1801, %v1785
        %v2618 = vpack.c.b16 %v1802, %v1786
        %v2619 = vpack.c.b16 %v1803, %v1787
        %v2620 = vpack.c.b16 %v1804, %v1788
        %v2621 = vpack.c.b16 %v1805, %v1789
        %v2622 = vpack.c.b16 %v1806, %v1790
        %v2623 = vpack.c.b16 %v1807, %v1791
        %v2624 = vpack.c.b16 %v1808, %v1792
        %v2625 = vpack.c.b16 %v1809, %v1793
        %v2626 = vpack.c.b16 %v1810, %v1794
        %v2627 = vpack.c.b16 %v1811, %v1795
        %v2628 = vpack.c.b16 %v1812, %v1796
        %v2629 = vpack.c.b16 %v1829, %v1813
        %v2630 = vpack.c.b16 %v1830, %v1814
        %v2631 = vpack.c.b16 %v1831, %v1815
        %v2632 = vpack.c.b16 %v1832, %v1816
        %v2633 = vpack.c.b16 %v1833, %v1817
        %v2634 = vpack.c.b16 %v1834, %v1818
        %v2635 = vpack.c.b16 %v1835, %v1819
        %v2636 = vpack.c.b16 %v1836, %v1820
        %v2637 = vpack.c.b16 %v1837, %v1821
        %v2638 = vpack.c.b16 %v1838, %v1822
        %v2639 = vpack.c.b16 %v1839, %v1823
        %v2640 = vpack.c.b16 %v1840, %v1824
        %v2641 = vpack.c.b16 %v1841, %v1825
        %v2642 = vpack.c.b16 %v1842, %v1826
        %v2643 = vpack.c.b16 %v1843, %v1827
        %v2644 = vpack.c.b16 %v1844, %v1828
        %v2645 = vpack.c.b16 %v1861, %v1845
        %v2646 = vpack.c.b16 %v1862, %v1846
        %v2647 = vpack.c.b16 %v1863, %v1847
        %v2648 = vpack.c.b16 %v1864, %v1848
        %v2649 = vpack.c.b16 %v1865, %v1849
        %v2650 = vpack.c.b16 %v1866, %v1850
        %v2651 = vpack.c.b16 %v1867, %v1851
        %v2652 = vpack.c.b16 %v1868, %v1852
        %v2653 = vpack.c.b16 %v1869, %v1853
        %v2654 = vpack.c.b16 %v1870, %v1854
        %v2655 = vpack.c.b16 %v1871, %v1855
        %v2656 = vpack.c.b16 %v1872, %v1856
        %v2657 = vpack.c.b16 %v1873, %v1857
        %v2658 = vpack.c.b16 %v1874, %v1858
        %v2659 = vpack.c.b16 %v1875, %v1859
        %v2660 = vpack.c.b16 %v1876, %v1860
        %v2661 = vpack.c.b16 %v1893, %v1877
        %v2662 = vpack.c.b16 %v1894, %v1878
        %v2663 = vpack.c.b16 %v1895, %v1879
        %v2664 = vpack.c.b16 %v1896, %v1880
        %v2665 = vpack.c.b16 %v1897, %v1881
        %v2666 = vpack.c.b16 %v1898, %v1882
        %v2667 = vpack.c.b16 %v1899, %v1883
        %v2668 = vpack.c.b16 %v1900, %v1884
        %v2669 = vpack.c.b16 %v1901, %v1885
        %v2670 = vpack.c.b16 %v1902, %v1886
        %v2671 = vpack.c.b16 %v1903, %v1887
        %v2672 = vpack.c.b16 %v1904, %v1888
        %v2673 = vpack.c.b16 %v1905, %v1889
        %v2674 = vpack.c.b16 %v1906, %v1890
        %v2675 = vpack.c.b16 %v1907, %v1891
        %v2676 = vpack.c.b16 %v1908, %v1892
        %v2677 = vpack.c.b16 %v1925, %v1909
        %v2678 = vpack.c.b16 %v1926, %v1910
        %v2679 = vpack.c.b16 %v1927, %v1911
        %v2680 = vpack.c.b16 %v1928, %v1912
        %v2681 = vpack.c.b16 %v1929, %v1913
        %v2682 = vpack.c.b16 %v1930, %v1914
        %v2683 = vpack.c.b16 %v1931, %v1915
        %v2684 = vpack.c.b16 %v1932, %v1916
        %v2685 = vpack.c.b16 %v1933, %v1917
        %v2686 = vpack.c.b16 %v1934, %v1918
        %v2687 = vpack.c.b16 %v1935, %v1919
        %v2688 = vpack.c.b16 %v1936, %v1920
        %v2689 = vpack.c.b16 %v1937, %v1921
        %v2690 = vpack.c.b16 %v1938, %v1922
        %v2691 = vpack.c.b16 %v1939, %v1923
        %v2692 = vpack.c.b16 %v1940, %v1924
        %v2693 = vpack.c.b16 %v1957, %v1941
        %v2694 = vpack.c.b16 %v1958, %v1942
        %v2695 = vpack.c.b16 %v1959, %v1943
        %v2696 = vpack.c.b16 %v1960, %v1944
        %v2697 = vpack.c.b16 %v1961, %v1945
        %v2698 = vpack.c.b16 %v1962, %v1946
        %v2699 = vpack.c.b16 %v1963, %v1947
        %v2700 = vpack.c.b16 %v1964, %v1948
        %v2701 = vpack.c.b16 %v1965, %v1949
        %v2702 = vpack.c.b16 %v1966, %v1950
        %v2703 = vpack.c.b16 %v1967, %v1951
        %v2704 = vpack.c.b16 %v1968, %v1952
        %v2705 = vpack.c.b16 %v1969, %v1953
        %v2706 = vpack.c.b16 %v1970, %v1954
        %v2707 = vpack.c.b16 %v1971, %v1955
        %v2708 = vpack.c.b16 %v1972, %v1956
        %v2709 = vpack.c.b16 %v1989, %v1973
        %v2710 = vpack.c.b16 %v1990, %v1974
        %v2711 = vpack.c.b16 %v1991, %v1975
        %v2712 = vpack.c.b16 %v1992, %v1976
        %v2713 = vpack.c.b16 %v1993, %v1977
        %v2714 = vpack.c.b16 %v1994, %v1978
        %v2715 = vpack.c.b16 %v1995, %v1979
        %v2716 = vpack.c.b16 %v1996, %v1980
        %v2717 = vpack.c.b16 %v1997, %v1981
        %v2718 = vpack.c.b16 %v1998, %v1982
        %v2719 = vpack.c.b16 %v1999, %v1983
        %v2720 = vpack.c.b16 %v2000, %v1984
        %v2721 = vpack.c.b16 %v2001, %v1985
        %v2722 = vpack.c.b16 %v2002, %v1986
        %v2723 = vpack.c.b16 %v2003, %v1987
        %v2724 = vpack.c.b16 %v2004, %v1988
        %v2725 = vpack.c.b16 %v2021, %v2005
        %v2726 = vpack.c.b16 %v2022, %v2006
        %v2727 = vpack.c.b16 %v2023, %v2007
        %v2728 = vpack.c.b16 %v2024, %v2008
        %v2729 = vpack.c.b16 %v2025, %v2009
        %v2730 = vpack.c.b16 %v2026, %v2010
        %v2731 = vpack.c.b16 %v2027, %v2011
        %v2732 = vpack.c.b16 %v2028, %v2012
        %v2733 = vpack.c.b16 %v2029, %v2013
        %v2734 = vpack.c.b16 %v2030, %v2014
        %v2735 = vpack.c.b16 %v2031, %v2015
        %v2736 = vpack.c.b16 %v2032, %v2016
        %v2737 = vpack.c.b16 %v2033, %v2017
        %v2738 = vpack.c.b16 %v2034, %v2018
        %v2739 = vpack.c.b16 %v2035, %v2019
        %v2740 = vpack.c.b16 %v2036, %v2020
        %v2741 = vpack.c.b16 %v2053, %v2037
        %v2742 = vpack.c.b16 %v2054, %v2038
        %v2743 = vpack.c.b16 %v2055, %v2039
        %v2744 = vpack.c.b16 %v2056, %v2040
        %v2745 = vpack.c.b16 %v2057, %v2041
        %v2746 = vpack.c.b16 %v2058, %v2042
        %v2747 = vpack.c.b16 %v2059, %v2043
        %v2748 = vpack.c.b16 %v2060, %v2044
        %v2749 = vpack.c.b16 %v2061, %v2045
        %v2750 = vpack.c.b16 %v2062, %v2046
        %v2751 = vpack.c.b16 %v2063, %v2047
        %v2752 = vpack.c.b16 %v2064, %v2048
        %v2753 = vpack.c.b16 %v2065, %v2049
        %v2754 = vpack.c.b16 %v2066, %v2050
        %v2755 = vpack.c.b16 %v2067, %v2051
        %v2756 = vpack.c.b16 %v2068, %v2052
        %v2757 = vpack.c.b16 %v2085, %v2069
        %v2758 = vpack.c.b16 %v2086, %v2070
        %v2759 = vpack.c.b16 %v2087, %v2071
        %v2760 = vpack.c.b16 %v2088, %v2072
        %v2761 = vpack.c.b16 %v2089, %v2073
        %v2762 = vpack.c.b16 %v2090, %v2074
        %v2763 = vpack.c.b16 %v2091, %v2075
        %v2764 = vpack.c.b16 %v2092, %v2076
        %v2765 = vpack.c.b16 %v2093, %v2077
        %v2766 = vpack.c.b16 %v2094, %v2078
        %v2767 = vpack.c.b16 %v2095, %v2079
        %v2768 = vpack.c.b16 %v2096, %v2080
        %v2769 = vpack.c.b16 %v2097, %v2081
        %v2770 = vpack.c.b16 %v2098, %v2082
        %v2771 = vpack.c.b16 %v2099, %v2083
        %v2772 = vpack.c.b16 %v2100, %v2084
        %v2773 = vpack.c.b16 %v2117, %v2101
        %v2774 = vpack.c.b16 %v2118, %v2102
        %v2775 = vpack.c.b16 %v2119, %v2103
        %v2776 = vpack.c.b16 %v2120, %v2104
        %v2777 = vpack.c.b16 %v2121, %v2105
        %v2778 = vpack.c.b16 %v2122, %v2106
        %v2779 = vpack.c.b16 %v2123, %v2107
        %v2780 = vpack.c.b16 %v2124, %v2108
        %v2781 = vpack.c.b16 %v2125, %v2109
        %v2782 = vpack.c.b16 %v2126, %v2110
        %v2783 = vpack.c.b16 %v2127, %v2111
        %v2784 = vpack.c.b16 %v2128, %v2112
        %v2785 = vpack.c.b16 %v2129, %v2113
        %v2786 = vpack.c.b16 %v2130, %v2114
        %v2787 = vpack.c.b16 %v2131, %v2115
        %v2788 = vpack.c.b16 %v2132, %v2116
        %v2789 = vpack.c.b16 %v2149, %v2133
        %v2790 = vpack.c.b16 %v2150, %v2134
        %v2791 = vpack.c.b16 %v2151, %v2135
        %v2792 = vpack.c.b16 %v2152, %v2136
        %v2793 = vpack.c.b16 %v2153, %v2137
        %v2794 = vpack.c.b16 %v2154, %v2138
        %v2795 = vpack.c.b16 %v2155, %v2139
        %v2796 = vpack.c.b16 %v2156, %v2140
        %v2797 = vpack.c.b16 %v2157, %v2141
        %v2798 = vpack.c.b16 %v2158, %v2142
        %v2799 = vpack.c.b16 %v2159, %v2143
        %v2800 = vpack.c.b16 %v2160, %v2144
        %v2801 = vpack.c.b16 %v2161, %v2145
        %v2802 = vpack.c.b16 %v2162, %v2146
        %v2803 = vpack.c.b16 %v2163, %v2147
        %v2804 = vpack.c.b16 %v2164, %v2148
        %v2805 = vpack.c.b16 %v2181, %v2165
        %v2806 = vpack.c.b16 %v2182, %v2166
        %v2807 = vpack.c.b16 %v2183, %v2167
        %v2808 = vpack.c.b16 %v2184, %v2168
        %v2809 = vpack.c.b16 %v2185, %v2169
        %v2810 = vpack.c.b16 %v2186, %v2170
        %v2811 = vpack.c.b16 %v2187, %v2171
        %v2812 = vpack.c.b16 %v2188, %v2172
        %v2813 = vpack.c.b16 %v2189, %v2173
        %v2814 = vpack.c.b16 %v2190, %v2174
        %v2815 = vpack.c.b16 %v2191, %v2175
        %v2816 = vpack.c.b16 %v2192, %v2176
        %v2817 = vpack.c.b16 %v2193, %v2177
        %v2818 = vpack.c.b16 %v2194, %v2178
        %v2819 = vpack.c.b16 %v2195, %v2179
        %v2820 = vpack.c.b16 %v2196, %v2180
        %v2821 = vpack.c.b16 %v2213, %v2197
        %v2822 = vpack.c.b16 %v2214, %v2198
        %v2823 = vpack.c.b16 %v2215, %v2199
        %v2824 = vpack.c.b16 %v2216, %v2200
        %v2825 = vpack.c.b16 %v2217, %v2201
        %v2826 = vpack.c.b16 %v2218, %v2202
        %v2827 = vpack.c.b16 %v2219, %v2203
        %v2828 = vpack.c.b16 %v2220, %v2204
        %v2829 = vpack.c.b16 %v2221, %v2205
        %v2830 = vpack.c.b16 %v2222, %v2206
        %v2831 = vpack.c.b16 %v2223, %v2207
        %v2832 = vpack.c.b16 %v2224, %v2208
        %v2833 = vpack.c.b16 %v2225, %v2209
        %v2834 = vpack.c.b16 %v2226, %v2210
        %v2835 = vpack.c.b16 %v2227, %v2211
        %v2836 = vpack.c.b16 %v2228, %v2212
        %v2837 = vpack.c.b16 %v2245, %v2229
        %v2838 = vpack.c.b16 %v2246, %v2230
        %v2839 = vpack.c.b16 %v2247, %v2231
        %v2840 = vpack.c.b16 %v2248, %v2232
        %v2841 = vpack.c.b16 %v2249, %v2233
        %v2842 = vpack.c.b16 %v2250, %v2234
        %v2843 = vpack.c.b16 %v2251, %v2235
        %v2844 = vpack.c.b16 %v2252, %v2236
        %v2845 = vpack.c.b16 %v2253, %v2237
        %v2846 = vpack.c.b16 %v2254, %v2238
        %v2847 = vpack.c.b16 %v2255, %v2239
        %v2848 = vpack.c.b16 %v2256, %v2240
        %v2849 = vpack.c.b16 %v2257, %v2241
        %v2850 = vpack.c.b16 %v2258, %v2242
        %v2851 = vpack.c.b16 %v2259, %v2243
        %v2852 = vpack.c.b16 %v2260, %v2244
        %v2853 = vpack.c.b16 %v2277, %v2261
        %v2854 = vpack.c.b16 %v2278, %v2262
        %v2855 = vpack.c.b16 %v2279, %v2263
        %v2856 = vpack.c.b16 %v2280, %v2264
        %v2857 = vpack.c.b16 %v2281, %v2265
        %v2858 = vpack.c.b16 %v2282, %v2266
        %v2859 = vpack.c.b16 %v2283, %v2267
        %v2860 = vpack.c.b16 %v2284, %v2268
        %v2861 = vpack.c.b16 %v2285, %v2269
        %v2862 = vpack.c.b16 %v2286, %v2270
        %v2863 = vpack.c.b16 %v2287, %v2271
        %v2864 = vpack.c.b16 %v2288, %v2272
        %v2865 = vpack.c.b16 %v2289, %v2273
        %v2866 = vpack.c.b16 %v2290, %v2274
        %v2867 = vpack.c.b16 %v2291, %v2275
        %v2868 = vpack.c.b16 %v2292, %v2276
        %v2869 = vpack.c.b16 %v2309, %v2293
        %v2870 = vpack.c.b16 %v2310, %v2294
        %v2871 = vpack.c.b16 %v2311, %v2295
        %v2872 = vpack.c.b16 %v2312, %v2296
        %v2873 = vpack.c.b16 %v2313, %v2297
        %v2874 = vpack.c.b16 %v2314, %v2298
        %v2875 = vpack.c.b16 %v2315, %v2299
        %v2876 = vpack.c.b16 %v2316, %v2300
        %v2877 = vpack.c.b16 %v2317, %v2301
        %v2878 = vpack.c.b16 %v2318, %v2302
        %v2879 = vpack.c.b16 %v2319, %v2303
        %v2880 = vpack.c.b16 %v2320, %v2304
        %v2881 = vpack.c.b16 %v2321, %v2305
        %v2882 = vpack.c.b16 %v2322, %v2306
        %v2883 = vpack.c.b16 %v2323, %v2307
        %v2884 = vpack.c.b16 %v2324, %v2308
        %v2885 = vpack.c.b16 %v2341, %v2325
        %v2886 = vpack.c.b16 %v2342, %v2326
        %v2887 = vpack.c.b16 %v2343, %v2327
        %v2888 = vpack.c.b16 %v2344, %v2328
        %v2889 = vpack.c.b16 %v2345, %v2329
        %v2890 = vpack.c.b16 %v2346, %v2330
        %v2891 = vpack.c.b16 %v2347, %v2331
        %v2892 = vpack.c.b16 %v2348, %v2332
        %v2893 = vpack.c.b16 %v2349, %v2333
        %v2894 = vpack.c.b16 %v2350, %v2334
        %v2895 = vpack.c.b16 %v2351, %v2335
        %v2896 = vpack.c.b16 %v2352, %v2336
        %v2897 = vpack.c.b16 %v2353, %v2337
        %v2898 = vpack.c.b16 %v2354, %v2338
        %v2899 = vpack.c.b16 %v2355, %v2339
        %v2900 = vpack.c.b16 %v2356, %v2340
        %v2901 = vpack.c.b16 %v2373, %v2357
        %v2902 = vpack.c.b16 %v2374, %v2358
        %v2903 = vpack.c.b16 %v2375, %v2359
        %v2904 = vpack.c.b16 %v2376, %v2360
        %v2905 = vpack.c.b16 %v2377, %v2361
        %v2906 = vpack.c.b16 %v2378, %v2362
        %v2907 = vpack.c.b16 %v2379, %v2363
        %v2908 = vpack.c.b16 %v2380, %v2364
        %v2909 = vpack.c.b16 %v2381, %v2365
        %v2910 = vpack.c.b16 %v2382, %v2366
        %v2911 = vpack.c.b16 %v2383, %v2367
        %v2912 = vpack.c.b16 %v2384, %v2368
        %v2913 = vpack.c.b16 %v2385, %v2369
        %v2914 = vpack.c.b16 %v2386, %v2370
        %v2915 = vpack.c.b16 %v2387, %v2371
        %v2916 = vpack.c.b16 %v2388, %v2372
        %v2917 = vpack.c.b16 %v2405, %v2389
        %v2918 = vpack.c.b16 %v2406, %v2390
        %v2919 = vpack.c.b16 %v2407, %v2391
        %v2920 = vpack.c.b16 %v2408, %v2392
        %v2921 = vpack.c.b16 %v2409, %v2393
        %v2922 = vpack.c.b16 %v2410, %v2394
        %v2923 = vpack.c.b16 %v2411, %v2395
        %v2924 = vpack.c.b16 %v2412, %v2396
        %v2925 = vpack.c.b16 %v2413, %v2397
        %v2926 = vpack.c.b16 %v2414, %v2398
        %v2927 = vpack.c.b16 %v2415, %v2399
        %v2928 = vpack.c.b16 %v2416, %v2400
        %v2929 = vpack.c.b16 %v2417, %v2401
        %v2930 = vpack.c.b16 %v2418, %v2402
        %v2931 = vpack.c.b16 %v2419, %v2403
        %v2932 = vpack.c.b16 %v2420, %v2404
        %3445 = vmatprep.subr.bf16.mxu0 %v2422
        %3446 = vmatpush1.bf16.msra.mxu0 %v2421
        %3447 = vmatprep.subr.bf16.mxu0 %v2438
        %3448 = vmatpush1.bf16.msra.mxu0 %v2437
        %3449 = vmatprep.subr.bf16.mxu0 %v2454
        %3450 = vmatpush1.bf16.msra.mxu0 %v2453
        %3451 = vmatprep.subr.bf16.mxu0 %v2470
        %3452 = vmatpush1.bf16.msra.mxu0 %v2469
        %3453 = vmatprep.subr.bf16.mxu0 %v2486
        %3454 = vmatpush1.bf16.msra.mxu0 %v2485
        %3455 = vmatprep.subr.bf16.mxu0 %v2502
        %3456 = vmatpush1.bf16.msra.mxu0 %v2501
        %3457 = vmatprep.subr.bf16.mxu0 %v2518
        %3458 = vmatpush1.bf16.msra.mxu0 %v2517
        %3459 = vmatprep.subr.bf16.mxu0 %v2534
        %3460 = vmatpush1.bf16.msra.mxu0 %v2533
        %3461 = vmatprep.subr.bf16.mxu0 %v2550
        %3462 = vmatpush1.bf16.msra.mxu0 %v2549
        %3463 = vmatprep.subr.bf16.mxu0 %v2566
        %3464 = vmatpush1.bf16.msra.mxu0 %v2565
        %3465 = vmatprep.subr.bf16.mxu0 %v2582
        %3466 = vmatpush1.bf16.msra.mxu0 %v2581
        %3467 = vmatprep.subr.bf16.mxu0 %v2598
        %3468 = vmatpush1.bf16.msra.mxu0 %v2597
        %3469 = vmatprep.subr.bf16.mxu0 %v2614
        %3470 = vmatpush1.bf16.msra.mxu0 %v2613
        %3471 = vmatprep.subr.bf16.mxu0 %v2630
        %3472 = vmatpush1.bf16.msra.mxu0 %v2629
        %3473 = vmatprep.subr.bf16.mxu0 %v2646
        %3474 = vmatpush1.bf16.msra.mxu0 %v2645
        %3475 = vmatprep.subr.bf16.mxu0 %v2662
        %3476 = vmatpush1.bf16.msra.mxu0 %v2661
        %3477 = vmatprep.mubr.bf16.mxu0 %v878
        %3478 = vmatmul.mubr.bf16.gmra.mrb[0].mxu0 %v877
        %v3479 = vpop.f32.mrb[0].mxu0
        %v3480 = vadd.f32 0.0, %v3479
        %v3481 = vpop.f32.mrb[0].mxu0
        %v3482 = vadd.f32 0.0, %v3481
        %v3483 = vpop.f32.mrb[0].mxu0
        %v3484 = vadd.f32 0.0, %v3483
        %v3485 = vpop.f32.mrb[0].mxu0
        %v3486 = vadd.f32 0.0, %v3485
        %3487 = vdwg.mxu0
        %3488 = vmatprep.subr.bf16.mxu0 %v2678
        %3489 = vmatpush1.bf16.msra.mxu0 %v2677
        %3490 = vmatprep.subr.bf16.mxu0 %v2694
        %3491 = vmatpush1.bf16.msra.mxu0 %v2693
        %3492 = vmatprep.subr.bf16.mxu0 %v2710
        %3493 = vmatpush1.bf16.msra.mxu0 %v2709
        %3494 = vmatprep.subr.bf16.mxu0 %v2726
        %3495 = vmatpush1.bf16.msra.mxu0 %v2725
        %3496 = vmatprep.subr.bf16.mxu0 %v2742
        %3497 = vmatpush1.bf16.msra.mxu0 %v2741
        %3498 = vmatprep.subr.bf16.mxu0 %v2758
        %3499 = vmatpush1.bf16.msra.mxu0 %v2757
        %3500 = vmatprep.subr.bf16.mxu0 %v2774
        %3501 = vmatpush1.bf16.msra.mxu0 %v2773
        %3502 = vmatprep.subr.bf16.mxu0 %v2790
        %3503 = vmatpush1.bf16.msra.mxu0 %v2789
        %3504 = vmatprep.subr.bf16.mxu0 %v2806
        %3505 = vmatpush1.bf16.msra.mxu0 %v2805
        %3506 = vmatprep.subr.bf16.mxu0 %v2822
        %3507 = vmatpush1.bf16.msra.mxu0 %v2821
        %3508 = vmatprep.subr.bf16.mxu0 %v2838
        %3509 = vmatpush1.bf16.msra.mxu0 %v2837
        %3510 = vmatprep.subr.bf16.mxu0 %v2854
        %3511 = vmatpush1.bf16.msra.mxu0 %v2853
        %3512 = vmatprep.subr.bf16.mxu0 %v2870
        %3513 = vmatpush1.bf16.msra.mxu0 %v2869
        %3514 = vmatprep.subr.bf16.mxu0 %v2886
        %3515 = vmatpush1.bf16.msra.mxu0 %v2885
        %3516 = vmatprep.subr.bf16.mxu0 %v2902
        %3517 = vmatpush1.bf16.msra.mxu0 %v2901
        %3518 = vmatprep.subr.bf16.mxu0 %v2918
        %3519 = vmatpush1.bf16.msra.mxu0 %v2917
        %3520 = vmatprep.mubr.bf16.mxu0 %v880
        %3521 = vmatmul.mubr.bf16.gmra.mrb[0].mxu0 %v879
        %v3522 = vpop.f32.mrb[0].mxu0
        %v3523 = vadd.f32 %v3480, %v3522
        %v3524 = vpop.f32.mrb[0].mxu0
        %v3525 = vadd.f32 %v3482, %v3524
        %v3526 = vpop.f32.mrb[0].mxu0
        %v3527 = vadd.f32 %v3484, %v3526
        %v3528 = vpop.f32.mrb[0].mxu0
        %v3529 = vadd.f32 %v3486, %v3528
        %3530 = vdwg.mxu0
        %3531 = vmatprep.subr.bf16.mxu0 %v2424
        %3532 = vmatpush1.bf16.msra.mxu0 %v2423
        %3533 = vmatprep.subr.bf16.mxu0 %v2440
        %3534 = vmatpush1.bf16.msra.mxu0 %v2439
        %3535 = vmatprep.subr.bf16.mxu0 %v2456
        %3536 = vmatpush1.bf16.msra.mxu0 %v2455
        %3537 = vmatprep.subr.bf16.mxu0 %v2472
        %3538 = vmatpush1.bf16.msra.mxu0 %v2471
        %3539 = vmatprep.subr.bf16.mxu0 %v2488
        %3540 = vmatpush1.bf16.msra.mxu0 %v2487
        %3541 = vmatprep.subr.bf16.mxu0 %v2504
        %3542 = vmatpush1.bf16.msra.mxu0 %v2503
        %3543 = vmatprep.subr.bf16.mxu0 %v2520
        %3544 = vmatpush1.bf16.msra.mxu0 %v2519
        %3545 = vmatprep.subr.bf16.mxu0 %v2536
        %3546 = vmatpush1.bf16.msra.mxu0 %v2535
        %3547 = vmatprep.subr.bf16.mxu0 %v2552
        %3548 = vmatpush1.bf16.msra.mxu0 %v2551
        %3549 = vmatprep.subr.bf16.mxu0 %v2568
        %3550 = vmatpush1.bf16.msra.mxu0 %v2567
        %3551 = vmatprep.subr.bf16.mxu0 %v2584
        %3552 = vmatpush1.bf16.msra.mxu0 %v2583
        %3553 = vmatprep.subr.bf16.mxu0 %v2600
        %3554 = vmatpush1.bf16.msra.mxu0 %v2599
        %3555 = vmatprep.subr.bf16.mxu0 %v2616
        %3556 = vmatpush1.bf16.msra.mxu0 %v2615
        %3557 = vmatprep.subr.bf16.mxu0 %v2632
        %3558 = vmatpush1.bf16.msra.mxu0 %v2631
        %3559 = vmatprep.subr.bf16.mxu0 %v2648
        %3560 = vmatpush1.bf16.msra.mxu0 %v2647
        %3561 = vmatprep.subr.bf16.mxu0 %v2664
        %3562 = vmatpush1.bf16.msra.mxu0 %v2663
        %3563 = vmatprep.mubr.bf16.mxu0 %v878
        %3564 = vmatmul.mubr.bf16.gmra.mrb[0].mxu0 %v877
        %v3565 = vpop.f32.mrb[0].mxu0
        %v3566 = vadd.f32 0.0, %v3565
        %v3567 = vpop.f32.mrb[0].mxu0
        %v3568 = vadd.f32 0.0, %v3567
        %v3569 = vpop.f32.mrb[0].mxu0
        %v3570 = vadd.f32 0.0, %v3569
        %v3571 = vpop.f32.mrb[0].mxu0
        %v3572 = vadd.f32 0.0, %v3571
        %3573 = vdwg.mxu0
        %3574 = vmatprep.subr.bf16.mxu0 %v2680
        %3575 = vmatpush1.bf16.msra.mxu0 %v2679
        %3576 = vmatprep.subr.bf16.mxu0 %v2696
        %3577 = vmatpush1.bf16.msra.mxu0 %v2695
        %3578 = vmatprep.subr.bf16.mxu0 %v2712
        %3579 = vmatpush1.bf16.msra.mxu0 %v2711
        %3580 = vmatprep.subr.bf16.mxu0 %v2728
        %3581 = vmatpush1.bf16.msra.mxu0 %v2727
        %3582 = vmatprep.subr.bf16.mxu0 %v2744
        %3583 = vmatpush1.bf16.msra.mxu0 %v2743
        %3584 = vmatprep.subr.bf16.mxu0 %v2760
        %3585 = vmatpush1.bf16.msra.mxu0 %v2759
        %3586 = vmatprep.subr.bf16.mxu0 %v2776
        %3587 = vmatpush1.bf16.msra.mxu0 %v2775
        %3588 = vmatprep.subr.bf16.mxu0 %v2792
        %3589 = vmatpush1.bf16.msra.mxu0 %v2791
        %3590 = vmatprep.subr.bf16.mxu0 %v2808
        %3591 = vmatpush1.bf16.msra.mxu0 %v2807
        %3592 = vmatprep.subr.bf16.mxu0 %v2824
        %3593 = vmatpush1.bf16.msra.mxu0 %v2823
        %3594 = vmatprep.subr.bf16.mxu0 %v2840
        %3595 = vmatpush1.bf16.msra.mxu0 %v2839
        %3596 = vmatprep.subr.bf16.mxu0 %v2856
        %3597 = vmatpush1.bf16.msra.mxu0 %v2855
        %3598 = vmatprep.subr.bf16.mxu0 %v2872
        %3599 = vmatpush1.bf16.msra.mxu0 %v2871
        %3600 = vmatprep.subr.bf16.mxu0 %v2888
        %3601 = vmatpush1.bf16.msra.mxu0 %v2887
        %3602 = vmatprep.subr.bf16.mxu0 %v2904
        %3603 = vmatpush1.bf16.msra.mxu0 %v2903
        %3604 = vmatprep.subr.bf16.mxu0 %v2920
        %3605 = vmatpush1.bf16.msra.mxu0 %v2919
        %3606 = vmatprep.mubr.bf16.mxu0 %v880
        %3607 = vmatmul.mubr.bf16.gmra.mrb[0].mxu0 %v879
        %v3608 = vpop.f32.mrb[0].mxu0
        %v3609 = vadd.f32 %v3566, %v3608
        %v3610 = vpop.f32.mrb[0].mxu0
        %v3611 = vadd.f32 %v3568, %v3610
        %v3612 = vpop.f32.mrb[0].mxu0
        %v3613 = vadd.f32 %v3570, %v3612
        %v3614 = vpop.f32.mrb[0].mxu0
        %v3615 = vadd.f32 %v3572, %v3614
        %3616 = vdwg.mxu0
        %3617 = vmatprep.subr.bf16.mxu0 %v2426
        %3618 = vmatpush1.bf16.msra.mxu0 %v2425
        %3619 = vmatprep.subr.bf16.mxu0 %v2442
        %3620 = vmatpush1.bf16.msra.mxu0 %v2441
        %3621 = vmatprep.subr.bf16.mxu0 %v2458
        %3622 = vmatpush1.bf16.msra.mxu0 %v2457
        %3623 = vmatprep.subr.bf16.mxu0 %v2474
        %3624 = vmatpush1.bf16.msra.mxu0 %v2473
        %3625 = vmatprep.subr.bf16.mxu0 %v2490
        %3626 = vmatpush1.bf16.msra.mxu0 %v2489
        %3627 = vmatprep.subr.bf16.mxu0 %v2506
        %3628 = vmatpush1.bf16.msra.mxu0 %v2505
        %3629 = vmatprep.subr.bf16.mxu0 %v2522
        %3630 = vmatpush1.bf16.msra.mxu0 %v2521
        %3631 = vmatprep.subr.bf16.mxu0 %v2538
        %3632 = vmatpush1.bf16.msra.mxu0 %v2537
        %3633 = vmatprep.subr.bf16.mxu0 %v2554
        %3634 = vmatpush1.bf16.msra.mxu0 %v2553
        %3635 = vmatprep.subr.bf16.mxu0 %v2570
        %3636 = vmatpush1.bf16.msra.mxu0 %v2569
        %3637 = vmatprep.subr.bf16.mxu0 %v2586
        %3638 = vmatpush1.bf16.msra.mxu0 %v2585
        %3639 = vmatprep.subr.bf16.mxu0 %v2602
        %3640 = vmatpush1.bf16.msra.mxu0 %v2601
        %3641 = vmatprep.subr.bf16.mxu0 %v2618
        %3642 = vmatpush1.bf16.msra.mxu0 %v2617
        %3643 = vmatprep.subr.bf16.mxu0 %v2634
        %3644 = vmatpush1.bf16.msra.mxu0 %v2633
        %3645 = vmatprep.subr.bf16.mxu0 %v2650
        %3646 = vmatpush1.bf16.msra.mxu0 %v2649
        %3647 = vmatprep.subr.bf16.mxu0 %v2666
        %3648 = vmatpush1.bf16.msra.mxu0 %v2665
        %3649 = vmatprep.mubr.bf16.mxu0 %v878
        %3650 = vmatmul.mubr.bf16.gmra.mrb[0].mxu0 %v877
        %v3651 = vpop.f32.mrb[0].mxu0
        %v3652 = vadd.f32 0.0, %v3651
        %v3653 = vpop.f32.mrb[0].mxu0
        %v3654 = vadd.f32 0.0, %v3653
        %v3655 = vpop.f32.mrb[0].mxu0
        %v3656 = vadd.f32 0.0, %v3655
        %v3657 = vpop.f32.mrb[0].mxu0
        %v3658 = vadd.f32 0.0, %v3657
        %3659 = vdwg.mxu0
        %3660 = vmatprep.subr.bf16.mxu0 %v2682
        %3661 = vmatpush1.bf16.msra.mxu0 %v2681
        %3662 = vmatprep.subr.bf16.mxu0 %v2698
        %3663 = vmatpush1.bf16.msra.mxu0 %v2697
        %3664 = vmatprep.subr.bf16.mxu0 %v2714
        %3665 = vmatpush1.bf16.msra.mxu0 %v2713
        %3666 = vmatprep.subr.bf16.mxu0 %v2730
        %3667 = vmatpush1.bf16.msra.mxu0 %v2729
        %3668 = vmatprep.subr.bf16.mxu0 %v2746
        %3669 = vmatpush1.bf16.msra.mxu0 %v2745
        %3670 = vmatprep.subr.bf16.mxu0 %v2762
        %3671 = vmatpush1.bf16.msra.mxu0 %v2761
        %3672 = vmatprep.subr.bf16.mxu0 %v2778
        %3673 = vmatpush1.bf16.msra.mxu0 %v2777
        %3674 = vmatprep.subr.bf16.mxu0 %v2794
        %3675 = vmatpush1.bf16.msra.mxu0 %v2793
        %3676 = vmatprep.subr.bf16.mxu0 %v2810
        %3677 = vmatpush1.bf16.msra.mxu0 %v2809
        %3678 = vmatprep.subr.bf16.mxu0 %v2826
        %3679 = vmatpush1.bf16.msra.mxu0 %v2825
        %3680 = vmatprep.subr.bf16.mxu0 %v2842
        %3681 = vmatpush1.bf16.msra.mxu0 %v2841
        %3682 = vmatprep.subr.bf16.mxu0 %v2858
        %3683 = vmatpush1.bf16.msra.mxu0 %v2857
        %3684 = vmatprep.subr.bf16.mxu0 %v2874
        %3685 = vmatpush1.bf16.msra.mxu0 %v2873
        %3686 = vmatprep.subr.bf16.mxu0 %v2890
        %3687 = vmatpush1.bf16.msra.mxu0 %v2889
        %3688 = vmatprep.subr.bf16.mxu0 %v2906
        %3689 = vmatpush1.bf16.msra.mxu0 %v2905
        %3690 = vmatprep.subr.bf16.mxu0 %v2922
        %3691 = vmatpush1.bf16.msra.mxu0 %v2921
        %3692 = vmatprep.mubr.bf16.mxu0 %v880
        %3693 = vmatmul.mubr.bf16.gmra.mrb[0].mxu0 %v879
        %v3694 = vpop.f32.mrb[0].mxu0
        %v3695 = vadd.f32 %v3652, %v3694
        %v3696 = vpop.f32.mrb[0].mxu0
        %v3697 = vadd.f32 %v3654, %v3696
        %v3698 = vpop.f32.mrb[0].mxu0
        %v3699 = vadd.f32 %v3656, %v3698
        %v3700 = vpop.f32.mrb[0].mxu0
        %v3701 = vadd.f32 %v3658, %v3700
        %3702 = vdwg.mxu0
        %3703 = vmatprep.subr.bf16.mxu0 %v2428
        %3704 = vmatpush1.bf16.msra.mxu0 %v2427
        %3705 = vmatprep.subr.bf16.mxu0 %v2444
        %3706 = vmatpush1.bf16.msra.mxu0 %v2443
        %3707 = vmatprep.subr.bf16.mxu0 %v2460
        %3708 = vmatpush1.bf16.msra.mxu0 %v2459
        %3709 = vmatprep.subr.bf16.mxu0 %v2476
        %3710 = vmatpush1.bf16.msra.mxu0 %v2475
        %3711 = vmatprep.subr.bf16.mxu0 %v2492
        %3712 = vmatpush1.bf16.msra.mxu0 %v2491
        %3713 = vmatprep.subr.bf16.mxu0 %v2508
        %3714 = vmatpush1.bf16.msra.mxu0 %v2507
        %3715 = vmatprep.subr.bf16.mxu0 %v2524
        %3716 = vmatpush1.bf16.msra.mxu0 %v2523
        %3717 = vmatprep.subr.bf16.mxu0 %v2540
        %3718 = vmatpush1.bf16.msra.mxu0 %v2539
        %3719 = vmatprep.subr.bf16.mxu0 %v2556
        %3720 = vmatpush1.bf16.msra.mxu0 %v2555
        %3721 = vmatprep.subr.bf16.mxu0 %v2572
        %3722 = vmatpush1.bf16.msra.mxu0 %v2571
        %3723 = vmatprep.subr.bf16.mxu0 %v2588
        %3724 = vmatpush1.bf16.msra.mxu0 %v2587
        %3725 = vmatprep.subr.bf16.mxu0 %v2604
        %3726 = vmatpush1.bf16.msra.mxu0 %v2603
        %3727 = vmatprep.subr.bf16.mxu0 %v2620
        %3728 = vmatpush1.bf16.msra.mxu0 %v2619
        %3729 = vmatprep.subr.bf16.mxu0 %v2636
        %3730 = vmatpush1.bf16.msra.mxu0 %v2635
        %3731 = vmatprep.subr.bf16.mxu0 %v2652
        %3732 = vmatpush1.bf16.msra.mxu0 %v2651
        %3733 = vmatprep.subr.bf16.mxu0 %v2668
        %3734 = vmatpush1.bf16.msra.mxu0 %v2667
        %3735 = vmatprep.mubr.bf16.mxu0 %v878
        %3736 = vmatmul.mubr.bf16.gmra.mrb[0].mxu0 %v877
        %v3737 = vpop.f32.mrb[0].mxu0
        %v3738 = vadd.f32 0.0, %v3737
        %v3739 = vpop.f32.mrb[0].mxu0
        %v3740 = vadd.f32 0.0, %v3739
        %v3741 = vpop.f32.mrb[0].mxu0
        %v3742 = vadd.f32 0.0, %v3741
        %v3743 = vpop.f32.mrb[0].mxu0
        %v3744 = vadd.f32 0.0, %v3743
        %3745 = vdwg.mxu0
        %3746 = vmatprep.subr.bf16.mxu0 %v2684
        %3747 = vmatpush1.bf16.msra.mxu0 %v2683
        %3748 = vmatprep.subr.bf16.mxu0 %v2700
        %3749 = vmatpush1.bf16.msra.mxu0 %v2699
        %3750 = vmatprep.subr.bf16.mxu0 %v2716
        %3751 = vmatpush1.bf16.msra.mxu0 %v2715
        %3752 = vmatprep.subr.bf16.mxu0 %v2732
        %3753 = vmatpush1.bf16.msra.mxu0 %v2731
        %3754 = vmatprep.subr.bf16.mxu0 %v2748
        %3755 = vmatpush1.bf16.msra.mxu0 %v2747
        %3756 = vmatprep.subr.bf16.mxu0 %v2764
        %3757 = vmatpush1.bf16.msra.mxu0 %v2763
        %3758 = vmatprep.subr.bf16.mxu0 %v2780
        %3759 = vmatpush1.bf16.msra.mxu0 %v2779
        %3760 = vmatprep.subr.bf16.mxu0 %v2796
        %3761 = vmatpush1.bf16.msra.mxu0 %v2795
        %3762 = vmatprep.subr.bf16.mxu0 %v2812
        %3763 = vmatpush1.bf16.msra.mxu0 %v2811
        %3764 = vmatprep.subr.bf16.mxu0 %v2828
        %3765 = vmatpush1.bf16.msra.mxu0 %v2827
        %3766 = vmatprep.subr.bf16.mxu0 %v2844
        %3767 = vmatpush1.bf16.msra.mxu0 %v2843
        %3768 = vmatprep.subr.bf16.mxu0 %v2860
        %3769 = vmatpush1.bf16.msra.mxu0 %v2859
        %3770 = vmatprep.subr.bf16.mxu0 %v2876
        %3771 = vmatpush1.bf16.msra.mxu0 %v2875
        %3772 = vmatprep.subr.bf16.mxu0 %v2892
        %3773 = vmatpush1.bf16.msra.mxu0 %v2891
        %3774 = vmatprep.subr.bf16.mxu0 %v2908
        %3775 = vmatpush1.bf16.msra.mxu0 %v2907
        %3776 = vmatprep.subr.bf16.mxu0 %v2924
        %3777 = vmatpush1.bf16.msra.mxu0 %v2923
        %3778 = vmatprep.mubr.bf16.mxu0 %v880
        %3779 = vmatmul.mubr.bf16.gmra.mrb[0].mxu0 %v879
        %v3780 = vpop.f32.mrb[0].mxu0
        %v3781 = vadd.f32 %v3738, %v3780
        %v3782 = vpop.f32.mrb[0].mxu0
        %v3783 = vadd.f32 %v3740, %v3782
        %v3784 = vpop.f32.mrb[0].mxu0
        %v3785 = vadd.f32 %v3742, %v3784
        %v3786 = vpop.f32.mrb[0].mxu0
        %v3787 = vadd.f32 %v3744, %v3786
        %3788 = vdwg.mxu0
        %3789 = vmatprep.subr.bf16.mxu0 %v2430
        %3790 = vmatpush1.bf16.msra.mxu0 %v2429
        %3791 = vmatprep.subr.bf16.mxu0 %v2446
        %3792 = vmatpush1.bf16.msra.mxu0 %v2445
        %3793 = vmatprep.subr.bf16.mxu0 %v2462
        %3794 = vmatpush1.bf16.msra.mxu0 %v2461
        %3795 = vmatprep.subr.bf16.mxu0 %v2478
        %3796 = vmatpush1.bf16.msra.mxu0 %v2477
        %3797 = vmatprep.subr.bf16.mxu0 %v2494
        %3798 = vmatpush1.bf16.msra.mxu0 %v2493
        %3799 = vmatprep.subr.bf16.mxu0 %v2510
        %3800 = vmatpush1.bf16.msra.mxu0 %v2509
        %3801 = vmatprep.subr.bf16.mxu0 %v2526
        %3802 = vmatpush1.bf16.msra.mxu0 %v2525
        %3803 = vmatprep.subr.bf16.mxu0 %v2542
        %3804 = vmatpush1.bf16.msra.mxu0 %v2541
        %3805 = vmatprep.subr.bf16.mxu0 %v2558
        %3806 = vmatpush1.bf16.msra.mxu0 %v2557
        %3807 = vmatprep.subr.bf16.mxu0 %v2574
        %3808 = vmatpush1.bf16.msra.mxu0 %v2573
        %3809 = vmatprep.subr.bf16.mxu0 %v2590
        %3810 = vmatpush1.bf16.msra.mxu0 %v2589
        %3811 = vmatprep.subr.bf16.mxu0 %v2606
        %3812 = vmatpush1.bf16.msra.mxu0 %v2605
        %3813 = vmatprep.subr.bf16.mxu0 %v2622
        %3814 = vmatpush1.bf16.msra.mxu0 %v2621
        %3815 = vmatprep.subr.bf16.mxu0 %v2638
        %3816 = vmatpush1.bf16.msra.mxu0 %v2637
        %3817 = vmatprep.subr.bf16.mxu0 %v2654
        %3818 = vmatpush1.bf16.msra.mxu0 %v2653
        %3819 = vmatprep.subr.bf16.mxu0 %v2670
        %3820 = vmatpush1.bf16.msra.mxu0 %v2669
        %3821 = vmatprep.mubr.bf16.mxu0 %v878
        %3822 = vmatmul.mubr.bf16.gmra.mrb[0].mxu0 %v877
        %v3823 = vpop.f32.mrb[0].mxu0
        %v3824 = vadd.f32 0.0, %v3823
        %v3825 = vpop.f32.mrb[0].mxu0
        %v3826 = vadd.f32 0.0, %v3825
        %v3827 = vpop.f32.mrb[0].mxu0
        %v3828 = vadd.f32 0.0, %v3827
        %v3829 = vpop.f32.mrb[0].mxu0
        %v3830 = vadd.f32 0.0, %v3829
        %3831 = vdwg.mxu0
        %3832 = vmatprep.subr.bf16.mxu0 %v2686
        %3833 = vmatpush1.bf16.msra.mxu0 %v2685
        %3834 = vmatprep.subr.bf16.mxu0 %v2702
        %3835 = vmatpush1.bf16.msra.mxu0 %v2701
        %3836 = vmatprep.subr.bf16.mxu0 %v2718
        %3837 = vmatpush1.bf16.msra.mxu0 %v2717
        %3838 = vmatprep.subr.bf16.mxu0 %v2734
        %3839 = vmatpush1.bf16.msra.mxu0 %v2733
        %3840 = vmatprep.subr.bf16.mxu0 %v2750
        %3841 = vmatpush1.bf16.msra.mxu0 %v2749
        %3842 = vmatprep.subr.bf16.mxu0 %v2766
        %3843 = vmatpush1.bf16.msra.mxu0 %v2765
        %3844 = vmatprep.subr.bf16.mxu0 %v2782
        %3845 = vmatpush1.bf16.msra.mxu0 %v2781
        %3846 = vmatprep.subr.bf16.mxu0 %v2798
        %3847 = vmatpush1.bf16.msra.mxu0 %v2797
        %3848 = vmatprep.subr.bf16.mxu0 %v2814
        %3849 = vmatpush1.bf16.msra.mxu0 %v2813
        %3850 = vmatprep.subr.bf16.mxu0 %v2830
        %3851 = vmatpush1.bf16.msra.mxu0 %v2829
        %3852 = vmatprep.subr.bf16.mxu0 %v2846
        %3853 = vmatpush1.bf16.msra.mxu0 %v2845
        %3854 = vmatprep.subr.bf16.mxu0 %v2862
        %3855 = vmatpush1.bf16.msra.mxu0 %v2861
        %3856 = vmatprep.subr.bf16.mxu0 %v2878
        %3857 = vmatpush1.bf16.msra.mxu0 %v2877
        %3858 = vmatprep.subr.bf16.mxu0 %v2894
        %3859 = vmatpush1.bf16.msra.mxu0 %v2893
        %3860 = vmatprep.subr.bf16.mxu0 %v2910
        %3861 = vmatpush1.bf16.msra.mxu0 %v2909
        %3862 = vmatprep.subr.bf16.mxu0 %v2926
        %3863 = vmatpush1.bf16.msra.mxu0 %v2925
        %3864 = vmatprep.mubr.bf16.mxu0 %v880
        %3865 = vmatmul.mubr.bf16.gmra.mrb[0].mxu0 %v879
        %v3866 = vpop.f32.mrb[0].mxu0
        %v3867 = vadd.f32 %v3824, %v3866
        %v3868 = vpop.f32.mrb[0].mxu0
        %v3869 = vadd.f32 %v3826, %v3868
        %v3870 = vpop.f32.mrb[0].mxu0
        %v3871 = vadd.f32 %v3828, %v3870
        %v3872 = vpop.f32.mrb[0].mxu0
        %v3873 = vadd.f32 %v3830, %v3872
        %3874 = vdwg.mxu0
        %3875 = vmatprep.subr.bf16.mxu0 %v2432
        %3876 = vmatpush1.bf16.msra.mxu0 %v2431
        %3877 = vmatprep.subr.bf16.mxu0 %v2448
        %3878 = vmatpush1.bf16.msra.mxu0 %v2447
        %3879 = vmatprep.subr.bf16.mxu0 %v2464
        %3880 = vmatpush1.bf16.msra.mxu0 %v2463
        %3881 = vmatprep.subr.bf16.mxu0 %v2480
        %3882 = vmatpush1.bf16.msra.mxu0 %v2479
        %3883 = vmatprep.subr.bf16.mxu0 %v2496
        %3884 = vmatpush1.bf16.msra.mxu0 %v2495
        %3885 = vmatprep.subr.bf16.mxu0 %v2512
        %3886 = vmatpush1.bf16.msra.mxu0 %v2511
        %3887 = vmatprep.subr.bf16.mxu0 %v2528
        %3888 = vmatpush1.bf16.msra.mxu0 %v2527
        %3889 = vmatprep.subr.bf16.mxu0 %v2544
        %3890 = vmatpush1.bf16.msra.mxu0 %v2543
        %3891 = vmatprep.subr.bf16.mxu0 %v2560
        %3892 = vmatpush1.bf16.msra.mxu0 %v2559
        %3893 = vmatprep.subr.bf16.mxu0 %v2576
        %3894 = vmatpush1.bf16.msra.mxu0 %v2575
        %3895 = vmatprep.subr.bf16.mxu0 %v2592
        %3896 = vmatpush1.bf16.msra.mxu0 %v2591
        %3897 = vmatprep.subr.bf16.mxu0 %v2608
        %3898 = vmatpush1.bf16.msra.mxu0 %v2607
        %3899 = vmatprep.subr.bf16.mxu0 %v2624
        %3900 = vmatpush1.bf16.msra.mxu0 %v2623
        %3901 = vmatprep.subr.bf16.mxu0 %v2640
        %3902 = vmatpush1.bf16.msra.mxu0 %v2639
        %3903 = vmatprep.subr.bf16.mxu0 %v2656
        %3904 = vmatpush1.bf16.msra.mxu0 %v2655
        %3905 = vmatprep.subr.bf16.mxu0 %v2672
        %3906 = vmatpush1.bf16.msra.mxu0 %v2671
        %3907 = vmatprep.mubr.bf16.mxu0 %v878
        %3908 = vmatmul.mubr.bf16.gmra.mrb[0].mxu0 %v877
        %v3909 = vpop.f32.mrb[0].mxu0
        %v3910 = vadd.f32 0.0, %v3909
        %v3911 = vpop.f32.mrb[0].mxu0
        %v3912 = vadd.f32 0.0, %v3911
        %v3913 = vpop.f32.mrb[0].mxu0
        %v3914 = vadd.f32 0.0, %v3913
        %v3915 = vpop.f32.mrb[0].mxu0
        %v3916 = vadd.f32 0.0, %v3915
        %3917 = vdwg.mxu0
        %3918 = vmatprep.subr.bf16.mxu0 %v2688
        %3919 = vmatpush1.bf16.msra.mxu0 %v2687
        %3920 = vmatprep.subr.bf16.mxu0 %v2704
        %3921 = vmatpush1.bf16.msra.mxu0 %v2703
        %3922 = vmatprep.subr.bf16.mxu0 %v2720
        %3923 = vmatpush1.bf16.msra.mxu0 %v2719
        %3924 = vmatprep.subr.bf16.mxu0 %v2736
        %3925 = vmatpush1.bf16.msra.mxu0 %v2735
        %3926 = vmatprep.subr.bf16.mxu0 %v2752
        %3927 = vmatpush1.bf16.msra.mxu0 %v2751
        %3928 = vmatprep.subr.bf16.mxu0 %v2768
        %3929 = vmatpush1.bf16.msra.mxu0 %v2767
        %3930 = vmatprep.subr.bf16.mxu0 %v2784
        %3931 = vmatpush1.bf16.msra.mxu0 %v2783
        %3932 = vmatprep.subr.bf16.mxu0 %v2800
        %3933 = vmatpush1.bf16.msra.mxu0 %v2799
        %3934 = vmatprep.subr.bf16.mxu0 %v2816
        %3935 = vmatpush1.bf16.msra.mxu0 %v2815
        %3936 = vmatprep.subr.bf16.mxu0 %v2832
        %3937 = vmatpush1.bf16.msra.mxu0 %v2831
        %3938 = vmatprep.subr.bf16.mxu0 %v2848
        %3939 = vmatpush1.bf16.msra.mxu0 %v2847
        %3940 = vmatprep.subr.bf16.mxu0 %v2864
        %3941 = vmatpush1.bf16.msra.mxu0 %v2863
        %3942 = vmatprep.subr.bf16.mxu0 %v2880
        %3943 = vmatpush1.bf16.msra.mxu0 %v2879
        %3944 = vmatprep.subr.bf16.mxu0 %v2896
        %3945 = vmatpush1.bf16.msra.mxu0 %v2895
        %3946 = vmatprep.subr.bf16.mxu0 %v2912
        %3947 = vmatpush1.bf16.msra.mxu0 %v2911
        %3948 = vmatprep.subr.bf16.mxu0 %v2928
        %3949 = vmatpush1.bf16.msra.mxu0 %v2927
        %3950 = vmatprep.mubr.bf16.mxu0 %v880
        %3951 = vmatmul.mubr.bf16.gmra.mrb[0].mxu0 %v879
        %v3952 = vpop.f32.mrb[0].mxu0
        %v3953 = vadd.f32 %v3910, %v3952
        %v3954 = vpop.f32.mrb[0].mxu0
        %v3955 = vadd.f32 %v3912, %v3954
        %v3956 = vpop.f32.mrb[0].mxu0
        %v3957 = vadd.f32 %v3914, %v3956
        %v3958 = vpop.f32.mrb[0].mxu0
        %v3959 = vadd.f32 %v3916, %v3958
        %3960 = vdwg.mxu0
        %3961 = vmatprep.subr.bf16.mxu0 %v2434
        %3962 = vmatpush1.bf16.msra.mxu0 %v2433
        %3963 = vmatprep.subr.bf16.mxu0 %v2450
        %3964 = vmatpush1.bf16.msra.mxu0 %v2449
        %3965 = vmatprep.subr.bf16.mxu0 %v2466
        %3966 = vmatpush1.bf16.msra.mxu0 %v2465
        %3967 = vmatprep.subr.bf16.mxu0 %v2482
        %3968 = vmatpush1.bf16.msra.mxu0 %v2481
        %3969 = vmatprep.subr.bf16.mxu0 %v2498
        %3970 = vmatpush1.bf16.msra.mxu0 %v2497
        %3971 = vmatprep.subr.bf16.mxu0 %v2514
        %3972 = vmatpush1.bf16.msra.mxu0 %v2513
        %3973 = vmatprep.subr.bf16.mxu0 %v2530
        %3974 = vmatpush1.bf16.msra.mxu0 %v2529
        %3975 = vmatprep.subr.bf16.mxu0 %v2546
        %3976 = vmatpush1.bf16.msra.mxu0 %v2545
        %3977 = vmatprep.subr.bf16.mxu0 %v2562
        %3978 = vmatpush1.bf16.msra.mxu0 %v2561
        %3979 = vmatprep.subr.bf16.mxu0 %v2578
        %3980 = vmatpush1.bf16.msra.mxu0 %v2577
        %3981 = vmatprep.subr.bf16.mxu0 %v2594
        %3982 = vmatpush1.bf16.msra.mxu0 %v2593
        %3983 = vmatprep.subr.bf16.mxu0 %v2610
        %3984 = vmatpush1.bf16.msra.mxu0 %v2609
        %3985 = vmatprep.subr.bf16.mxu0 %v2626
        %3986 = vmatpush1.bf16.msra.mxu0 %v2625
        %3987 = vmatprep.subr.bf16.mxu0 %v2642
        %3988 = vmatpush1.bf16.msra.mxu0 %v2641
        %3989 = vmatprep.subr.bf16.mxu0 %v2658
        %3990 = vmatpush1.bf16.msra.mxu0 %v2657
        %3991 = vmatprep.subr.bf16.mxu0 %v2674
        %3992 = vmatpush1.bf16.msra.mxu0 %v2673
        %3993 = vmatprep.mubr.bf16.mxu0 %v878
        %3994 = vmatmul.mubr.bf16.gmra.mrb[0].mxu0 %v877
        %v3995 = vpop.f32.mrb[0].mxu0
        %v3996 = vadd.f32 0.0, %v3995
        %v3997 = vpop.f32.mrb[0].mxu0
        %v3998 = vadd.f32 0.0, %v3997
        %v3999 = vpop.f32.mrb[0].mxu0
        %v4000 = vadd.f32 0.0, %v3999
        %v4001 = vpop.f32.mrb[0].mxu0
        %v4002 = vadd.f32 0.0, %v4001
        %4003 = vdwg.mxu0
        %4004 = vmatprep.subr.bf16.mxu0 %v2690
        %4005 = vmatpush1.bf16.msra.mxu0 %v2689
        %4006 = vmatprep.subr.bf16.mxu0 %v2706
        %4007 = vmatpush1.bf16.msra.mxu0 %v2705
        %4008 = vmatprep.subr.bf16.mxu0 %v2722
        %4009 = vmatpush1.bf16.msra.mxu0 %v2721
        %4010 = vmatprep.subr.bf16.mxu0 %v2738
        %4011 = vmatpush1.bf16.msra.mxu0 %v2737
        %4012 = vmatprep.subr.bf16.mxu0 %v2754
        %4013 = vmatpush1.bf16.msra.mxu0 %v2753
        %4014 = vmatprep.subr.bf16.mxu0 %v2770
        %4015 = vmatpush1.bf16.msra.mxu0 %v2769
        %4016 = vmatprep.subr.bf16.mxu0 %v2786
        %4017 = vmatpush1.bf16.msra.mxu0 %v2785
        %4018 = vmatprep.subr.bf16.mxu0 %v2802
        %4019 = vmatpush1.bf16.msra.mxu0 %v2801
        %4020 = vmatprep.subr.bf16.mxu0 %v2818
        %4021 = vmatpush1.bf16.msra.mxu0 %v2817
        %4022 = vmatprep.subr.bf16.mxu0 %v2834
        %4023 = vmatpush1.bf16.msra.mxu0 %v2833
        %4024 = vmatprep.subr.bf16.mxu0 %v2850
        %4025 = vmatpush1.bf16.msra.mxu0 %v2849
        %4026 = vmatprep.subr.bf16.mxu0 %v2866
        %4027 = vmatpush1.bf16.msra.mxu0 %v2865
        %4028 = vmatprep.subr.bf16.mxu0 %v2882
        %4029 = vmatpush1.bf16.msra.mxu0 %v2881
        %4030 = vmatprep.subr.bf16.mxu0 %v2898
        %4031 = vmatpush1.bf16.msra.mxu0 %v2897
        %4032 = vmatprep.subr.bf16.mxu0 %v2914
        %4033 = vmatpush1.bf16.msra.mxu0 %v2913
        %4034 = vmatprep.subr.bf16.mxu0 %v2930
        %4035 = vmatpush1.bf16.msra.mxu0 %v2929
        %4036 = vmatprep.mubr.bf16.mxu0 %v880
        %4037 = vmatmul.mubr.bf16.gmra.mrb[0].mxu0 %v879
        %v4038 = vpop.f32.mrb[0].mxu0
        %v4039 = vadd.f32 %v3996, %v4038
        %v4040 = vpop.f32.mrb[0].mxu0
        %v4041 = vadd.f32 %v3998, %v4040
        %v4042 = vpop.f32.mrb[0].mxu0
        %v4043 = vadd.f32 %v4000, %v4042
        %v4044 = vpop.f32.mrb[0].mxu0
        %v4045 = vadd.f32 %v4002, %v4044
        %4046 = vdwg.mxu0
        %4047 = vmatprep.subr.bf16.mxu0 %v2436
        %4048 = vmatpush1.bf16.msra.mxu0 %v2435
        %4049 = vmatprep.subr.bf16.mxu0 %v2452
        %4050 = vmatpush1.bf16.msra.mxu0 %v2451
        %4051 = vmatprep.subr.bf16.mxu0 %v2468
        %4052 = vmatpush1.bf16.msra.mxu0 %v2467
        %4053 = vmatprep.subr.bf16.mxu0 %v2484
        %4054 = vmatpush1.bf16.msra.mxu0 %v2483
        %4055 = vmatprep.subr.bf16.mxu0 %v2500
        %4056 = vmatpush1.bf16.msra.mxu0 %v2499
        %4057 = vmatprep.subr.bf16.mxu0 %v2516
        %4058 = vmatpush1.bf16.msra.mxu0 %v2515
        %4059 = vmatprep.subr.bf16.mxu0 %v2532
        %4060 = vmatpush1.bf16.msra.mxu0 %v2531
        %4061 = vmatprep.subr.bf16.mxu0 %v2548
        %4062 = vmatpush1.bf16.msra.mxu0 %v2547
        %4063 = vmatprep.subr.bf16.mxu0 %v2564
        %4064 = vmatpush1.bf16.msra.mxu0 %v2563
        %4065 = vmatprep.subr.bf16.mxu0 %v2580
        %4066 = vmatpush1.bf16.msra.mxu0 %v2579
        %4067 = vmatprep.subr.bf16.mxu0 %v2596
        %4068 = vmatpush1.bf16.msra.mxu0 %v2595
        %4069 = vmatprep.subr.bf16.mxu0 %v2612
        %4070 = vmatpush1.bf16.msra.mxu0 %v2611
        %4071 = vmatprep.subr.bf16.mxu0 %v2628
        %4072 = vmatpush1.bf16.msra.mxu0 %v2627
        %4073 = vmatprep.subr.bf16.mxu0 %v2644
        %4074 = vmatpush1.bf16.msra.mxu0 %v2643
        %4075 = vmatprep.subr.bf16.mxu0 %v2660
        %4076 = vmatpush1.bf16.msra.mxu0 %v2659
        %4077 = vmatprep.subr.bf16.mxu0 %v2676
        %4078 = vmatpush1.bf16.msra.mxu0 %v2675
        %4079 = vmatprep.mubr.bf16.mxu0 %v878
        %4080 = vmatmul.mubr.bf16.gmra.mrb[0].mxu0 %v877
        %v4081 = vpop.f32.mrb[0].mxu0
        %v4082 = vadd.f32 0.0, %v4081
        %v4083 = vpop.f32.mrb[0].mxu0
        %v4084 = vadd.f32 0.0, %v4083
        %v4085 = vpop.f32.mrb[0].mxu0
        %v4086 = vadd.f32 0.0, %v4085
        %v4087 = vpop.f32.mrb[0].mxu0
        %v4088 = vadd.f32 0.0, %v4087
        %4089 = vdwg.mxu0
        %4090 = vmatprep.subr.bf16.mxu0 %v2692
        %4091 = vmatpush1.bf16.msra.mxu0 %v2691
        %4092 = vmatprep.subr.bf16.mxu0 %v2708
        %4093 = vmatpush1.bf16.msra.mxu0 %v2707
        %4094 = vmatprep.subr.bf16.mxu0 %v2724
        %4095 = vmatpush1.bf16.msra.mxu0 %v2723
        %4096 = vmatprep.subr.bf16.mxu0 %v2740
        %4097 = vmatpush1.bf16.msra.mxu0 %v2739
        %4098 = vmatprep.subr.bf16.mxu0 %v2756
        %4099 = vmatpush1.bf16.msra.mxu0 %v2755
        %4100 = vmatprep.subr.bf16.mxu0 %v2772
        %4101 = vmatpush1.bf16.msra.mxu0 %v2771
        %4102 = vmatprep.subr.bf16.mxu0 %v2788
        %4103 = vmatpush1.bf16.msra.mxu0 %v2787
        %4104 = vmatprep.subr.bf16.mxu0 %v2804
        %4105 = vmatpush1.bf16.msra.mxu0 %v2803
        %4106 = vmatprep.subr.bf16.mxu0 %v2820
        %4107 = vmatpush1.bf16.msra.mxu0 %v2819
        %4108 = vmatprep.subr.bf16.mxu0 %v2836
        %4109 = vmatpush1.bf16.msra.mxu0 %v2835
        %4110 = vmatprep.subr.bf16.mxu0 %v2852
        %4111 = vmatpush1.bf16.msra.mxu0 %v2851
        %4112 = vmatprep.subr.bf16.mxu0 %v2868
        %4113 = vmatpush1.bf16.msra.mxu0 %v2867
        %4114 = vmatprep.subr.bf16.mxu0 %v2884
        %4115 = vmatpush1.bf16.msra.mxu0 %v2883
        %4116 = vmatprep.subr.bf16.mxu0 %v2900
        %4117 = vmatpush1.bf16.msra.mxu0 %v2899
        %4118 = vmatprep.subr.bf16.mxu0 %v2916
        %4119 = vmatpush1.bf16.msra.mxu0 %v2915
        %4120 = vmatprep.subr.bf16.mxu0 %v2932
        %4121 = vmatpush1.bf16.msra.mxu0 %v2931
        %4122 = vmatprep.mubr.bf16.mxu0 %v880
        %4123 = vmatmul.mubr.bf16.gmra.mrb[0].mxu0 %v879
        %v4124 = vpop.f32.mrb[0].mxu0
        %v4125 = vadd.f32 %v4082, %v4124
        %v4126 = vpop.f32.mrb[0].mxu0
        %v4127 = vadd.f32 %v4084, %v4126
        %v4128 = vpop.f32.mrb[0].mxu0
        %v4129 = vadd.f32 %v4086, %v4128
        %v4130 = vpop.f32.mrb[0].mxu0
        %v4131 = vadd.f32 %v4088, %v4130
        %4132 = vdwg.mxu0
        %v4133 = vadd.f32 %v3523, %v3527
        %v4134 = vrot.slane %v4133, 4
        %v4135 = vadd.f32 %v4133, %v4134
        %v4136 = vrot.slane %v4135, 2
        %v4137 = vadd.f32 %v4135, %v4136
        %v4138 = vrot.slane %v4137, 1
        %v4139 = vadd.f32 %v4137, %v4138
        %v4140 = vadd.f32 %v3525, %v3529
        %v4141 = vrot.slane %v4140, 4
        %v4142 = vadd.f32 %v4140, %v4141
        %v4143 = vrot.slane %v4142, 2
        %v4144 = vadd.f32 %v4142, %v4143
        %v4145 = vrot.slane %v4144, 1
        %v4146 = vadd.f32 %v4144, %v4145
        %v4147 = vadd.f32 %v3609, %v3613
        %v4148 = vrot.slane %v4147, 4
        %v4149 = vadd.f32 %v4147, %v4148
        %v4150 = vrot.slane %v4149, 2
        %v4151 = vadd.f32 %v4149, %v4150
        %v4152 = vrot.slane %v4151, 1
        %v4153 = vadd.f32 %v4151, %v4152
        %v4154 = vadd.f32 %v3611, %v3615
        %v4155 = vrot.slane %v4154, 4
        %v4156 = vadd.f32 %v4154, %v4155
        %v4157 = vrot.slane %v4156, 2
        %v4158 = vadd.f32 %v4156, %v4157
        %v4159 = vrot.slane %v4158, 1
        %v4160 = vadd.f32 %v4158, %v4159
        %v4161 = vadd.f32 %v3695, %v3699
        %v4162 = vrot.slane %v4161, 4
        %v4163 = vadd.f32 %v4161, %v4162
        %v4164 = vrot.slane %v4163, 2
        %v4165 = vadd.f32 %v4163, %v4164
        %v4166 = vrot.slane %v4165, 1
        %v4167 = vadd.f32 %v4165, %v4166
        %v4168 = vadd.f32 %v3697, %v3701
        %v4169 = vrot.slane %v4168, 4
        %v4170 = vadd.f32 %v4168, %v4169
        %v4171 = vrot.slane %v4170, 2
        %v4172 = vadd.f32 %v4170, %v4171
        %v4173 = vrot.slane %v4172, 1
        %v4174 = vadd.f32 %v4172, %v4173
        %v4175 = vadd.f32 %v3781, %v3785
        %v4176 = vrot.slane %v4175, 4
        %v4177 = vadd.f32 %v4175, %v4176
        %v4178 = vrot.slane %v4177, 2
        %v4179 = vadd.f32 %v4177, %v4178
        %v4180 = vrot.slane %v4179, 1
        %v4181 = vadd.f32 %v4179, %v4180
        %v4182 = vadd.f32 %v3783, %v3787
        %v4183 = vrot.slane %v4182, 4
        %v4184 = vadd.f32 %v4182, %v4183
        %v4185 = vrot.slane %v4184, 2
        %v4186 = vadd.f32 %v4184, %v4185
        %v4187 = vrot.slane %v4186, 1
        %v4188 = vadd.f32 %v4186, %v4187
        %v4189 = vadd.f32 %v3867, %v3871
        %v4190 = vrot.slane %v4189, 4
        %v4191 = vadd.f32 %v4189, %v4190
        %v4192 = vrot.slane %v4191, 2
        %v4193 = vadd.f32 %v4191, %v4192
        %v4194 = vrot.slane %v4193, 1
        %v4195 = vadd.f32 %v4193, %v4194
        %v4196 = vadd.f32 %v3869, %v3873
        %v4197 = vrot.slane %v4196, 4
        %v4198 = vadd.f32 %v4196, %v4197
        %v4199 = vrot.slane %v4198, 2
        %v4200 = vadd.f32 %v4198, %v4199
        %v4201 = vrot.slane %v4200, 1
        %v4202 = vadd.f32 %v4200, %v4201
        %v4203 = vadd.f32 %v3953, %v3957
        %v4204 = vrot.slane %v4203, 4
        %v4205 = vadd.f32 %v4203, %v4204
        %v4206 = vrot.slane %v4205, 2
        %v4207 = vadd.f32 %v4205, %v4206
        %v4208 = vrot.slane %v4207, 1
        %v4209 = vadd.f32 %v4207, %v4208
        %v4210 = vadd.f32 %v3955, %v3959
        %v4211 = vrot.slane %v4210, 4
        %v4212 = vadd.f32 %v4210, %v4211
        %v4213 = vrot.slane %v4212, 2
        %v4214 = vadd.f32 %v4212, %v4213
        %v4215 = vrot.slane %v4214, 1
        %v4216 = vadd.f32 %v4214, %v4215
        %v4217 = vadd.f32 %v4039, %v4043
        %v4218 = vrot.slane %v4217, 4
        %v4219 = vadd.f32 %v4217, %v4218
        %v4220 = vrot.slane %v4219, 2
        %v4221 = vadd.f32 %v4219, %v4220
        %v4222 = vrot.slane %v4221, 1
        %v4223 = vadd.f32 %v4221, %v4222
        %v4224 = vadd.f32 %v4041, %v4045
        %v4225 = vrot.slane %v4224, 4
        %v4226 = vadd.f32 %v4224, %v4225
        %v4227 = vrot.slane %v4226, 2
        %v4228 = vadd.f32 %v4226, %v4227
        %v4229 = vrot.slane %v4228, 1
        %v4230 = vadd.f32 %v4228, %v4229
        %v4231 = vadd.f32 %v4125, %v4129
        %v4232 = vrot.slane %v4231, 4
        %v4233 = vadd.f32 %v4231, %v4232
        %v4234 = vrot.slane %v4233, 2
        %v4235 = vadd.f32 %v4233, %v4234
        %v4236 = vrot.slane %v4235, 1
        %v4237 = vadd.f32 %v4235, %v4236
        %v4238 = vadd.f32 %v4127, %v4131
        %v4239 = vrot.slane %v4238, 4
        %v4240 = vadd.f32 %v4238, %v4239
        %v4241 = vrot.slane %v4240, 2
        %v4242 = vadd.f32 %v4240, %v4241
        %v4243 = vrot.slane %v4242, 1
        %v4244 = vadd.f32 %v4242, %v4243
        %v4245 = vrcp.pop 16.0
        %v4246 = vmul.f32 %v4139, %v4245
        %v4247 = vmul.f32 %v4146, %v4245
        %v4248 = vmul.f32 %v4153, %v4245
        %v4249 = vmul.f32 %v4160, %v4245
        %v4250 = vmul.f32 %v4167, %v4245
        %v4251 = vmul.f32 %v4174, %v4245
        %v4252 = vmul.f32 %v4181, %v4245
        %v4253 = vmul.f32 %v4188, %v4245
        %v4254 = vmul.f32 %v4195, %v4245
        %v4255 = vmul.f32 %v4202, %v4245
        %v4256 = vmul.f32 %v4209, %v4245
        %v4257 = vmul.f32 %v4216, %v4245
        %v4258 = vmul.f32 %v4223, %v4245
        %v4259 = vmul.f32 %v4230, %v4245
        %v4260 = vmul.f32 %v4237, %v4245
        %v4261 = vmul.f32 %v4244, %v4245
        %v4262 = vsub.f32 %v3523, %v4246
        %v4263 = vsub.f32 %v3525, %v4247
        %v4264 = vsub.f32 %v3609, %v4248
        %v4265 = vsub.f32 %v3611, %v4249
        %v4266 = vsub.f32 %v3695, %v4250
        %v4267 = vsub.f32 %v3697, %v4251
        %v4268 = vsub.f32 %v3781, %v4252
        %v4269 = vsub.f32 %v3783, %v4253
        %v4270 = vsub.f32 %v3867, %v4254
        %v4271 = vsub.f32 %v3869, %v4255
        %v4272 = vsub.f32 %v3953, %v4256
        %v4273 = vsub.f32 %v3955, %v4257
        %v4274 = vsub.f32 %v4039, %v4258
        %v4275 = vsub.f32 %v4041, %v4259
        %v4276 = vsub.f32 %v4125, %v4260
        %v4277 = vsub.f32 %v4127, %v4261
        %v4278 = vsub.f32 %v3527, %v4246
        %v4279 = vsub.f32 %v3529, %v4247
        %v4280 = vsub.f32 %v3613, %v4248
        %v4281 = vsub.f32 %v3615, %v4249
        %v4282 = vsub.f32 %v3699, %v4250
        %v4283 = vsub.f32 %v3701, %v4251
        %v4284 = vsub.f32 %v3785, %v4252
        %v4285 = vsub.f32 %v3787, %v4253
        %v4286 = vsub.f32 %v3871, %v4254
        %v4287 = vsub.f32 %v3873, %v4255
        %v4288 = vsub.f32 %v3957, %v4256
        %v4289 = vsub.f32 %v3959, %v4257
        %v4290 = vsub.f32 %v4043, %v4258
        %v4291 = vsub.f32 %v4045, %v4259
        %v4292 = vsub.f32 %v4129, %v4260
        %v4293 = vsub.f32 %v4131, %v4261
        %v4294 = vmul.f32 %v4262, %v4262
        %v4295 = vmul.f32 %v4263, %v4263
        %v4296 = vmul.f32 %v4264, %v4264
        %v4297 = vmul.f32 %v4265, %v4265
        %v4298 = vmul.f32 %v4266, %v4266
        %v4299 = vmul.f32 %v4267, %v4267
        %v4300 = vmul.f32 %v4268, %v4268
        %v4301 = vmul.f32 %v4269, %v4269
        %v4302 = vmul.f32 %v4270, %v4270
        %v4303 = vmul.f32 %v4271, %v4271
        %v4304 = vmul.f32 %v4272, %v4272
        %v4305 = vmul.f32 %v4273, %v4273
        %v4306 = vmul.f32 %v4274, %v4274
        %v4307 = vmul.f32 %v4275, %v4275
        %v4308 = vmul.f32 %v4276, %v4276
        %v4309 = vmul.f32 %v4277, %v4277
        %v4310 = vmul.f32 %v4278, %v4278
        %v4311 = vmul.f32 %v4279, %v4279
        %v4312 = vmul.f32 %v4280, %v4280
        %v4313 = vmul.f32 %v4281, %v4281
        %v4314 = vmul.f32 %v4282, %v4282
        %v4315 = vmul.f32 %v4283, %v4283
        %v4316 = vmul.f32 %v4284, %v4284
        %v4317 = vmul.f32 %v4285, %v4285
        %v4318 = vmul.f32 %v4286, %v4286
        %v4319 = vmul.f32 %v4287, %v4287
        %v4320 = vmul.f32 %v4288, %v4288
        %v4321 = vmul.f32 %v4289, %v4289
        %v4322 = vmul.f32 %v4290, %v4290
        %v4323 = vmul.f32 %v4291, %v4291
        %v4324 = vmul.f32 %v4292, %v4292
        %v4325 = vmul.f32 %v4293, %v4293
        %v4326 = vadd.f32 %v4294, %v4310
        %v4327 = vrot.slane %v4326, 4
        %v4328 = vadd.f32 %v4326, %v4327
        %v4329 = vrot.slane %v4328, 2
        %v4330 = vadd.f32 %v4328, %v4329
        %v4331 = vrot.slane %v4330, 1
        %v4332 = vadd.f32 %v4330, %v4331
        %v4333 = vadd.f32 %v4295, %v4311
        %v4334 = vrot.slane %v4333, 4
        %v4335 = vadd.f32 %v4333, %v4334
        %v4336 = vrot.slane %v4335, 2
        %v4337 = vadd.f32 %v4335, %v4336
        %v4338 = vrot.slane %v4337, 1
        %v4339 = vadd.f32 %v4337, %v4338
        %v4340 = vadd.f32 %v4296, %v4312
        %v4341 = vrot.slane %v4340, 4
        %v4342 = vadd.f32 %v4340, %v4341
        %v4343 = vrot.slane %v4342, 2
        %v4344 = vadd.f32 %v4342, %v4343
        %v4345 = vrot.slane %v4344, 1
        %v4346 = vadd.f32 %v4344, %v4345
        %v4347 = vadd.f32 %v4297, %v4313
        %v4348 = vrot.slane %v4347, 4
        %v4349 = vadd.f32 %v4347, %v4348
        %v4350 = vrot.slane %v4349, 2
        %v4351 = vadd.f32 %v4349, %v4350
        %v4352 = vrot.slane %v4351, 1
        %v4353 = vadd.f32 %v4351, %v4352
        %v4354 = vadd.f32 %v4298, %v4314
        %v4355 = vrot.slane %v4354, 4
        %v4356 = vadd.f32 %v4354, %v4355
        %v4357 = vrot.slane %v4356, 2
        %v4358 = vadd.f32 %v4356, %v4357
        %v4359 = vrot.slane %v4358, 1
        %v4360 = vadd.f32 %v4358, %v4359
        %v4361 = vadd.f32 %v4299, %v4315
        %v4362 = vrot.slane %v4361, 4
        %v4363 = vadd.f32 %v4361, %v4362
        %v4364 = vrot.slane %v4363, 2
        %v4365 = vadd.f32 %v4363, %v4364
        %v4366 = vrot.slane %v4365, 1
        %v4367 = vadd.f32 %v4365, %v4366
        %v4368 = vadd.f32 %v4300, %v4316
        %v4369 = vrot.slane %v4368, 4
        %v4370 = vadd.f32 %v4368, %v4369
        %v4371 = vrot.slane %v4370, 2
        %v4372 = vadd.f32 %v4370, %v4371
        %v4373 = vrot.slane %v4372, 1
        %v4374 = vadd.f32 %v4372, %v4373
        %v4375 = vadd.f32 %v4301, %v4317
        %v4376 = vrot.slane %v4375, 4
        %v4377 = vadd.f32 %v4375, %v4376
        %v4378 = vrot.slane %v4377, 2
        %v4379 = vadd.f32 %v4377, %v4378
        %v4380 = vrot.slane %v4379, 1
        %v4381 = vadd.f32 %v4379, %v4380
        %v4382 = vadd.f32 %v4302, %v4318
        %v4383 = vrot.slane %v4382, 4
        %v4384 = vadd.f32 %v4382, %v4383
        %v4385 = vrot.slane %v4384, 2
        %v4386 = vadd.f32 %v4384, %v4385
        %v4387 = vrot.slane %v4386, 1
        %v4388 = vadd.f32 %v4386, %v4387
        %v4389 = vadd.f32 %v4303, %v4319
        %v4390 = vrot.slane %v4389, 4
        %v4391 = vadd.f32 %v4389, %v4390
        %v4392 = vrot.slane %v4391, 2
        %v4393 = vadd.f32 %v4391, %v4392
        %v4394 = vrot.slane %v4393, 1
        %v4395 = vadd.f32 %v4393, %v4394
        %v4396 = vadd.f32 %v4304, %v4320
        %v4397 = vrot.slane %v4396, 4
        %v4398 = vadd.f32 %v4396, %v4397
        %v4399 = vrot.slane %v4398, 2
        %v4400 = vadd.f32 %v4398, %v4399
        %v4401 = vrot.slane %v4400, 1
        %v4402 = vadd.f32 %v4400, %v4401
        %v4403 = vadd.f32 %v4305, %v4321
        %v4404 = vrot.slane %v4403, 4
        %v4405 = vadd.f32 %v4403, %v4404
        %v4406 = vrot.slane %v4405, 2
        %v4407 = vadd.f32 %v4405, %v4406
        %v4408 = vrot.slane %v4407, 1
        %v4409 = vadd.f32 %v4407, %v4408
        %v4410 = vadd.f32 %v4306, %v4322
        %v4411 = vrot.slane %v4410, 4
        %v4412 = vadd.f32 %v4410, %v4411
        %v4413 = vrot.slane %v4412, 2
        %v4414 = vadd.f32 %v4412, %v4413
        %v4415 = vrot.slane %v4414, 1
        %v4416 = vadd.f32 %v4414, %v4415
        %v4417 = vadd.f32 %v4307, %v4323
        %v4418 = vrot.slane %v4417, 4
        %v4419 = vadd.f32 %v4417, %v4418
        %v4420 = vrot.slane %v4419, 2
        %v4421 = vadd.f32 %v4419, %v4420
        %v4422 = vrot.slane %v4421, 1
        %v4423 = vadd.f32 %v4421, %v4422
        %v4424 = vadd.f32 %v4308, %v4324
        %v4425 = vrot.slane %v4424, 4
        %v4426 = vadd.f32 %v4424, %v4425
        %v4427 = vrot.slane %v4426, 2
        %v4428 = vadd.f32 %v4426, %v4427
        %v4429 = vrot.slane %v4428, 1
        %v4430 = vadd.f32 %v4428, %v4429
        %v4431 = vadd.f32 %v4309, %v4325
        %v4432 = vrot.slane %v4431, 4
        %v4433 = vadd.f32 %v4431, %v4432
        %v4434 = vrot.slane %v4433, 2
        %v4435 = vadd.f32 %v4433, %v4434
        %v4436 = vrot.slane %v4435, 1
        %v4437 = vadd.f32 %v4435, %v4436
        %v4438 = vmul.f32 %v4332, %v4245
        %v4439 = vmul.f32 %v4339, %v4245
        %v4440 = vmul.f32 %v4346, %v4245
        %v4441 = vmul.f32 %v4353, %v4245
        %v4442 = vmul.f32 %v4360, %v4245
        %v4443 = vmul.f32 %v4367, %v4245
        %v4444 = vmul.f32 %v4374, %v4245
        %v4445 = vmul.f32 %v4381, %v4245
        %v4446 = vmul.f32 %v4388, %v4245
        %v4447 = vmul.f32 %v4395, %v4245
        %v4448 = vmul.f32 %v4402, %v4245
        %v4449 = vmul.f32 %v4409, %v4245
        %v4450 = vmul.f32 %v4416, %v4245
        %v4451 = vmul.f32 %v4423, %v4245
        %v4452 = vmul.f32 %v4430, %v4245
        %v4453 = vmul.f32 %v4437, %v4245
        %v4454 = vadd.f32 %v4438, 1e-05
        %v4455 = vadd.f32 %v4439, 1e-05
        %v4456 = vadd.f32 %v4440, 1e-05
        %v4457 = vadd.f32 %v4441, 1e-05
        %v4458 = vadd.f32 %v4442, 1e-05
        %v4459 = vadd.f32 %v4443, 1e-05
        %v4460 = vadd.f32 %v4444, 1e-05
        %v4461 = vadd.f32 %v4445, 1e-05
        %v4462 = vadd.f32 %v4446, 1e-05
        %v4463 = vadd.f32 %v4447, 1e-05
        %v4464 = vadd.f32 %v4448, 1e-05
        %v4465 = vadd.f32 %v4449, 1e-05
        %v4466 = vadd.f32 %v4450, 1e-05
        %v4467 = vadd.f32 %v4451, 1e-05
        %v4468 = vadd.f32 %v4452, 1e-05
        %v4469 = vadd.f32 %v4453, 1e-05
        %v4470 = vrsqrt.pop %v4454
        %v4471 = vrsqrt.pop %v4455
        %v4472 = vrsqrt.pop %v4456
        %v4473 = vrsqrt.pop %v4457
        %v4474 = vrsqrt.pop %v4458
        %v4475 = vrsqrt.pop %v4459
        %v4476 = vrsqrt.pop %v4460
        %v4477 = vrsqrt.pop %v4461
        %v4478 = vrsqrt.pop %v4462
        %v4479 = vrsqrt.pop %v4463
        %v4480 = vrsqrt.pop %v4464
        %v4481 = vrsqrt.pop %v4465
        %v4482 = vrsqrt.pop %v4466
        %v4483 = vrsqrt.pop %v4467
        %v4484 = vrsqrt.pop %v4468
        %v4485 = vrsqrt.pop %v4469
        %v4486 = vmul.f32 %v4262, %v4470
        %v4487 = vmul.f32 %v4263, %v4471
        %v4488 = vmul.f32 %v4264, %v4472
        %v4489 = vmul.f32 %v4265, %v4473
        %v4490 = vmul.f32 %v4266, %v4474
        %v4491 = vmul.f32 %v4267, %v4475
        %v4492 = vmul.f32 %v4268, %v4476
        %v4493 = vmul.f32 %v4269, %v4477
        %v4494 = vmul.f32 %v4270, %v4478
        %v4495 = vmul.f32 %v4271, %v4479
        %v4496 = vmul.f32 %v4272, %v4480
        %v4497 = vmul.f32 %v4273, %v4481
        %v4498 = vmul.f32 %v4274, %v4482
        %v4499 = vmul.f32 %v4275, %v4483
        %v4500 = vmul.f32 %v4276, %v4484
        %v4501 = vmul.f32 %v4277, %v4485
        %v4502 = vmul.f32 %v4278, %v4470
        %v4503 = vmul.f32 %v4279, %v4471
        %v4504 = vmul.f32 %v4280, %v4472
        %v4505 = vmul.f32 %v4281, %v4473
        %v4506 = vmul.f32 %v4282, %v4474
        %v4507 = vmul.f32 %v4283, %v4475
        %v4508 = vmul.f32 %v4284, %v4476
        %v4509 = vmul.f32 %v4285, %v4477
        %v4510 = vmul.f32 %v4286, %v4478
        %v4511 = vmul.f32 %v4287, %v4479
        %v4512 = vmul.f32 %v4288, %v4480
        %v4513 = vmul.f32 %v4289, %v4481
        %v4514 = vmul.f32 %v4290, %v4482
        %v4515 = vmul.f32 %v4291, %v4483
        %v4516 = vmul.f32 %v4292, %v4484
        %v4517 = vmul.f32 %v4293, %v4485
        %v4518 = vld [vmem:[%s290] sm:$0xff]
        %v4519 = vld [vmem:[%s290 + $0x8] sm:$0xff]
        %v4522 = vlaneseq
        %v4523 = vshrl.u32 %v4522, 7
        %v4524 = vsub.s32 0, %v4523
        %v4525 = vrot.slane %v4518, %v4524
        %v4526 = vlaneseq
        %v4527 = vshrl.u32 %v4526, 7
        %v4528 = vsub.s32 1, %v4527
        %v4529 = vrot.slane %v4518, %v4528
        %v4530 = vlaneseq
        %v4531 = vshrl.u32 %v4530, 7
        %v4532 = vsub.s32 2, %v4531
        %v4533 = vrot.slane %v4518, %v4532
        %v4534 = vlaneseq
        %v4535 = vshrl.u32 %v4534, 7
        %v4536 = vsub.s32 3, %v4535
        %v4537 = vrot.slane %v4518, %v4536
        %v4538 = vlaneseq
        %v4539 = vshrl.u32 %v4538, 7
        %v4540 = vsub.s32 4, %v4539
        %v4541 = vrot.slane %v4518, %v4540
        %v4542 = vlaneseq
        %v4543 = vshrl.u32 %v4542, 7
        %v4544 = vsub.s32 5, %v4543
        %v4545 = vrot.slane %v4518, %v4544
        %v4546 = vlaneseq
        %v4547 = vshrl.u32 %v4546, 7
        %v4548 = vsub.s32 6, %v4547
        %v4549 = vrot.slane %v4518, %v4548
        %v4550 = vlaneseq
        %v4551 = vshrl.u32 %v4550, 7
        %v4552 = vsub.s32 7, %v4551
        %v4553 = vrot.slane %v4518, %v4552
        %v4554 = vlaneseq
        %v4555 = vshrl.u32 %v4554, 7
        %v4556 = vsub.s32 0, %v4555
        %v4557 = vrot.slane %v4519, %v4556
        %v4558 = vlaneseq
        %v4559 = vshrl.u32 %v4558, 7
        %v4560 = vsub.s32 1, %v4559
        %v4561 = vrot.slane %v4519, %v4560
        %v4562 = vlaneseq
        %v4563 = vshrl.u32 %v4562, 7
        %v4564 = vsub.s32 2, %v4563
        %v4565 = vrot.slane %v4519, %v4564
        %v4566 = vlaneseq
        %v4567 = vshrl.u32 %v4566, 7
        %v4568 = vsub.s32 3, %v4567
        %v4569 = vrot.slane %v4519, %v4568
        %v4570 = vlaneseq
        %v4571 = vshrl.u32 %v4570, 7
        %v4572 = vsub.s32 4, %v4571
        %v4573 = vrot.slane %v4519, %v4572
        %v4574 = vlaneseq
        %v4575 = vshrl.u32 %v4574, 7
        %v4576 = vsub.s32 5, %v4575
        %v4577 = vrot.slane %v4519, %v4576
        %v4578 = vlaneseq
        %v4579 = vshrl.u32 %v4578, 7
        %v4580 = vsub.s32 6, %v4579
        %v4581 = vrot.slane %v4519, %v4580
        %v4582 = vlaneseq
        %v4583 = vshrl.u32 %v4582, 7
        %v4584 = vsub.s32 7, %v4583
        %v4585 = vrot.slane %v4519, %v4584
        %v4602 = vmul.f32 %v4486, %v4525
        %v4603 = vmul.f32 %v4487, %v4529
        %v4604 = vmul.f32 %v4488, %v4533
        %v4605 = vmul.f32 %v4489, %v4537
        %v4606 = vmul.f32 %v4490, %v4541
        %v4607 = vmul.f32 %v4491, %v4545
        %v4608 = vmul.f32 %v4492, %v4549
        %v4609 = vmul.f32 %v4493, %v4553
        %v4610 = vmul.f32 %v4494, %v4557
        %v4611 = vmul.f32 %v4495, %v4561
        %v4612 = vmul.f32 %v4496, %v4565
        %v4613 = vmul.f32 %v4497, %v4569
        %v4614 = vmul.f32 %v4498, %v4573
        %v4615 = vmul.f32 %v4499, %v4577
        %v4616 = vmul.f32 %v4500, %v4581
        %v4617 = vmul.f32 %v4501, %v4585
        %v4618 = vmul.f32 %v4502, %v4525
        %v4619 = vmul.f32 %v4503, %v4529
        %v4620 = vmul.f32 %v4504, %v4533
        %v4621 = vmul.f32 %v4505, %v4537
        %v4622 = vmul.f32 %v4506, %v4541
        %v4623 = vmul.f32 %v4507, %v4545
        %v4624 = vmul.f32 %v4508, %v4549
        %v4625 = vmul.f32 %v4509, %v4553
        %v4626 = vmul.f32 %v4510, %v4557
        %v4627 = vmul.f32 %v4511, %v4561
        %v4628 = vmul.f32 %v4512, %v4565
        %v4629 = vmul.f32 %v4513, %v4569
        %v4630 = vmul.f32 %v4514, %v4573
        %v4631 = vmul.f32 %v4515, %v4577
        %v4632 = vmul.f32 %v4516, %v4581
        %v4633 = vmul.f32 %v4517, %v4585
        %v4634 = vld [vmem:[%s299] sm:$0xff]
        %v4635 = vld [vmem:[%s299 + $0x8] sm:$0xff]
        %v4638 = vlaneseq
        %v4639 = vshrl.u32 %v4638, 7
        %v4640 = vsub.s32 0, %v4639
        %v4641 = vrot.slane %v4634, %v4640
        %v4642 = vlaneseq
        %v4643 = vshrl.u32 %v4642, 7
        %v4644 = vsub.s32 1, %v4643
        %v4645 = vrot.slane %v4634, %v4644
        %v4646 = vlaneseq
        %v4647 = vshrl.u32 %v4646, 7
        %v4648 = vsub.s32 2, %v4647
        %v4649 = vrot.slane %v4634, %v4648
        %v4650 = vlaneseq
        %v4651 = vshrl.u32 %v4650, 7
        %v4652 = vsub.s32 3, %v4651
        %v4653 = vrot.slane %v4634, %v4652
        %v4654 = vlaneseq
        %v4655 = vshrl.u32 %v4654, 7
        %v4656 = vsub.s32 4, %v4655
        %v4657 = vrot.slane %v4634, %v4656
        %v4658 = vlaneseq
        %v4659 = vshrl.u32 %v4658, 7
        %v4660 = vsub.s32 5, %v4659
        %v4661 = vrot.slane %v4634, %v4660
        %v4662 = vlaneseq
        %v4663 = vshrl.u32 %v4662, 7
        %v4664 = vsub.s32 6, %v4663
        %v4665 = vrot.slane %v4634, %v4664
        %v4666 = vlaneseq
        %v4667 = vshrl.u32 %v4666, 7
        %v4668 = vsub.s32 7, %v4667
        %v4669 = vrot.slane %v4634, %v4668
        %v4670 = vlaneseq
        %v4671 = vshrl.u32 %v4670, 7
        %v4672 = vsub.s32 0, %v4671
        %v4673 = vrot.slane %v4635, %v4672
        %v4674 = vlaneseq
        %v4675 = vshrl.u32 %v4674, 7
        %v4676 = vsub.s32 1, %v4675
        %v4677 = vrot.slane %v4635, %v4676
        %v4678 = vlaneseq
        %v4679 = vshrl.u32 %v4678, 7
        %v4680 = vsub.s32 2, %v4679
        %v4681 = vrot.slane %v4635, %v4680
        %v4682 = vlaneseq
        %v4683 = vshrl.u32 %v4682, 7
        %v4684 = vsub.s32 3, %v4683
        %v4685 = vrot.slane %v4635, %v4684
        %v4686 = vlaneseq
        %v4687 = vshrl.u32 %v4686, 7
        %v4688 = vsub.s32 4, %v4687
        %v4689 = vrot.slane %v4635, %v4688
        %v4690 = vlaneseq
        %v4691 = vshrl.u32 %v4690, 7
        %v4692 = vsub.s32 5, %v4691
        %v4693 = vrot.slane %v4635, %v4692
        %v4694 = vlaneseq
        %v4695 = vshrl.u32 %v4694, 7
        %v4696 = vsub.s32 6, %v4695
        %v4697 = vrot.slane %v4635, %v4696
        %v4698 = vlaneseq
        %v4699 = vshrl.u32 %v4698, 7
        %v4700 = vsub.s32 7, %v4699
        %v4701 = vrot.slane %v4635, %v4700
        %v4718 = vadd.f32 %v4602, %v4641
        %v4719 = vadd.f32 %v4603, %v4645
        %v4720 = vadd.f32 %v4604, %v4649
        %v4721 = vadd.f32 %v4605, %v4653
        %v4722 = vadd.f32 %v4606, %v4657
        %v4723 = vadd.f32 %v4607, %v4661
        %v4724 = vadd.f32 %v4608, %v4665
        %v4725 = vadd.f32 %v4609, %v4669
        %v4726 = vadd.f32 %v4610, %v4673
        %v4727 = vadd.f32 %v4611, %v4677
        %v4728 = vadd.f32 %v4612, %v4681
        %v4729 = vadd.f32 %v4613, %v4685
        %v4730 = vadd.f32 %v4614, %v4689
        %v4731 = vadd.f32 %v4615, %v4693
        %v4732 = vadd.f32 %v4616, %v4697
        %v4733 = vadd.f32 %v4617, %v4701
        %v4734 = vadd.f32 %v4618, %v4641
        %v4735 = vadd.f32 %v4619, %v4645
        %v4736 = vadd.f32 %v4620, %v4649
        %v4737 = vadd.f32 %v4621, %v4653
        %v4738 = vadd.f32 %v4622, %v4657
        %v4739 = vadd.f32 %v4623, %v4661
        %v4740 = vadd.f32 %v4624, %v4665
        %v4741 = vadd.f32 %v4625, %v4669
        %v4742 = vadd.f32 %v4626, %v4673
        %v4743 = vadd.f32 %v4627, %v4677
        %v4744 = vadd.f32 %v4628, %v4681
        %v4745 = vadd.f32 %v4629, %v4685
        %v4746 = vadd.f32 %v4630, %v4689
        %v4747 = vadd.f32 %v4631, %v4693
        %v4748 = vadd.f32 %v4632, %v4697
        %v4749 = vadd.f32 %v4633, %v4701
        %v4750 = vmax.f32 %v4718, 0.0
        %v4751 = vmax.f32 %v4719, 0.0
        %v4752 = vmax.f32 %v4720, 0.0
        %v4753 = vmax.f32 %v4721, 0.0
        %v4754 = vmax.f32 %v4722, 0.0
        %v4755 = vmax.f32 %v4723, 0.0
        %v4756 = vmax.f32 %v4724, 0.0
        %v4757 = vmax.f32 %v4725, 0.0
        %v4758 = vmax.f32 %v4726, 0.0
        %v4759 = vmax.f32 %v4727, 0.0
        %v4760 = vmax.f32 %v4728, 0.0
        %v4761 = vmax.f32 %v4729, 0.0
        %v4762 = vmax.f32 %v4730, 0.0
        %v4763 = vmax.f32 %v4731, 0.0
        %v4764 = vmax.f32 %v4732, 0.0
        %v4765 = vmax.f32 %v4733, 0.0
        %v4766 = vmax.f32 %v4734, 0.0
        %v4767 = vmax.f32 %v4735, 0.0
        %v4768 = vmax.f32 %v4736, 0.0
        %v4769 = vmax.f32 %v4737, 0.0
        %v4770 = vmax.f32 %v4738, 0.0
        %v4771 = vmax.f32 %v4739, 0.0
        %v4772 = vmax.f32 %v4740, 0.0
        %v4773 = vmax.f32 %v4741, 0.0
        %v4774 = vmax.f32 %v4742, 0.0
        %v4775 = vmax.f32 %v4743, 0.0
        %v4776 = vmax.f32 %v4744, 0.0
        %v4777 = vmax.f32 %v4745, 0.0
        %v4778 = vmax.f32 %v4746, 0.0
        %v4779 = vmax.f32 %v4747, 0.0
        %v4780 = vmax.f32 %v4748, 0.0
        %v4781 = vmax.f32 %v4749, 0.0
        %v4782 = vpack.c.bf16 %v4766, %v4750
        %v4783 = vpack.c.bf16 %v4767, %v4751
        %v4784 = vpack.c.bf16 %v4768, %v4752
        %v4785 = vpack.c.bf16 %v4769, %v4753
        %v4786 = vpack.c.bf16 %v4770, %v4754
        %v4787 = vpack.c.bf16 %v4771, %v4755
        %v4788 = vpack.c.bf16 %v4772, %v4756
        %v4789 = vpack.c.bf16 %v4773, %v4757
        %v4790 = vpack.c.bf16 %v4774, %v4758
        %v4791 = vpack.c.bf16 %v4775, %v4759
        %v4792 = vpack.c.bf16 %v4776, %v4760
        %v4793 = vpack.c.bf16 %v4777, %v4761
        %v4794 = vpack.c.bf16 %v4778, %v4762
        %v4795 = vpack.c.bf16 %v4779, %v4763
        %v4796 = vpack.c.bf16 %v4780, %v4764
        %v4797 = vpack.c.bf16 %v4781, %v4765
        %v4798 = vld [vmem:[%s308] sm:$0xff]
        %v4799 = vld [vmem:[%s308 + $0x8] sm:$0xff]
        %v4800 = vld [vmem:[%s308 + $0x10] sm:$0xff]
        %v4801 = vld [vmem:[%s308 + $0x18] sm:$0xff]
        %v4802 = vld [vmem:[%s308 + $0x20] sm:$0xff]
        %v4803 = vld [vmem:[%s308 + $0x28] sm:$0xff]
        %v4804 = vld [vmem:[%s308 + $0x30] sm:$0xff]
        %v4805 = vld [vmem:[%s308 + $0x38] sm:$0xff]
        %v4806 = vld [vmem:[%s308 + $0x40] sm:$0xff]
        %v4807 = vld [vmem:[%s308 + $0x48] sm:$0xff]
        %v4808 = vld [vmem:[%s308 + $0x50] sm:$0xff]
        %v4809 = vld [vmem:[%s308 + $0x58] sm:$0xff]
        %v4810 = vld [vmem:[%s308 + $0x60] sm:$0xff]
        %v4811 = vld [vmem:[%s308 + $0x68] sm:$0xff]
        %v4812 = vld [vmem:[%s308 + $0x70] sm:$0xff]
        %v4813 = vld [vmem:[%s308 + $0x78] sm:$0xff]
        %v4814 = vld [vmem:[%s308 + $0x80] sm:$0xff]
        %v4815 = vld [vmem:[%s308 + $0x88] sm:$0xff]
        %v4816 = vld [vmem:[%s308 + $0x90] sm:$0xff]
        %v4817 = vld [vmem:[%s308 + $0x98] sm:$0xff]
        %v4818 = vld [vmem:[%s308 + $0xa0] sm:$0xff]
        %v4819 = vld [vmem:[%s308 + $0xa8] sm:$0xff]
        %v4820 = vld [vmem:[%s308 + $0xb0] sm:$0xff]
        %v4821 = vld [vmem:[%s308 + $0xb8] sm:$0xff]
        %v4822 = vld [vmem:[%s308 + $0xc0] sm:$0xff]
        %v4823 = vld [vmem:[%s308 + $0xc8] sm:$0xff]
        %v4824 = vld [vmem:[%s308 + $0xd0] sm:$0xff]
        %v4825 = vld [vmem:[%s308 + $0xd8] sm:$0xff]
        %v4826 = vld [vmem:[%s308 + $0xe0] sm:$0xff]
        %v4827 = vld [vmem:[%s308 + $0xe8] sm:$0xff]
        %v4828 = vld [vmem:[%s308 + $0xf0] sm:$0xff]
        %v4829 = vld [vmem:[%s308 + $0xf8] sm:$0xff]
        %v4830 = vld [vmem:[%s308 + $0x100] sm:$0xff]
        %v4831 = vld [vmem:[%s308 + $0x108] sm:$0xff]
        %v4832 = vld [vmem:[%s308 + $0x110] sm:$0xff]
        %v4833 = vld [vmem:[%s308 + $0x118] sm:$0xff]
        %v4834 = vld [vmem:[%s308 + $0x120] sm:$0xff]
        %v4835 = vld [vmem:[%s308 + $0x128] sm:$0xff]
        %v4836 = vld [vmem:[%s308 + $0x130] sm:$0xff]
        %v4837 = vld [vmem:[%s308 + $0x138] sm:$0xff]
        %v4838 = vld [vmem:[%s308 + $0x140] sm:$0xff]
        %v4839 = vld [vmem:[%s308 + $0x148] sm:$0xff]
        %v4840 = vld [vmem:[%s308 + $0x150] sm:$0xff]
        %v4841 = vld [vmem:[%s308 + $0x158] sm:$0xff]
        %v4842 = vld [vmem:[%s308 + $0x160] sm:$0xff]
        %v4843 = vld [vmem:[%s308 + $0x168] sm:$0xff]
        %v4844 = vld [vmem:[%s308 + $0x170] sm:$0xff]
        %v4845 = vld [vmem:[%s308 + $0x178] sm:$0xff]
        %v4846 = vld [vmem:[%s308 + $0x180] sm:$0xff]
        %v4847 = vld [vmem:[%s308 + $0x188] sm:$0xff]
        %v4848 = vld [vmem:[%s308 + $0x190] sm:$0xff]
        %v4849 = vld [vmem:[%s308 + $0x198] sm:$0xff]
        %v4850 = vld [vmem:[%s308 + $0x1a0] sm:$0xff]
        %v4851 = vld [vmem:[%s308 + $0x1a8] sm:$0xff]
        %v4852 = vld [vmem:[%s308 + $0x1b0] sm:$0xff]
        %v4853 = vld [vmem:[%s308 + $0x1b8] sm:$0xff]
        %v4854 = vld [vmem:[%s308 + $0x1c0] sm:$0xff]
        %v4855 = vld [vmem:[%s308 + $0x1c8] sm:$0xff]
        %v4856 = vld [vmem:[%s308 + $0x1d0] sm:$0xff]
        %v4857 = vld [vmem:[%s308 + $0x1d8] sm:$0xff]
        %v4858 = vld [vmem:[%s308 + $0x1e0] sm:$0xff]
        %v4859 = vld [vmem:[%s308 + $0x1e8] sm:$0xff]
        %v4860 = vld [vmem:[%s308 + $0x1f0] sm:$0xff]
        %v4861 = vld [vmem:[%s308 + $0x1f8] sm:$0xff]
        %v4862 = vld [vmem:[%s308 + $0x200] sm:$0xff]
        %v4863 = vld [vmem:[%s308 + $0x208] sm:$0xff]
        %v4864 = vld [vmem:[%s308 + $0x210] sm:$0xff]
        %v4865 = vld [vmem:[%s308 + $0x218] sm:$0xff]
        %v4866 = vld [vmem:[%s308 + $0x220] sm:$0xff]
        %v4867 = vld [vmem:[%s308 + $0x228] sm:$0xff]
        %v4868 = vld [vmem:[%s308 + $0x230] sm:$0xff]
        %v4869 = vld [vmem:[%s308 + $0x238] sm:$0xff]
        %v4870 = vld [vmem:[%s308 + $0x240] sm:$0xff]
        %v4871 = vld [vmem:[%s308 + $0x248] sm:$0xff]
        %v4872 = vld [vmem:[%s308 + $0x250] sm:$0xff]
        %v4873 = vld [vmem:[%s308 + $0x258] sm:$0xff]
        %v4874 = vld [vmem:[%s308 + $0x260] sm:$0xff]
        %v4875 = vld [vmem:[%s308 + $0x268] sm:$0xff]
        %v4876 = vld [vmem:[%s308 + $0x270] sm:$0xff]
        %v4877 = vld [vmem:[%s308 + $0x278] sm:$0xff]
        %v4878 = vld [vmem:[%s308 + $0x280] sm:$0xff]
        %v4879 = vld [vmem:[%s308 + $0x288] sm:$0xff]
        %v4880 = vld [vmem:[%s308 + $0x290] sm:$0xff]
        %v4881 = vld [vmem:[%s308 + $0x298] sm:$0xff]
        %v4882 = vld [vmem:[%s308 + $0x2a0] sm:$0xff]
        %v4883 = vld [vmem:[%s308 + $0x2a8] sm:$0xff]
        %v4884 = vld [vmem:[%s308 + $0x2b0] sm:$0xff]
        %v4885 = vld [vmem:[%s308 + $0x2b8] sm:$0xff]
        %v4886 = vld [vmem:[%s308 + $0x2c0] sm:$0xff]
        %v4887 = vld [vmem:[%s308 + $0x2c8] sm:$0xff]
        %v4888 = vld [vmem:[%s308 + $0x2d0] sm:$0xff]
        %v4889 = vld [vmem:[%s308 + $0x2d8] sm:$0xff]
        %v4890 = vld [vmem:[%s308 + $0x2e0] sm:$0xff]
        %v4891 = vld [vmem:[%s308 + $0x2e8] sm:$0xff]
        %v4892 = vld [vmem:[%s308 + $0x2f0] sm:$0xff]
        %v4893 = vld [vmem:[%s308 + $0x2f8] sm:$0xff]
        %v4894 = vld [vmem:[%s308 + $0x300] sm:$0xff]
        %v4895 = vld [vmem:[%s308 + $0x308] sm:$0xff]
        %v4896 = vld [vmem:[%s308 + $0x310] sm:$0xff]
        %v4897 = vld [vmem:[%s308 + $0x318] sm:$0xff]
        %v4898 = vld [vmem:[%s308 + $0x320] sm:$0xff]
        %v4899 = vld [vmem:[%s308 + $0x328] sm:$0xff]
        %v4900 = vld [vmem:[%s308 + $0x330] sm:$0xff]
        %v4901 = vld [vmem:[%s308 + $0x338] sm:$0xff]
        %v4902 = vld [vmem:[%s308 + $0x340] sm:$0xff]
        %v4903 = vld [vmem:[%s308 + $0x348] sm:$0xff]
        %v4904 = vld [vmem:[%s308 + $0x350] sm:$0xff]
        %v4905 = vld [vmem:[%s308 + $0x358] sm:$0xff]
        %v4906 = vld [vmem:[%s308 + $0x360] sm:$0xff]
        %v4907 = vld [vmem:[%s308 + $0x368] sm:$0xff]
        %v4908 = vld [vmem:[%s308 + $0x370] sm:$0xff]
        %v4909 = vld [vmem:[%s308 + $0x378] sm:$0xff]
        %v4910 = vld [vmem:[%s308 + $0x380] sm:$0xff]
        %v4911 = vld [vmem:[%s308 + $0x388] sm:$0xff]
        %v4912 = vld [vmem:[%s308 + $0x390] sm:$0xff]
        %v4913 = vld [vmem:[%s308 + $0x398] sm:$0xff]
        %v4914 = vld [vmem:[%s308 + $0x3a0] sm:$0xff]
        %v4915 = vld [vmem:[%s308 + $0x3a8] sm:$0xff]
        %v4916 = vld [vmem:[%s308 + $0x3b0] sm:$0xff]
        %v4917 = vld [vmem:[%s308 + $0x3b8] sm:$0xff]
        %v4918 = vld [vmem:[%s308 + $0x3c0] sm:$0xff]
        %v4919 = vld [vmem:[%s308 + $0x3c8] sm:$0xff]
        %v4920 = vld [vmem:[%s308 + $0x3d0] sm:$0xff]
        %v4921 = vld [vmem:[%s308 + $0x3d8] sm:$0xff]
        %v4922 = vld [vmem:[%s308 + $0x3e0] sm:$0xff]
        %v4923 = vld [vmem:[%s308 + $0x3e8] sm:$0xff]
        %v4924 = vld [vmem:[%s308 + $0x3f0] sm:$0xff]
        %v4925 = vld [vmem:[%s308 + $0x3f8] sm:$0xff]
        %v4926 = vld [vmem:[%s308 + $0x400] sm:$0xff]
        %v4927 = vld [vmem:[%s308 + $0x408] sm:$0xff]
        %v4928 = vld [vmem:[%s308 + $0x410] sm:$0xff]
        %v4929 = vld [vmem:[%s308 + $0x418] sm:$0xff]
        %v4930 = vld [vmem:[%s308 + $0x420] sm:$0xff]
        %v4931 = vld [vmem:[%s308 + $0x428] sm:$0xff]
        %v4932 = vld [vmem:[%s308 + $0x430] sm:$0xff]
        %v4933 = vld [vmem:[%s308 + $0x438] sm:$0xff]
        %v4934 = vld [vmem:[%s308 + $0x440] sm:$0xff]
        %v4935 = vld [vmem:[%s308 + $0x448] sm:$0xff]
        %v4936 = vld [vmem:[%s308 + $0x450] sm:$0xff]
        %v4937 = vld [vmem:[%s308 + $0x458] sm:$0xff]
        %v4938 = vld [vmem:[%s308 + $0x460] sm:$0xff]
        %v4939 = vld [vmem:[%s308 + $0x468] sm:$0xff]
        %v4940 = vld [vmem:[%s308 + $0x470] sm:$0xff]
        %v4941 = vld [vmem:[%s308 + $0x478] sm:$0xff]
        %v4942 = vld [vmem:[%s308 + $0x480] sm:$0xff]
        %v4943 = vld [vmem:[%s308 + $0x488] sm:$0xff]
        %v4944 = vld [vmem:[%s308 + $0x490] sm:$0xff]
        %v4945 = vld [vmem:[%s308 + $0x498] sm:$0xff]
        %v4946 = vld [vmem:[%s308 + $0x4a0] sm:$0xff]
        %v4947 = vld [vmem:[%s308 + $0x4a8] sm:$0xff]
        %v4948 = vld [vmem:[%s308 + $0x4b0] sm:$0xff]
        %v4949 = vld [vmem:[%s308 + $0x4b8] sm:$0xff]
        %v4950 = vld [vmem:[%s308 + $0x4c0] sm:$0xff]
        %v4951 = vld [vmem:[%s308 + $0x4c8] sm:$0xff]
        %v4952 = vld [vmem:[%s308 + $0x4d0] sm:$0xff]
        %v4953 = vld [vmem:[%s308 + $0x4d8] sm:$0xff]
        %v4954 = vld [vmem:[%s308 + $0x4e0] sm:$0xff]
        %v4955 = vld [vmem:[%s308 + $0x4e8] sm:$0xff]
        %v4956 = vld [vmem:[%s308 + $0x4f0] sm:$0xff]
        %v4957 = vld [vmem:[%s308 + $0x4f8] sm:$0xff]
        %v4958 = vld [vmem:[%s308 + $0x500] sm:$0xff]
        %v4959 = vld [vmem:[%s308 + $0x508] sm:$0xff]
        %v4960 = vld [vmem:[%s308 + $0x510] sm:$0xff]
        %v4961 = vld [vmem:[%s308 + $0x518] sm:$0xff]
        %v4962 = vld [vmem:[%s308 + $0x520] sm:$0xff]
        %v4963 = vld [vmem:[%s308 + $0x528] sm:$0xff]
        %v4964 = vld [vmem:[%s308 + $0x530] sm:$0xff]
        %v4965 = vld [vmem:[%s308 + $0x538] sm:$0xff]
        %v4966 = vld [vmem:[%s308 + $0x540] sm:$0xff]
        %v4967 = vld [vmem:[%s308 + $0x548] sm:$0xff]
        %v4968 = vld [vmem:[%s308 + $0x550] sm:$0xff]
        %v4969 = vld [vmem:[%s308 + $0x558] sm:$0xff]
        %v4970 = vld [vmem:[%s308 + $0x560] sm:$0xff]
        %v4971 = vld [vmem:[%s308 + $0x568] sm:$0xff]
        %v4972 = vld [vmem:[%s308 + $0x570] sm:$0xff]
        %v4973 = vld [vmem:[%s308 + $0x578] sm:$0xff]
        %v4974 = vld [vmem:[%s308 + $0x580] sm:$0xff]
        %v4975 = vld [vmem:[%s308 + $0x588] sm:$0xff]
        %v4976 = vld [vmem:[%s308 + $0x590] sm:$0xff]
        %v4977 = vld [vmem:[%s308 + $0x598] sm:$0xff]
        %v4978 = vld [vmem:[%s308 + $0x5a0] sm:$0xff]
        %v4979 = vld [vmem:[%s308 + $0x5a8] sm:$0xff]
        %v4980 = vld [vmem:[%s308 + $0x5b0] sm:$0xff]
        %v4981 = vld [vmem:[%s308 + $0x5b8] sm:$0xff]
        %v4982 = vld [vmem:[%s308 + $0x5c0] sm:$0xff]
        %v4983 = vld [vmem:[%s308 + $0x5c8] sm:$0xff]
        %v4984 = vld [vmem:[%s308 + $0x5d0] sm:$0xff]
        %v4985 = vld [vmem:[%s308 + $0x5d8] sm:$0xff]
        %v4986 = vld [vmem:[%s308 + $0x5e0] sm:$0xff]
        %v4987 = vld [vmem:[%s308 + $0x5e8] sm:$0xff]
        %v4988 = vld [vmem:[%s308 + $0x5f0] sm:$0xff]
        %v4989 = vld [vmem:[%s308 + $0x5f8] sm:$0xff]
        %v4990 = vld [vmem:[%s308 + $0x600] sm:$0xff]
        %v4991 = vld [vmem:[%s308 + $0x608] sm:$0xff]
        %v4992 = vld [vmem:[%s308 + $0x610] sm:$0xff]
        %v4993 = vld [vmem:[%s308 + $0x618] sm:$0xff]
        %v4994 = vld [vmem:[%s308 + $0x620] sm:$0xff]
        %v4995 = vld [vmem:[%s308 + $0x628] sm:$0xff]
        %v4996 = vld [vmem:[%s308 + $0x630] sm:$0xff]
        %v4997 = vld [vmem:[%s308 + $0x638] sm:$0xff]
        %v4998 = vld [vmem:[%s308 + $0x640] sm:$0xff]
        %v4999 = vld [vmem:[%s308 + $0x648] sm:$0xff]
        %v5000 = vld [vmem:[%s308 + $0x650] sm:$0xff]
        %v5001 = vld [vmem:[%s308 + $0x658] sm:$0xff]
        %v5002 = vld [vmem:[%s308 + $0x660] sm:$0xff]
        %v5003 = vld [vmem:[%s308 + $0x668] sm:$0xff]
        %v5004 = vld [vmem:[%s308 + $0x670] sm:$0xff]
        %v5005 = vld [vmem:[%s308 + $0x678] sm:$0xff]
        %v5006 = vld [vmem:[%s308 + $0x680] sm:$0xff]
        %v5007 = vld [vmem:[%s308 + $0x688] sm:$0xff]
        %v5008 = vld [vmem:[%s308 + $0x690] sm:$0xff]
        %v5009 = vld [vmem:[%s308 + $0x698] sm:$0xff]
        %v5010 = vld [vmem:[%s308 + $0x6a0] sm:$0xff]
        %v5011 = vld [vmem:[%s308 + $0x6a8] sm:$0xff]
        %v5012 = vld [vmem:[%s308 + $0x6b0] sm:$0xff]
        %v5013 = vld [vmem:[%s308 + $0x6b8] sm:$0xff]
        %v5014 = vld [vmem:[%s308 + $0x6c0] sm:$0xff]
        %v5015 = vld [vmem:[%s308 + $0x6c8] sm:$0xff]
        %v5016 = vld [vmem:[%s308 + $0x6d0] sm:$0xff]
        %v5017 = vld [vmem:[%s308 + $0x6d8] sm:$0xff]
        %v5018 = vld [vmem:[%s308 + $0x6e0] sm:$0xff]
        %v5019 = vld [vmem:[%s308 + $0x6e8] sm:$0xff]
        %v5020 = vld [vmem:[%s308 + $0x6f0] sm:$0xff]
        %v5021 = vld [vmem:[%s308 + $0x6f8] sm:$0xff]
        %v5022 = vld [vmem:[%s308 + $0x700] sm:$0xff]
        %v5023 = vld [vmem:[%s308 + $0x708] sm:$0xff]
        %v5024 = vld [vmem:[%s308 + $0x710] sm:$0xff]
        %v5025 = vld [vmem:[%s308 + $0x718] sm:$0xff]
        %v5026 = vld [vmem:[%s308 + $0x720] sm:$0xff]
        %v5027 = vld [vmem:[%s308 + $0x728] sm:$0xff]
        %v5028 = vld [vmem:[%s308 + $0x730] sm:$0xff]
        %v5029 = vld [vmem:[%s308 + $0x738] sm:$0xff]
        %v5030 = vld [vmem:[%s308 + $0x740] sm:$0xff]
        %v5031 = vld [vmem:[%s308 + $0x748] sm:$0xff]
        %v5032 = vld [vmem:[%s308 + $0x750] sm:$0xff]
        %v5033 = vld [vmem:[%s308 + $0x758] sm:$0xff]
        %v5034 = vld [vmem:[%s308 + $0x760] sm:$0xff]
        %v5035 = vld [vmem:[%s308 + $0x768] sm:$0xff]
        %v5036 = vld [vmem:[%s308 + $0x770] sm:$0xff]
        %v5037 = vld [vmem:[%s308 + $0x778] sm:$0xff]
        %v5038 = vld [vmem:[%s308 + $0x780] sm:$0xff]
        %v5039 = vld [vmem:[%s308 + $0x788] sm:$0xff]
        %v5040 = vld [vmem:[%s308 + $0x790] sm:$0xff]
        %v5041 = vld [vmem:[%s308 + $0x798] sm:$0xff]
        %v5042 = vld [vmem:[%s308 + $0x7a0] sm:$0xff]
        %v5043 = vld [vmem:[%s308 + $0x7a8] sm:$0xff]
        %v5044 = vld [vmem:[%s308 + $0x7b0] sm:$0xff]
        %v5045 = vld [vmem:[%s308 + $0x7b8] sm:$0xff]
        %v5046 = vld [vmem:[%s308 + $0x7c0] sm:$0xff]
        %v5047 = vld [vmem:[%s308 + $0x7c8] sm:$0xff]
        %v5048 = vld [vmem:[%s308 + $0x7d0] sm:$0xff]
        %v5049 = vld [vmem:[%s308 + $0x7d8] sm:$0xff]
        %v5050 = vld [vmem:[%s308 + $0x7e0] sm:$0xff]
        %v5051 = vld [vmem:[%s308 + $0x7e8] sm:$0xff]
        %v5052 = vld [vmem:[%s308 + $0x7f0] sm:$0xff]
        %v5053 = vld [vmem:[%s308 + $0x7f8] sm:$0xff]
        %v5310 = vunpack.c.l.b16 %v4798
        %v5311 = vunpack.c.h.b16 %v4798
        %v5312 = vunpack.c.l.b16 %v4799
        %v5313 = vunpack.c.h.b16 %v4799
        %v5314 = vunpack.c.l.b16 %v4800
        %v5315 = vunpack.c.h.b16 %v4800
        %v5316 = vunpack.c.l.b16 %v4801
        %v5317 = vunpack.c.h.b16 %v4801
        %v5318 = vunpack.c.l.b16 %v4802
        %v5319 = vunpack.c.h.b16 %v4802
        %v5320 = vunpack.c.l.b16 %v4803
        %v5321 = vunpack.c.h.b16 %v4803
        %v5322 = vunpack.c.l.b16 %v4804
        %v5323 = vunpack.c.h.b16 %v4804
        %v5324 = vunpack.c.l.b16 %v4805
        %v5325 = vunpack.c.h.b16 %v4805
        %v5326 = vunpack.c.l.b16 %v4806
        %v5327 = vunpack.c.h.b16 %v4806
        %v5328 = vunpack.c.l.b16 %v4807
        %v5329 = vunpack.c.h.b16 %v4807
        %v5330 = vunpack.c.l.b16 %v4808
        %v5331 = vunpack.c.h.b16 %v4808
        %v5332 = vunpack.c.l.b16 %v4809
        %v5333 = vunpack.c.h.b16 %v4809
        %v5334 = vunpack.c.l.b16 %v4810
        %v5335 = vunpack.c.h.b16 %v4810
        %v5336 = vunpack.c.l.b16 %v4811
        %v5337 = vunpack.c.h.b16 %v4811
        %v5338 = vunpack.c.l.b16 %v4812
        %v5339 = vunpack.c.h.b16 %v4812
        %v5340 = vunpack.c.l.b16 %v4813
        %v5341 = vunpack.c.h.b16 %v4813
        %v5342 = vunpack.c.l.b16 %v4814
        %v5343 = vunpack.c.h.b16 %v4814
        %v5344 = vunpack.c.l.b16 %v4815
        %v5345 = vunpack.c.h.b16 %v4815
        %v5346 = vunpack.c.l.b16 %v4816
        %v5347 = vunpack.c.h.b16 %v4816
        %v5348 = vunpack.c.l.b16 %v4817
        %v5349 = vunpack.c.h.b16 %v4817
        %v5350 = vunpack.c.l.b16 %v4818
        %v5351 = vunpack.c.h.b16 %v4818
        %v5352 = vunpack.c.l.b16 %v4819
        %v5353 = vunpack.c.h.b16 %v4819
        %v5354 = vunpack.c.l.b16 %v4820
        %v5355 = vunpack.c.h.b16 %v4820
        %v5356 = vunpack.c.l.b16 %v4821
        %v5357 = vunpack.c.h.b16 %v4821
        %v5358 = vunpack.c.l.b16 %v4822
        %v5359 = vunpack.c.h.b16 %v4822
        %v5360 = vunpack.c.l.b16 %v4823
        %v5361 = vunpack.c.h.b16 %v4823
        %v5362 = vunpack.c.l.b16 %v4824
        %v5363 = vunpack.c.h.b16 %v4824
        %v5364 = vunpack.c.l.b16 %v4825
        %v5365 = vunpack.c.h.b16 %v4825
        %v5366 = vunpack.c.l.b16 %v4826
        %v5367 = vunpack.c.h.b16 %v4826
        %v5368 = vunpack.c.l.b16 %v4827
        %v5369 = vunpack.c.h.b16 %v4827
        %v5370 = vunpack.c.l.b16 %v4828
        %v5371 = vunpack.c.h.b16 %v4828
        %v5372 = vunpack.c.l.b16 %v4829
        %v5373 = vunpack.c.h.b16 %v4829
        %v5374 = vunpack.c.l.b16 %v4830
        %v5375 = vunpack.c.h.b16 %v4830
        %v5376 = vunpack.c.l.b16 %v4831
        %v5377 = vunpack.c.h.b16 %v4831
        %v5378 = vunpack.c.l.b16 %v4832
        %v5379 = vunpack.c.h.b16 %v4832
        %v5380 = vunpack.c.l.b16 %v4833
        %v5381 = vunpack.c.h.b16 %v4833
        %v5382 = vunpack.c.l.b16 %v4834
        %v5383 = vunpack.c.h.b16 %v4834
        %v5384 = vunpack.c.l.b16 %v4835
        %v5385 = vunpack.c.h.b16 %v4835
        %v5386 = vunpack.c.l.b16 %v4836
        %v5387 = vunpack.c.h.b16 %v4836
        %v5388 = vunpack.c.l.b16 %v4837
        %v5389 = vunpack.c.h.b16 %v4837
        %v5390 = vunpack.c.l.b16 %v4838
        %v5391 = vunpack.c.h.b16 %v4838
        %v5392 = vunpack.c.l.b16 %v4839
        %v5393 = vunpack.c.h.b16 %v4839
        %v5394 = vunpack.c.l.b16 %v4840
        %v5395 = vunpack.c.h.b16 %v4840
        %v5396 = vunpack.c.l.b16 %v4841
        %v5397 = vunpack.c.h.b16 %v4841
        %v5398 = vunpack.c.l.b16 %v4842
        %v5399 = vunpack.c.h.b16 %v4842
        %v5400 = vunpack.c.l.b16 %v4843
        %v5401 = vunpack.c.h.b16 %v4843
        %v5402 = vunpack.c.l.b16 %v4844
        %v5403 = vunpack.c.h.b16 %v4844
        %v5404 = vunpack.c.l.b16 %v4845
        %v5405 = vunpack.c.h.b16 %v4845
        %v5406 = vunpack.c.l.b16 %v4846
        %v5407 = vunpack.c.h.b16 %v4846
        %v5408 = vunpack.c.l.b16 %v4847
        %v5409 = vunpack.c.h.b16 %v4847
        %v5410 = vunpack.c.l.b16 %v4848
        %v5411 = vunpack.c.h.b16 %v4848
        %v5412 = vunpack.c.l.b16 %v4849
        %v5413 = vunpack.c.h.b16 %v4849
        %v5414 = vunpack.c.l.b16 %v4850
        %v5415 = vunpack.c.h.b16 %v4850
        %v5416 = vunpack.c.l.b16 %v4851
        %v5417 = vunpack.c.h.b16 %v4851
        %v5418 = vunpack.c.l.b16 %v4852
        %v5419 = vunpack.c.h.b16 %v4852
        %v5420 = vunpack.c.l.b16 %v4853
        %v5421 = vunpack.c.h.b16 %v4853
        %v5422 = vunpack.c.l.b16 %v4854
        %v5423 = vunpack.c.h.b16 %v4854
        %v5424 = vunpack.c.l.b16 %v4855
        %v5425 = vunpack.c.h.b16 %v4855
        %v5426 = vunpack.c.l.b16 %v4856
        %v5427 = vunpack.c.h.b16 %v4856
        %v5428 = vunpack.c.l.b16 %v4857
        %v5429 = vunpack.c.h.b16 %v4857
        %v5430 = vunpack.c.l.b16 %v4858
        %v5431 = vunpack.c.h.b16 %v4858
        %v5432 = vunpack.c.l.b16 %v4859
        %v5433 = vunpack.c.h.b16 %v4859
        %v5434 = vunpack.c.l.b16 %v4860
        %v5435 = vunpack.c.h.b16 %v4860
        %v5436 = vunpack.c.l.b16 %v4861
        %v5437 = vunpack.c.h.b16 %v4861
        %v5438 = vunpack.c.l.b16 %v4862
        %v5439 = vunpack.c.h.b16 %v4862
        %v5440 = vunpack.c.l.b16 %v4863
        %v5441 = vunpack.c.h.b16 %v4863
        %v5442 = vunpack.c.l.b16 %v4864
        %v5443 = vunpack.c.h.b16 %v4864
        %v5444 = vunpack.c.l.b16 %v4865
        %v5445 = vunpack.c.h.b16 %v4865
        %v5446 = vunpack.c.l.b16 %v4866
        %v5447 = vunpack.c.h.b16 %v4866
        %v5448 = vunpack.c.l.b16 %v4867
        %v5449 = vunpack.c.h.b16 %v4867
        %v5450 = vunpack.c.l.b16 %v4868
        %v5451 = vunpack.c.h.b16 %v4868
        %v5452 = vunpack.c.l.b16 %v4869
        %v5453 = vunpack.c.h.b16 %v4869
        %v5454 = vunpack.c.l.b16 %v4870
        %v5455 = vunpack.c.h.b16 %v4870
        %v5456 = vunpack.c.l.b16 %v4871
        %v5457 = vunpack.c.h.b16 %v4871
        %v5458 = vunpack.c.l.b16 %v4872
        %v5459 = vunpack.c.h.b16 %v4872
        %v5460 = vunpack.c.l.b16 %v4873
        %v5461 = vunpack.c.h.b16 %v4873
        %v5462 = vunpack.c.l.b16 %v4874
        %v5463 = vunpack.c.h.b16 %v4874
        %v5464 = vunpack.c.l.b16 %v4875
        %v5465 = vunpack.c.h.b16 %v4875
        %v5466 = vunpack.c.l.b16 %v4876
        %v5467 = vunpack.c.h.b16 %v4876
        %v5468 = vunpack.c.l.b16 %v4877
        %v5469 = vunpack.c.h.b16 %v4877
        %v5470 = vunpack.c.l.b16 %v4878
        %v5471 = vunpack.c.h.b16 %v4878
        %v5472 = vunpack.c.l.b16 %v4879
        %v5473 = vunpack.c.h.b16 %v4879
        %v5474 = vunpack.c.l.b16 %v4880
        %v5475 = vunpack.c.h.b16 %v4880
        %v5476 = vunpack.c.l.b16 %v4881
        %v5477 = vunpack.c.h.b16 %v4881
        %v5478 = vunpack.c.l.b16 %v4882
        %v5479 = vunpack.c.h.b16 %v4882
        %v5480 = vunpack.c.l.b16 %v4883
        %v5481 = vunpack.c.h.b16 %v4883
        %v5482 = vunpack.c.l.b16 %v4884
        %v5483 = vunpack.c.h.b16 %v4884
        %v5484 = vunpack.c.l.b16 %v4885
        %v5485 = vunpack.c.h.b16 %v4885
        %v5486 = vunpack.c.l.b16 %v4886
        %v5487 = vunpack.c.h.b16 %v4886
        %v5488 = vunpack.c.l.b16 %v4887
        %v5489 = vunpack.c.h.b16 %v4887
        %v5490 = vunpack.c.l.b16 %v4888
        %v5491 = vunpack.c.h.b16 %v4888
        %v5492 = vunpack.c.l.b16 %v4889
        %v5493 = vunpack.c.h.b16 %v4889
        %v5494 = vunpack.c.l.b16 %v4890
        %v5495 = vunpack.c.h.b16 %v4890
        %v5496 = vunpack.c.l.b16 %v4891
        %v5497 = vunpack.c.h.b16 %v4891
        %v5498 = vunpack.c.l.b16 %v4892
        %v5499 = vunpack.c.h.b16 %v4892
        %v5500 = vunpack.c.l.b16 %v4893
        %v5501 = vunpack.c.h.b16 %v4893
        %v5502 = vunpack.c.l.b16 %v4894
        %v5503 = vunpack.c.h.b16 %v4894
        %v5504 = vunpack.c.l.b16 %v4895
        %v5505 = vunpack.c.h.b16 %v4895
        %v5506 = vunpack.c.l.b16 %v4896
        %v5507 = vunpack.c.h.b16 %v4896
        %v5508 = vunpack.c.l.b16 %v4897
        %v5509 = vunpack.c.h.b16 %v4897
        %v5510 = vunpack.c.l.b16 %v4898
        %v5511 = vunpack.c.h.b16 %v4898
        %v5512 = vunpack.c.l.b16 %v4899
        %v5513 = vunpack.c.h.b16 %v4899
        %v5514 = vunpack.c.l.b16 %v4900
        %v5515 = vunpack.c.h.b16 %v4900
        %v5516 = vunpack.c.l.b16 %v4901
        %v5517 = vunpack.c.h.b16 %v4901
        %v5518 = vunpack.c.l.b16 %v4902
        %v5519 = vunpack.c.h.b16 %v4902
        %v5520 = vunpack.c.l.b16 %v4903
        %v5521 = vunpack.c.h.b16 %v4903
        %v5522 = vunpack.c.l.b16 %v4904
        %v5523 = vunpack.c.h.b16 %v4904
        %v5524 = vunpack.c.l.b16 %v4905
        %v5525 = vunpack.c.h.b16 %v4905
        %v5526 = vunpack.c.l.b16 %v4906
        %v5527 = vunpack.c.h.b16 %v4906
        %v5528 = vunpack.c.l.b16 %v4907
        %v5529 = vunpack.c.h.b16 %v4907
        %v5530 = vunpack.c.l.b16 %v4908
        %v5531 = vunpack.c.h.b16 %v4908
        %v5532 = vunpack.c.l.b16 %v4909
        %v5533 = vunpack.c.h.b16 %v4909
        %v5534 = vunpack.c.l.b16 %v4910
        %v5535 = vunpack.c.h.b16 %v4910
        %v5536 = vunpack.c.l.b16 %v4911
        %v5537 = vunpack.c.h.b16 %v4911
        %v5538 = vunpack.c.l.b16 %v4912
        %v5539 = vunpack.c.h.b16 %v4912
        %v5540 = vunpack.c.l.b16 %v4913
        %v5541 = vunpack.c.h.b16 %v4913
        %v5542 = vunpack.c.l.b16 %v4914
        %v5543 = vunpack.c.h.b16 %v4914
        %v5544 = vunpack.c.l.b16 %v4915
        %v5545 = vunpack.c.h.b16 %v4915
        %v5546 = vunpack.c.l.b16 %v4916
        %v5547 = vunpack.c.h.b16 %v4916
        %v5548 = vunpack.c.l.b16 %v4917
        %v5549 = vunpack.c.h.b16 %v4917
        %v5550 = vunpack.c.l.b16 %v4918
        %v5551 = vunpack.c.h.b16 %v4918
        %v5552 = vunpack.c.l.b16 %v4919
        %v5553 = vunpack.c.h.b16 %v4919
        %v5554 = vunpack.c.l.b16 %v4920
        %v5555 = vunpack.c.h.b16 %v4920
        %v5556 = vunpack.c.l.b16 %v4921
        %v5557 = vunpack.c.h.b16 %v4921
        %v5558 = vunpack.c.l.b16 %v4922
        %v5559 = vunpack.c.h.b16 %v4922
        %v5560 = vunpack.c.l.b16 %v4923
        %v5561 = vunpack.c.h.b16 %v4923
        %v5562 = vunpack.c.l.b16 %v4924
        %v5563 = vunpack.c.h.b16 %v4924
        %v5564 = vunpack.c.l.b16 %v4925
        %v5565 = vunpack.c.h.b16 %v4925
        %v5566 = vunpack.c.l.b16 %v4926
        %v5567 = vunpack.c.h.b16 %v4926
        %v5568 = vunpack.c.l.b16 %v4927
        %v5569 = vunpack.c.h.b16 %v4927
        %v5570 = vunpack.c.l.b16 %v4928
        %v5571 = vunpack.c.h.b16 %v4928
        %v5572 = vunpack.c.l.b16 %v4929
        %v5573 = vunpack.c.h.b16 %v4929
        %v5574 = vunpack.c.l.b16 %v4930
        %v5575 = vunpack.c.h.b16 %v4930
        %v5576 = vunpack.c.l.b16 %v4931
        %v5577 = vunpack.c.h.b16 %v4931
        %v5578 = vunpack.c.l.b16 %v4932
        %v5579 = vunpack.c.h.b16 %v4932
        %v5580 = vunpack.c.l.b16 %v4933
        %v5581 = vunpack.c.h.b16 %v4933
        %v5582 = vunpack.c.l.b16 %v4934
        %v5583 = vunpack.c.h.b16 %v4934
        %v5584 = vunpack.c.l.b16 %v4935
        %v5585 = vunpack.c.h.b16 %v4935
        %v5586 = vunpack.c.l.b16 %v4936
        %v5587 = vunpack.c.h.b16 %v4936
        %v5588 = vunpack.c.l.b16 %v4937
        %v5589 = vunpack.c.h.b16 %v4937
        %v5590 = vunpack.c.l.b16 %v4938
        %v5591 = vunpack.c.h.b16 %v4938
        %v5592 = vunpack.c.l.b16 %v4939
        %v5593 = vunpack.c.h.b16 %v4939
        %v5594 = vunpack.c.l.b16 %v4940
        %v5595 = vunpack.c.h.b16 %v4940
        %v5596 = vunpack.c.l.b16 %v4941
        %v5597 = vunpack.c.h.b16 %v4941
        %v5598 = vunpack.c.l.b16 %v4942
        %v5599 = vunpack.c.h.b16 %v4942
        %v5600 = vunpack.c.l.b16 %v4943
        %v5601 = vunpack.c.h.b16 %v4943
        %v5602 = vunpack.c.l.b16 %v4944
        %v5603 = vunpack.c.h.b16 %v4944
        %v5604 = vunpack.c.l.b16 %v4945
        %v5605 = vunpack.c.h.b16 %v4945
        %v5606 = vunpack.c.l.b16 %v4946
        %v5607 = vunpack.c.h.b16 %v4946
        %v5608 = vunpack.c.l.b16 %v4947
        %v5609 = vunpack.c.h.b16 %v4947
        %v5610 = vunpack.c.l.b16 %v4948
        %v5611 = vunpack.c.h.b16 %v4948
        %v5612 = vunpack.c.l.b16 %v4949
        %v5613 = vunpack.c.h.b16 %v4949
        %v5614 = vunpack.c.l.b16 %v4950
        %v5615 = vunpack.c.h.b16 %v4950
        %v5616 = vunpack.c.l.b16 %v4951
        %v5617 = vunpack.c.h.b16 %v4951
        %v5618 = vunpack.c.l.b16 %v4952
        %v5619 = vunpack.c.h.b16 %v4952
        %v5620 = vunpack.c.l.b16 %v4953
        %v5621 = vunpack.c.h.b16 %v4953
        %v5622 = vunpack.c.l.b16 %v4954
        %v5623 = vunpack.c.h.b16 %v4954
        %v5624 = vunpack.c.l.b16 %v4955
        %v5625 = vunpack.c.h.b16 %v4955
        %v5626 = vunpack.c.l.b16 %v4956
        %v5627 = vunpack.c.h.b16 %v4956
        %v5628 = vunpack.c.l.b16 %v4957
        %v5629 = vunpack.c.h.b16 %v4957
        %v5630 = vunpack.c.l.b16 %v4958
        %v5631 = vunpack.c.h.b16 %v4958
        %v5632 = vunpack.c.l.b16 %v4959
        %v5633 = vunpack.c.h.b16 %v4959
        %v5634 = vunpack.c.l.b16 %v4960
        %v5635 = vunpack.c.h.b16 %v4960
        %v5636 = vunpack.c.l.b16 %v4961
        %v5637 = vunpack.c.h.b16 %v4961
        %v5638 = vunpack.c.l.b16 %v4962
        %v5639 = vunpack.c.h.b16 %v4962
        %v5640 = vunpack.c.l.b16 %v4963
        %v5641 = vunpack.c.h.b16 %v4963
        %v5642 = vunpack.c.l.b16 %v4964
        %v5643 = vunpack.c.h.b16 %v4964
        %v5644 = vunpack.c.l.b16 %v4965
        %v5645 = vunpack.c.h.b16 %v4965
        %v5646 = vunpack.c.l.b16 %v4966
        %v5647 = vunpack.c.h.b16 %v4966
        %v5648 = vunpack.c.l.b16 %v4967
        %v5649 = vunpack.c.h.b16 %v4967
        %v5650 = vunpack.c.l.b16 %v4968
        %v5651 = vunpack.c.h.b16 %v4968
        %v5652 = vunpack.c.l.b16 %v4969
        %v5653 = vunpack.c.h.b16 %v4969
        %v5654 = vunpack.c.l.b16 %v4970
        %v5655 = vunpack.c.h.b16 %v4970
        %v5656 = vunpack.c.l.b16 %v4971
        %v5657 = vunpack.c.h.b16 %v4971
        %v5658 = vunpack.c.l.b16 %v4972
        %v5659 = vunpack.c.h.b16 %v4972
        %v5660 = vunpack.c.l.b16 %v4973
        %v5661 = vunpack.c.h.b16 %v4973
        %v5662 = vunpack.c.l.b16 %v4974
        %v5663 = vunpack.c.h.b16 %v4974
        %v5664 = vunpack.c.l.b16 %v4975
        %v5665 = vunpack.c.h.b16 %v4975
        %v5666 = vunpack.c.l.b16 %v4976
        %v5667 = vunpack.c.h.b16 %v4976
        %v5668 = vunpack.c.l.b16 %v4977
        %v5669 = vunpack.c.h.b16 %v4977
        %v5670 = vunpack.c.l.b16 %v4978
        %v5671 = vunpack.c.h.b16 %v4978
        %v5672 = vunpack.c.l.b16 %v4979
        %v5673 = vunpack.c.h.b16 %v4979
        %v5674 = vunpack.c.l.b16 %v4980
        %v5675 = vunpack.c.h.b16 %v4980
        %v5676 = vunpack.c.l.b16 %v4981
        %v5677 = vunpack.c.h.b16 %v4981
        %v5678 = vunpack.c.l.b16 %v4982
        %v5679 = vunpack.c.h.b16 %v4982
        %v5680 = vunpack.c.l.b16 %v4983
        %v5681 = vunpack.c.h.b16 %v4983
        %v5682 = vunpack.c.l.b16 %v4984
        %v5683 = vunpack.c.h.b16 %v4984
        %v5684 = vunpack.c.l.b16 %v4985
        %v5685 = vunpack.c.h.b16 %v4985
        %v5686 = vunpack.c.l.b16 %v4986
        %v5687 = vunpack.c.h.b16 %v4986
        %v5688 = vunpack.c.l.b16 %v4987
        %v5689 = vunpack.c.h.b16 %v4987
        %v5690 = vunpack.c.l.b16 %v4988
        %v5691 = vunpack.c.h.b16 %v4988
        %v5692 = vunpack.c.l.b16 %v4989
        %v5693 = vunpack.c.h.b16 %v4989
        %v5694 = vunpack.c.l.b16 %v4990
        %v5695 = vunpack.c.h.b16 %v4990
        %v5696 = vunpack.c.l.b16 %v4991
        %v5697 = vunpack.c.h.b16 %v4991
        %v5698 = vunpack.c.l.b16 %v4992
        %v5699 = vunpack.c.h.b16 %v4992
        %v5700 = vunpack.c.l.b16 %v4993
        %v5701 = vunpack.c.h.b16 %v4993
        %v5702 = vunpack.c.l.b16 %v4994
        %v5703 = vunpack.c.h.b16 %v4994
        %v5704 = vunpack.c.l.b16 %v4995
        %v5705 = vunpack.c.h.b16 %v4995
        %v5706 = vunpack.c.l.b16 %v4996
        %v5707 = vunpack.c.h.b16 %v4996
        %v5708 = vunpack.c.l.b16 %v4997
        %v5709 = vunpack.c.h.b16 %v4997
        %v5710 = vunpack.c.l.b16 %v4998
        %v5711 = vunpack.c.h.b16 %v4998
        %v5712 = vunpack.c.l.b16 %v4999
        %v5713 = vunpack.c.h.b16 %v4999
        %v5714 = vunpack.c.l.b16 %v5000
        %v5715 = vunpack.c.h.b16 %v5000
        %v5716 = vunpack.c.l.b16 %v5001
        %v5717 = vunpack.c.h.b16 %v5001
        %v5718 = vunpack.c.l.b16 %v5002
        %v5719 = vunpack.c.h.b16 %v5002
        %v5720 = vunpack.c.l.b16 %v5003
        %v5721 = vunpack.c.h.b16 %v5003
        %v5722 = vunpack.c.l.b16 %v5004
        %v5723 = vunpack.c.h.b16 %v5004
        %v5724 = vunpack.c.l.b16 %v5005
        %v5725 = vunpack.c.h.b16 %v5005
        %v5726 = vunpack.c.l.b16 %v5006
        %v5727 = vunpack.c.h.b16 %v5006
        %v5728 = vunpack.c.l.b16 %v5007
        %v5729 = vunpack.c.h.b16 %v5007
        %v5730 = vunpack.c.l.b16 %v5008
        %v5731 = vunpack.c.h.b16 %v5008
        %v5732 = vunpack.c.l.b16 %v5009
        %v5733 = vunpack.c.h.b16 %v5009
        %v5734 = vunpack.c.l.b16 %v5010
        %v5735 = vunpack.c.h.b16 %v5010
        %v5736 = vunpack.c.l.b16 %v5011
        %v5737 = vunpack.c.h.b16 %v5011
        %v5738 = vunpack.c.l.b16 %v5012
        %v5739 = vunpack.c.h.b16 %v5012
        %v5740 = vunpack.c.l.b16 %v5013
        %v5741 = vunpack.c.h.b16 %v5013
        %v5742 = vunpack.c.l.b16 %v5014
        %v5743 = vunpack.c.h.b16 %v5014
        %v5744 = vunpack.c.l.b16 %v5015
        %v5745 = vunpack.c.h.b16 %v5015
        %v5746 = vunpack.c.l.b16 %v5016
        %v5747 = vunpack.c.h.b16 %v5016
        %v5748 = vunpack.c.l.b16 %v5017
        %v5749 = vunpack.c.h.b16 %v5017
        %v5750 = vunpack.c.l.b16 %v5018
        %v5751 = vunpack.c.h.b16 %v5018
        %v5752 = vunpack.c.l.b16 %v5019
        %v5753 = vunpack.c.h.b16 %v5019
        %v5754 = vunpack.c.l.b16 %v5020
        %v5755 = vunpack.c.h.b16 %v5020
        %v5756 = vunpack.c.l.b16 %v5021
        %v5757 = vunpack.c.h.b16 %v5021
        %v5758 = vunpack.c.l.b16 %v5022
        %v5759 = vunpack.c.h.b16 %v5022
        %v5760 = vunpack.c.l.b16 %v5023
        %v5761 = vunpack.c.h.b16 %v5023
        %v5762 = vunpack.c.l.b16 %v5024
        %v5763 = vunpack.c.h.b16 %v5024
        %v5764 = vunpack.c.l.b16 %v5025
        %v5765 = vunpack.c.h.b16 %v5025
        %v5766 = vunpack.c.l.b16 %v5026
        %v5767 = vunpack.c.h.b16 %v5026
        %v5768 = vunpack.c.l.b16 %v5027
        %v5769 = vunpack.c.h.b16 %v5027
        %v5770 = vunpack.c.l.b16 %v5028
        %v5771 = vunpack.c.h.b16 %v5028
        %v5772 = vunpack.c.l.b16 %v5029
        %v5773 = vunpack.c.h.b16 %v5029
        %v5774 = vunpack.c.l.b16 %v5030
        %v5775 = vunpack.c.h.b16 %v5030
        %v5776 = vunpack.c.l.b16 %v5031
        %v5777 = vunpack.c.h.b16 %v5031
        %v5778 = vunpack.c.l.b16 %v5032
        %v5779 = vunpack.c.h.b16 %v5032
        %v5780 = vunpack.c.l.b16 %v5033
        %v5781 = vunpack.c.h.b16 %v5033
        %v5782 = vunpack.c.l.b16 %v5034
        %v5783 = vunpack.c.h.b16 %v5034
        %v5784 = vunpack.c.l.b16 %v5035
        %v5785 = vunpack.c.h.b16 %v5035
        %v5786 = vunpack.c.l.b16 %v5036
        %v5787 = vunpack.c.h.b16 %v5036
        %v5788 = vunpack.c.l.b16 %v5037
        %v5789 = vunpack.c.h.b16 %v5037
        %v5790 = vunpack.c.l.b16 %v5038
        %v5791 = vunpack.c.h.b16 %v5038
        %v5792 = vunpack.c.l.b16 %v5039
        %v5793 = vunpack.c.h.b16 %v5039
        %v5794 = vunpack.c.l.b16 %v5040
        %v5795 = vunpack.c.h.b16 %v5040
        %v5796 = vunpack.c.l.b16 %v5041
        %v5797 = vunpack.c.h.b16 %v5041
        %v5798 = vunpack.c.l.b16 %v5042
        %v5799 = vunpack.c.h.b16 %v5042
        %v5800 = vunpack.c.l.b16 %v5043
        %v5801 = vunpack.c.h.b16 %v5043
        %v5802 = vunpack.c.l.b16 %v5044
        %v5803 = vunpack.c.h.b16 %v5044
        %v5804 = vunpack.c.l.b16 %v5045
        %v5805 = vunpack.c.h.b16 %v5045
        %v5806 = vunpack.c.l.b16 %v5046
        %v5807 = vunpack.c.h.b16 %v5046
        %v5808 = vunpack.c.l.b16 %v5047
        %v5809 = vunpack.c.h.b16 %v5047
        %v5810 = vunpack.c.l.b16 %v5048
        %v5811 = vunpack.c.h.b16 %v5048
        %v5812 = vunpack.c.l.b16 %v5049
        %v5813 = vunpack.c.h.b16 %v5049
        %v5814 = vunpack.c.l.b16 %v5050
        %v5815 = vunpack.c.h.b16 %v5050
        %v5816 = vunpack.c.l.b16 %v5051
        %v5817 = vunpack.c.h.b16 %v5051
        %v5818 = vunpack.c.l.b16 %v5052
        %v5819 = vunpack.c.h.b16 %v5052
        %v5820 = vunpack.c.l.b16 %v5053
        %v5821 = vunpack.c.h.b16 %v5053
        %v5822 = vpack.c.b16 %v5312, %v5310
        %v5823 = vpack.c.b16 %v5313, %v5311
        %v5824 = vpack.c.b16 %v5316, %v5314
        %v5825 = vpack.c.b16 %v5317, %v5315
        %v5826 = vpack.c.b16 %v5320, %v5318
        %v5827 = vpack.c.b16 %v5321, %v5319
        %v5828 = vpack.c.b16 %v5324, %v5322
        %v5829 = vpack.c.b16 %v5325, %v5323
        %v5830 = vpack.c.b16 %v5328, %v5326
        %v5831 = vpack.c.b16 %v5329, %v5327
        %v5832 = vpack.c.b16 %v5332, %v5330
        %v5833 = vpack.c.b16 %v5333, %v5331
        %v5834 = vpack.c.b16 %v5336, %v5334
        %v5835 = vpack.c.b16 %v5337, %v5335
        %v5836 = vpack.c.b16 %v5340, %v5338
        %v5837 = vpack.c.b16 %v5341, %v5339
        %v5838 = vpack.c.b16 %v5344, %v5342
        %v5839 = vpack.c.b16 %v5345, %v5343
        %v5840 = vpack.c.b16 %v5348, %v5346
        %v5841 = vpack.c.b16 %v5349, %v5347
        %v5842 = vpack.c.b16 %v5352, %v5350
        %v5843 = vpack.c.b16 %v5353, %v5351
        %v5844 = vpack.c.b16 %v5356, %v5354
        %v5845 = vpack.c.b16 %v5357, %v5355
        %v5846 = vpack.c.b16 %v5360, %v5358
        %v5847 = vpack.c.b16 %v5361, %v5359
        %v5848 = vpack.c.b16 %v5364, %v5362
        %v5849 = vpack.c.b16 %v5365, %v5363
        %v5850 = vpack.c.b16 %v5368, %v5366
        %v5851 = vpack.c.b16 %v5369, %v5367
        %v5852 = vpack.c.b16 %v5372, %v5370
        %v5853 = vpack.c.b16 %v5373, %v5371
        %v5854 = vpack.c.b16 %v5376, %v5374
        %v5855 = vpack.c.b16 %v5377, %v5375
        %v5856 = vpack.c.b16 %v5380, %v5378
        %v5857 = vpack.c.b16 %v5381, %v5379
        %v5858 = vpack.c.b16 %v5384, %v5382
        %v5859 = vpack.c.b16 %v5385, %v5383
        %v5860 = vpack.c.b16 %v5388, %v5386
        %v5861 = vpack.c.b16 %v5389, %v5387
        %v5862 = vpack.c.b16 %v5392, %v5390
        %v5863 = vpack.c.b16 %v5393, %v5391
        %v5864 = vpack.c.b16 %v5396, %v5394
        %v5865 = vpack.c.b16 %v5397, %v5395
        %v5866 = vpack.c.b16 %v5400, %v5398
        %v5867 = vpack.c.b16 %v5401, %v5399
        %v5868 = vpack.c.b16 %v5404, %v5402
        %v5869 = vpack.c.b16 %v5405, %v5403
        %v5870 = vpack.c.b16 %v5408, %v5406
        %v5871 = vpack.c.b16 %v5409, %v5407
        %v5872 = vpack.c.b16 %v5412, %v5410
        %v5873 = vpack.c.b16 %v5413, %v5411
        %v5874 = vpack.c.b16 %v5416, %v5414
        %v5875 = vpack.c.b16 %v5417, %v5415
        %v5876 = vpack.c.b16 %v5420, %v5418
        %v5877 = vpack.c.b16 %v5421, %v5419
        %v5878 = vpack.c.b16 %v5424, %v5422
        %v5879 = vpack.c.b16 %v5425, %v5423
        %v5880 = vpack.c.b16 %v5428, %v5426
        %v5881 = vpack.c.b16 %v5429, %v5427
        %v5882 = vpack.c.b16 %v5432, %v5430
        %v5883 = vpack.c.b16 %v5433, %v5431
        %v5884 = vpack.c.b16 %v5436, %v5434
        %v5885 = vpack.c.b16 %v5437, %v5435
        %v5886 = vpack.c.b16 %v5440, %v5438
        %v5887 = vpack.c.b16 %v5441, %v5439
        %v5888 = vpack.c.b16 %v5444, %v5442
        %v5889 = vpack.c.b16 %v5445, %v5443
        %v5890 = vpack.c.b16 %v5448, %v5446
        %v5891 = vpack.c.b16 %v5449, %v5447
        %v5892 = vpack.c.b16 %v5452, %v5450
        %v5893 = vpack.c.b16 %v5453, %v5451
        %v5894 = vpack.c.b16 %v5456, %v5454
        %v5895 = vpack.c.b16 %v5457, %v5455
        %v5896 = vpack.c.b16 %v5460, %v5458
        %v5897 = vpack.c.b16 %v5461, %v5459
        %v5898 = vpack.c.b16 %v5464, %v5462
        %v5899 = vpack.c.b16 %v5465, %v5463
        %v5900 = vpack.c.b16 %v5468, %v5466
        %v5901 = vpack.c.b16 %v5469, %v5467
        %v5902 = vpack.c.b16 %v5472, %v5470
        %v5903 = vpack.c.b16 %v5473, %v5471
        %v5904 = vpack.c.b16 %v5476, %v5474
        %v5905 = vpack.c.b16 %v5477, %v5475
        %v5906 = vpack.c.b16 %v5480, %v5478
        %v5907 = vpack.c.b16 %v5481, %v5479
        %v5908 = vpack.c.b16 %v5484, %v5482
        %v5909 = vpack.c.b16 %v5485, %v5483
        %v5910 = vpack.c.b16 %v5488, %v5486
        %v5911 = vpack.c.b16 %v5489, %v5487
        %v5912 = vpack.c.b16 %v5492, %v5490
        %v5913 = vpack.c.b16 %v5493, %v5491
        %v5914 = vpack.c.b16 %v5496, %v5494
        %v5915 = vpack.c.b16 %v5497, %v5495
        %v5916 = vpack.c.b16 %v5500, %v5498
        %v5917 = vpack.c.b16 %v5501, %v5499
        %v5918 = vpack.c.b16 %v5504, %v5502
        %v5919 = vpack.c.b16 %v5505, %v5503
        %v5920 = vpack.c.b16 %v5508, %v5506
        %v5921 = vpack.c.b16 %v5509, %v5507
        %v5922 = vpack.c.b16 %v5512, %v5510
        %v5923 = vpack.c.b16 %v5513, %v5511
        %v5924 = vpack.c.b16 %v5516, %v5514
        %v5925 = vpack.c.b16 %v5517, %v5515
        %v5926 = vpack.c.b16 %v5520, %v5518
        %v5927 = vpack.c.b16 %v5521, %v5519
        %v5928 = vpack.c.b16 %v5524, %v5522
        %v5929 = vpack.c.b16 %v5525, %v5523
        %v5930 = vpack.c.b16 %v5528, %v5526
        %v5931 = vpack.c.b16 %v5529, %v5527
        %v5932 = vpack.c.b16 %v5532, %v5530
        %v5933 = vpack.c.b16 %v5533, %v5531
        %v5934 = vpack.c.b16 %v5536, %v5534
        %v5935 = vpack.c.b16 %v5537, %v5535
        %v5936 = vpack.c.b16 %v5540, %v5538
        %v5937 = vpack.c.b16 %v5541, %v5539
        %v5938 = vpack.c.b16 %v5544, %v5542
        %v5939 = vpack.c.b16 %v5545, %v5543
        %v5940 = vpack.c.b16 %v5548, %v5546
        %v5941 = vpack.c.b16 %v5549, %v5547
        %v5942 = vpack.c.b16 %v5552, %v5550
        %v5943 = vpack.c.b16 %v5553, %v5551
        %v5944 = vpack.c.b16 %v5556, %v5554
        %v5945 = vpack.c.b16 %v5557, %v5555
        %v5946 = vpack.c.b16 %v5560, %v5558
        %v5947 = vpack.c.b16 %v5561, %v5559
        %v5948 = vpack.c.b16 %v5564, %v5562
        %v5949 = vpack.c.b16 %v5565, %v5563
        %v5950 = vpack.c.b16 %v5568, %v5566
        %v5951 = vpack.c.b16 %v5569, %v5567
        %v5952 = vpack.c.b16 %v5572, %v5570
        %v5953 = vpack.c.b16 %v5573, %v5571
        %v5954 = vpack.c.b16 %v5576, %v5574
        %v5955 = vpack.c.b16 %v5577, %v5575
        %v5956 = vpack.c.b16 %v5580, %v5578
        %v5957 = vpack.c.b16 %v5581, %v5579
        %v5958 = vpack.c.b16 %v5584, %v5582
        %v5959 = vpack.c.b16 %v5585, %v5583
        %v5960 = vpack.c.b16 %v5588, %v5586
        %v5961 = vpack.c.b16 %v5589, %v5587
        %v5962 = vpack.c.b16 %v5592, %v5590
        %v5963 = vpack.c.b16 %v5593, %v5591
        %v5964 = vpack.c.b16 %v5596, %v5594
        %v5965 = vpack.c.b16 %v5597, %v5595
        %v5966 = vpack.c.b16 %v5600, %v5598
        %v5967 = vpack.c.b16 %v5601, %v5599
        %v5968 = vpack.c.b16 %v5604, %v5602
        %v5969 = vpack.c.b16 %v5605, %v5603
        %v5970 = vpack.c.b16 %v5608, %v5606
        %v5971 = vpack.c.b16 %v5609, %v5607
        %v5972 = vpack.c.b16 %v5612, %v5610
        %v5973 = vpack.c.b16 %v5613, %v5611
        %v5974 = vpack.c.b16 %v5616, %v5614
        %v5975 = vpack.c.b16 %v5617, %v5615
        %v5976 = vpack.c.b16 %v5620, %v5618
        %v5977 = vpack.c.b16 %v5621, %v5619
        %v5978 = vpack.c.b16 %v5624, %v5622
        %v5979 = vpack.c.b16 %v5625, %v5623
        %v5980 = vpack.c.b16 %v5628, %v5626
        %v5981 = vpack.c.b16 %v5629, %v5627
        %v5982 = vpack.c.b16 %v5632, %v5630
        %v5983 = vpack.c.b16 %v5633, %v5631
        %v5984 = vpack.c.b16 %v5636, %v5634
        %v5985 = vpack.c.b16 %v5637, %v5635
        %v5986 = vpack.c.b16 %v5640, %v5638
        %v5987 = vpack.c.b16 %v5641, %v5639
        %v5988 = vpack.c.b16 %v5644, %v5642
        %v5989 = vpack.c.b16 %v5645, %v5643
        %v5990 = vpack.c.b16 %v5648, %v5646
        %v5991 = vpack.c.b16 %v5649, %v5647
        %v5992 = vpack.c.b16 %v5652, %v5650
        %v5993 = vpack.c.b16 %v5653, %v5651
        %v5994 = vpack.c.b16 %v5656, %v5654
        %v5995 = vpack.c.b16 %v5657, %v5655
        %v5996 = vpack.c.b16 %v5660, %v5658
        %v5997 = vpack.c.b16 %v5661, %v5659
        %v5998 = vpack.c.b16 %v5664, %v5662
        %v5999 = vpack.c.b16 %v5665, %v5663
        %v6000 = vpack.c.b16 %v5668, %v5666
        %v6001 = vpack.c.b16 %v5669, %v5667
        %v6002 = vpack.c.b16 %v5672, %v5670
        %v6003 = vpack.c.b16 %v5673, %v5671
        %v6004 = vpack.c.b16 %v5676, %v5674
        %v6005 = vpack.c.b16 %v5677, %v5675
        %v6006 = vpack.c.b16 %v5680, %v5678
        %v6007 = vpack.c.b16 %v5681, %v5679
        %v6008 = vpack.c.b16 %v5684, %v5682
        %v6009 = vpack.c.b16 %v5685, %v5683
        %v6010 = vpack.c.b16 %v5688, %v5686
        %v6011 = vpack.c.b16 %v5689, %v5687
        %v6012 = vpack.c.b16 %v5692, %v5690
        %v6013 = vpack.c.b16 %v5693, %v5691
        %v6014 = vpack.c.b16 %v5696, %v5694
        %v6015 = vpack.c.b16 %v5697, %v5695
        %v6016 = vpack.c.b16 %v5700, %v5698
        %v6017 = vpack.c.b16 %v5701, %v5699
        %v6018 = vpack.c.b16 %v5704, %v5702
        %v6019 = vpack.c.b16 %v5705, %v5703
        %v6020 = vpack.c.b16 %v5708, %v5706
        %v6021 = vpack.c.b16 %v5709, %v5707
        %v6022 = vpack.c.b16 %v5712, %v5710
        %v6023 = vpack.c.b16 %v5713, %v5711
        %v6024 = vpack.c.b16 %v5716, %v5714
        %v6025 = vpack.c.b16 %v5717, %v5715
        %v6026 = vpack.c.b16 %v5720, %v5718
        %v6027 = vpack.c.b16 %v5721, %v5719
        %v6028 = vpack.c.b16 %v5724, %v5722
        %v6029 = vpack.c.b16 %v5725, %v5723
        %v6030 = vpack.c.b16 %v5728, %v5726
        %v6031 = vpack.c.b16 %v5729, %v5727
        %v6032 = vpack.c.b16 %v5732, %v5730
        %v6033 = vpack.c.b16 %v5733, %v5731
        %v6034 = vpack.c.b16 %v5736, %v5734
        %v6035 = vpack.c.b16 %v5737, %v5735
        %v6036 = vpack.c.b16 %v5740, %v5738
        %v6037 = vpack.c.b16 %v5741, %v5739
        %v6038 = vpack.c.b16 %v5744, %v5742
        %v6039 = vpack.c.b16 %v5745, %v5743
        %v6040 = vpack.c.b16 %v5748, %v5746
        %v6041 = vpack.c.b16 %v5749, %v5747
        %v6042 = vpack.c.b16 %v5752, %v5750
        %v6043 = vpack.c.b16 %v5753, %v5751
        %v6044 = vpack.c.b16 %v5756, %v5754
        %v6045 = vpack.c.b16 %v5757, %v5755
        %v6046 = vpack.c.b16 %v5760, %v5758
        %v6047 = vpack.c.b16 %v5761, %v5759
        %v6048 = vpack.c.b16 %v5764, %v5762
        %v6049 = vpack.c.b16 %v5765, %v5763
        %v6050 = vpack.c.b16 %v5768, %v5766
        %v6051 = vpack.c.b16 %v5769, %v5767
        %v6052 = vpack.c.b16 %v5772, %v5770
        %v6053 = vpack.c.b16 %v5773, %v5771
        %v6054 = vpack.c.b16 %v5776, %v5774
        %v6055 = vpack.c.b16 %v5777, %v5775
        %v6056 = vpack.c.b16 %v5780, %v5778
        %v6057 = vpack.c.b16 %v5781, %v5779
        %v6058 = vpack.c.b16 %v5784, %v5782
        %v6059 = vpack.c.b16 %v5785, %v5783
        %v6060 = vpack.c.b16 %v5788, %v5786
        %v6061 = vpack.c.b16 %v5789, %v5787
        %v6062 = vpack.c.b16 %v5792, %v5790
        %v6063 = vpack.c.b16 %v5793, %v5791
        %v6064 = vpack.c.b16 %v5796, %v5794
        %v6065 = vpack.c.b16 %v5797, %v5795
        %v6066 = vpack.c.b16 %v5800, %v5798
        %v6067 = vpack.c.b16 %v5801, %v5799
        %v6068 = vpack.c.b16 %v5804, %v5802
        %v6069 = vpack.c.b16 %v5805, %v5803
        %v6070 = vpack.c.b16 %v5808, %v5806
        %v6071 = vpack.c.b16 %v5809, %v5807
        %v6072 = vpack.c.b16 %v5812, %v5810
        %v6073 = vpack.c.b16 %v5813, %v5811
        %v6074 = vpack.c.b16 %v5816, %v5814
        %v6075 = vpack.c.b16 %v5817, %v5815
        %v6076 = vpack.c.b16 %v5820, %v5818
        %v6077 = vpack.c.b16 %v5821, %v5819
        %6334 = vmatprep.subr.bf16.mxu0 %v5823
        %6335 = vmatpush1.bf16.msra.mxu0 %v5822
        %6336 = vmatprep.subr.bf16.mxu0 %v5825
        %6337 = vmatpush1.bf16.msra.mxu0 %v5824
        %6338 = vmatprep.subr.bf16.mxu0 %v5827
        %6339 = vmatpush1.bf16.msra.mxu0 %v5826
        %6340 = vmatprep.subr.bf16.mxu0 %v5829
        %6341 = vmatpush1.bf16.msra.mxu0 %v5828
        %6342 = vmatprep.subr.bf16.mxu0 %v5831
        %6343 = vmatpush1.bf16.msra.mxu0 %v5830
        %6344 = vmatprep.subr.bf16.mxu0 %v5833
        %6345 = vmatpush1.bf16.msra.mxu0 %v5832
        %6346 = vmatprep.subr.bf16.mxu0 %v5835
        %6347 = vmatpush1.bf16.msra.mxu0 %v5834
        %6348 = vmatprep.subr.bf16.mxu0 %v5837
        %6349 = vmatpush1.bf16.msra.mxu0 %v5836
        %6350 = vmatprep.subr.bf16.mxu0 %v5839
        %6351 = vmatpush1.bf16.msra.mxu0 %v5838
        %6352 = vmatprep.subr.bf16.mxu0 %v5841
        %6353 = vmatpush1.bf16.msra.mxu0 %v5840
        %6354 = vmatprep.subr.bf16.mxu0 %v5843
        %6355 = vmatpush1.bf16.msra.mxu0 %v5842
        %6356 = vmatprep.subr.bf16.mxu0 %v5845
        %6357 = vmatpush1.bf16.msra.mxu0 %v5844
        %6358 = vmatprep.subr.bf16.mxu0 %v5847
        %6359 = vmatpush1.bf16.msra.mxu0 %v5846
        %6360 = vmatprep.subr.bf16.mxu0 %v5849
        %6361 = vmatpush1.bf16.msra.mxu0 %v5848
        %6362 = vmatprep.subr.bf16.mxu0 %v5851
        %6363 = vmatpush1.bf16.msra.mxu0 %v5850
        %6364 = vmatprep.subr.bf16.mxu0 %v5853
        %6365 = vmatpush1.bf16.msra.mxu0 %v5852
        %6366 = vmatprep.mubr.bf16.mxu0 %v4783
        %6367 = vmatmul.mubr.bf16.gmra.mrb[0].mxu0 %v4782
        %v6368 = vpop.f32.mrb[0].mxu0
        %v6369 = vadd.f32 0.0, %v6368
        %v6370 = vpop.f32.mrb[0].mxu0
        %v6371 = vadd.f32 0.0, %v6370
        %v6372 = vpop.f32.mrb[0].mxu0
        %v6373 = vadd.f32 0.0, %v6372
        %v6374 = vpop.f32.mrb[0].mxu0
        %v6375 = vadd.f32 0.0, %v6374
        %6376 = vdwg.mxu0
        %6377 = vmatprep.subr.bf16.mxu0 %v5855
        %6378 = vmatpush1.bf16.msra.mxu0 %v5854
        %6379 = vmatprep.subr.bf16.mxu0 %v5857
        %6380 = vmatpush1.bf16.msra.mxu0 %v5856
        %6381 = vmatprep.subr.bf16.mxu0 %v5859
        %6382 = vmatpush1.bf16.msra.mxu0 %v5858
        %6383 = vmatprep.subr.bf16.mxu0 %v5861
        %6384 = vmatpush1.bf16.msra.mxu0 %v5860
        %6385 = vmatprep.subr.bf16.mxu0 %v5863
        %6386 = vmatpush1.bf16.msra.mxu0 %v5862
        %6387 = vmatprep.subr.bf16.mxu0 %v5865
        %6388 = vmatpush1.bf16.msra.mxu0 %v5864
        %6389 = vmatprep.subr.bf16.mxu0 %v5867
        %6390 = vmatpush1.bf16.msra.mxu0 %v5866
        %6391 = vmatprep.subr.bf16.mxu0 %v5869
        %6392 = vmatpush1.bf16.msra.mxu0 %v5868
        %6393 = vmatprep.subr.bf16.mxu0 %v5871
        %6394 = vmatpush1.bf16.msra.mxu0 %v5870
        %6395 = vmatprep.subr.bf16.mxu0 %v5873
        %6396 = vmatpush1.bf16.msra.mxu0 %v5872
        %6397 = vmatprep.subr.bf16.mxu0 %v5875
        %6398 = vmatpush1.bf16.msra.mxu0 %v5874
        %6399 = vmatprep.subr.bf16.mxu0 %v5877
        %6400 = vmatpush1.bf16.msra.mxu0 %v5876
        %6401 = vmatprep.subr.bf16.mxu0 %v5879
        %6402 = vmatpush1.bf16.msra.mxu0 %v5878
        %6403 = vmatprep.subr.bf16.mxu0 %v5881
        %6404 = vmatpush1.bf16.msra.mxu0 %v5880
        %6405 = vmatprep.subr.bf16.mxu0 %v5883
        %6406 = vmatpush1.bf16.msra.mxu0 %v5882
        %6407 = vmatprep.subr.bf16.mxu0 %v5885
        %6408 = vmatpush1.bf16.msra.mxu0 %v5884
        %6409 = vmatprep.mubr.bf16.mxu0 %v4785
        %6410 = vmatmul.mubr.bf16.gmra.mrb[0].mxu0 %v4784
        %v6411 = vpop.f32.mrb[0].mxu0
        %v6412 = vadd.f32 %v6369, %v6411
        %v6413 = vpop.f32.mrb[0].mxu0
        %v6414 = vadd.f32 %v6371, %v6413
        %v6415 = vpop.f32.mrb[0].mxu0
        %v6416 = vadd.f32 %v6373, %v6415
        %v6417 = vpop.f32.mrb[0].mxu0
        %v6418 = vadd.f32 %v6375, %v6417
        %6419 = vdwg.mxu0
        %6420 = vmatprep.subr.bf16.mxu0 %v5887
        %6421 = vmatpush1.bf16.msra.mxu0 %v5886
        %6422 = vmatprep.subr.bf16.mxu0 %v5889
        %6423 = vmatpush1.bf16.msra.mxu0 %v5888
        %6424 = vmatprep.subr.bf16.mxu0 %v5891
        %6425 = vmatpush1.bf16.msra.mxu0 %v5890
        %6426 = vmatprep.subr.bf16.mxu0 %v5893
        %6427 = vmatpush1.bf16.msra.mxu0 %v5892
        %6428 = vmatprep.subr.bf16.mxu0 %v5895
        %6429 = vmatpush1.bf16.msra.mxu0 %v5894
        %6430 = vmatprep.subr.bf16.mxu0 %v5897
        %6431 = vmatpush1.bf16.msra.mxu0 %v5896
        %6432 = vmatprep.subr.bf16.mxu0 %v5899
        %6433 = vmatpush1.bf16.msra.mxu0 %v5898
        %6434 = vmatprep.subr.bf16.mxu0 %v5901
        %6435 = vmatpush1.bf16.msra.mxu0 %v5900
        %6436 = vmatprep.subr.bf16.mxu0 %v5903
        %6437 = vmatpush1.bf16.msra.mxu0 %v5902
        %6438 = vmatprep.subr.bf16.mxu0 %v5905
        %6439 = vmatpush1.bf16.msra.mxu0 %v5904
        %6440 = vmatprep.subr.bf16.mxu0 %v5907
        %6441 = vmatpush1.bf16.msra.mxu0 %v5906
        %6442 = vmatprep.subr.bf16.mxu0 %v5909
        %6443 = vmatpush1.bf16.msra.mxu0 %v5908
        %6444 = vmatprep.subr.bf16.mxu0 %v5911
        %6445 = vmatpush1.bf16.msra.mxu0 %v5910
        %6446 = vmatprep.subr.bf16.mxu0 %v5913
        %6447 = vmatpush1.bf16.msra.mxu0 %v5912
        %6448 = vmatprep.subr.bf16.mxu0 %v5915
        %6449 = vmatpush1.bf16.msra.mxu0 %v5914
        %6450 = vmatprep.subr.bf16.mxu0 %v5917
        %6451 = vmatpush1.bf16.msra.mxu0 %v5916
        %6452 = vmatprep.mubr.bf16.mxu0 %v4787
        %6453 = vmatmul.mubr.bf16.gmra.mrb[0].mxu0 %v4786
        %v6454 = vpop.f32.mrb[0].mxu0
        %v6455 = vadd.f32 %v6412, %v6454
        %v6456 = vpop.f32.mrb[0].mxu0
        %v6457 = vadd.f32 %v6414, %v6456
        %v6458 = vpop.f32.mrb[0].mxu0
        %v6459 = vadd.f32 %v6416, %v6458
        %v6460 = vpop.f32.mrb[0].mxu0
        %v6461 = vadd.f32 %v6418, %v6460
        %6462 = vdwg.mxu0
        %6463 = vmatprep.subr.bf16.mxu0 %v5919
        %6464 = vmatpush1.bf16.msra.mxu0 %v5918
        %6465 = vmatprep.subr.bf16.mxu0 %v5921
        %6466 = vmatpush1.bf16.msra.mxu0 %v5920
        %6467 = vmatprep.subr.bf16.mxu0 %v5923
        %6468 = vmatpush1.bf16.msra.mxu0 %v5922
        %6469 = vmatprep.subr.bf16.mxu0 %v5925
        %6470 = vmatpush1.bf16.msra.mxu0 %v5924
        %6471 = vmatprep.subr.bf16.mxu0 %v5927
        %6472 = vmatpush1.bf16.msra.mxu0 %v5926
        %6473 = vmatprep.subr.bf16.mxu0 %v5929
        %6474 = vmatpush1.bf16.msra.mxu0 %v5928
        %6475 = vmatprep.subr.bf16.mxu0 %v5931
        %6476 = vmatpush1.bf16.msra.mxu0 %v5930
        %6477 = vmatprep.subr.bf16.mxu0 %v5933
        %6478 = vmatpush1.bf16.msra.mxu0 %v5932
        %6479 = vmatprep.subr.bf16.mxu0 %v5935
        %6480 = vmatpush1.bf16.msra.mxu0 %v5934
        %6481 = vmatprep.subr.bf16.mxu0 %v5937
        %6482 = vmatpush1.bf16.msra.mxu0 %v5936
        %6483 = vmatprep.subr.bf16.mxu0 %v5939
        %6484 = vmatpush1.bf16.msra.mxu0 %v5938
        %6485 = vmatprep.subr.bf16.mxu0 %v5941
        %6486 = vmatpush1.bf16.msra.mxu0 %v5940
        %6487 = vmatprep.subr.bf16.mxu0 %v5943
        %6488 = vmatpush1.bf16.msra.mxu0 %v5942
        %6489 = vmatprep.subr.bf16.mxu0 %v5945
        %6490 = vmatpush1.bf16.msra.mxu0 %v5944
        %6491 = vmatprep.subr.bf16.mxu0 %v5947
        %6492 = vmatpush1.bf16.msra.mxu0 %v5946
        %6493 = vmatprep.subr.bf16.mxu0 %v5949
        %6494 = vmatpush1.bf16.msra.mxu0 %v5948
        %6495 = vmatprep.mubr.bf16.mxu0 %v4789
        %6496 = vmatmul.mubr.bf16.gmra.mrb[0].mxu0 %v4788
        %v6497 = vpop.f32.mrb[0].mxu0
        %v6498 = vadd.f32 %v6455, %v6497
        %v6499 = vpop.f32.mrb[0].mxu0
        %v6500 = vadd.f32 %v6457, %v6499
        %v6501 = vpop.f32.mrb[0].mxu0
        %v6502 = vadd.f32 %v6459, %v6501
        %v6503 = vpop.f32.mrb[0].mxu0
        %v6504 = vadd.f32 %v6461, %v6503
        %6505 = vdwg.mxu0
        %6506 = vmatprep.subr.bf16.mxu0 %v5951
        %6507 = vmatpush1.bf16.msra.mxu0 %v5950
        %6508 = vmatprep.subr.bf16.mxu0 %v5953
        %6509 = vmatpush1.bf16.msra.mxu0 %v5952
        %6510 = vmatprep.subr.bf16.mxu0 %v5955
        %6511 = vmatpush1.bf16.msra.mxu0 %v5954
        %6512 = vmatprep.subr.bf16.mxu0 %v5957
        %6513 = vmatpush1.bf16.msra.mxu0 %v5956
        %6514 = vmatprep.subr.bf16.mxu0 %v5959
        %6515 = vmatpush1.bf16.msra.mxu0 %v5958
        %6516 = vmatprep.subr.bf16.mxu0 %v5961
        %6517 = vmatpush1.bf16.msra.mxu0 %v5960
        %6518 = vmatprep.subr.bf16.mxu0 %v5963
        %6519 = vmatpush1.bf16.msra.mxu0 %v5962
        %6520 = vmatprep.subr.bf16.mxu0 %v5965
        %6521 = vmatpush1.bf16.msra.mxu0 %v5964
        %6522 = vmatprep.subr.bf16.mxu0 %v5967
        %6523 = vmatpush1.bf16.msra.mxu0 %v5966
        %6524 = vmatprep.subr.bf16.mxu0 %v5969
        %6525 = vmatpush1.bf16.msra.mxu0 %v5968
        %6526 = vmatprep.subr.bf16.mxu0 %v5971
        %6527 = vmatpush1.bf16.msra.mxu0 %v5970
        %6528 = vmatprep.subr.bf16.mxu0 %v5973
        %6529 = vmatpush1.bf16.msra.mxu0 %v5972
        %6530 = vmatprep.subr.bf16.mxu0 %v5975
        %6531 = vmatpush1.bf16.msra.mxu0 %v5974
        %6532 = vmatprep.subr.bf16.mxu0 %v5977
        %6533 = vmatpush1.bf16.msra.mxu0 %v5976
        %6534 = vmatprep.subr.bf16.mxu0 %v5979
        %6535 = vmatpush1.bf16.msra.mxu0 %v5978
        %6536 = vmatprep.subr.bf16.mxu0 %v5981
        %6537 = vmatpush1.bf16.msra.mxu0 %v5980
        %6538 = vmatprep.mubr.bf16.mxu0 %v4791
        %6539 = vmatmul.mubr.bf16.gmra.mrb[0].mxu0 %v4790
        %v6540 = vpop.f32.mrb[0].mxu0
        %v6541 = vadd.f32 %v6498, %v6540
        %v6542 = vpop.f32.mrb[0].mxu0
        %v6543 = vadd.f32 %v6500, %v6542
        %v6544 = vpop.f32.mrb[0].mxu0
        %v6545 = vadd.f32 %v6502, %v6544
        %v6546 = vpop.f32.mrb[0].mxu0
        %v6547 = vadd.f32 %v6504, %v6546
        %6548 = vdwg.mxu0
        %6549 = vmatprep.subr.bf16.mxu0 %v5983
        %6550 = vmatpush1.bf16.msra.mxu0 %v5982
        %6551 = vmatprep.subr.bf16.mxu0 %v5985
        %6552 = vmatpush1.bf16.msra.mxu0 %v5984
        %6553 = vmatprep.subr.bf16.mxu0 %v5987
        %6554 = vmatpush1.bf16.msra.mxu0 %v5986
        %6555 = vmatprep.subr.bf16.mxu0 %v5989
        %6556 = vmatpush1.bf16.msra.mxu0 %v5988
        %6557 = vmatprep.subr.bf16.mxu0 %v5991
        %6558 = vmatpush1.bf16.msra.mxu0 %v5990
        %6559 = vmatprep.subr.bf16.mxu0 %v5993
        %6560 = vmatpush1.bf16.msra.mxu0 %v5992
        %6561 = vmatprep.subr.bf16.mxu0 %v5995
        %6562 = vmatpush1.bf16.msra.mxu0 %v5994
        %6563 = vmatprep.subr.bf16.mxu0 %v5997
        %6564 = vmatpush1.bf16.msra.mxu0 %v5996
        %6565 = vmatprep.subr.bf16.mxu0 %v5999
        %6566 = vmatpush1.bf16.msra.mxu0 %v5998
        %6567 = vmatprep.subr.bf16.mxu0 %v6001
        %6568 = vmatpush1.bf16.msra.mxu0 %v6000
        %6569 = vmatprep.subr.bf16.mxu0 %v6003
        %6570 = vmatpush1.bf16.msra.mxu0 %v6002
        %6571 = vmatprep.subr.bf16.mxu0 %v6005
        %6572 = vmatpush1.bf16.msra.mxu0 %v6004
        %6573 = vmatprep.subr.bf16.mxu0 %v6007
        %6574 = vmatpush1.bf16.msra.mxu0 %v6006
        %6575 = vmatprep.subr.bf16.mxu0 %v6009
        %6576 = vmatpush1.bf16.msra.mxu0 %v6008
        %6577 = vmatprep.subr.bf16.mxu0 %v6011
        %6578 = vmatpush1.bf16.msra.mxu0 %v6010
        %6579 = vmatprep.subr.bf16.mxu0 %v6013
        %6580 = vmatpush1.bf16.msra.mxu0 %v6012
        %6581 = vmatprep.mubr.bf16.mxu0 %v4793
        %6582 = vmatmul.mubr.bf16.gmra.mrb[0].mxu0 %v4792
        %v6583 = vpop.f32.mrb[0].mxu0
        %v6584 = vadd.f32 %v6541, %v6583
        %v6585 = vpop.f32.mrb[0].mxu0
        %v6586 = vadd.f32 %v6543, %v6585
        %v6587 = vpop.f32.mrb[0].mxu0
        %v6588 = vadd.f32 %v6545, %v6587
        %v6589 = vpop.f32.mrb[0].mxu0
        %v6590 = vadd.f32 %v6547, %v6589
        %6591 = vdwg.mxu0
        %6592 = vmatprep.subr.bf16.mxu0 %v6015
        %6593 = vmatpush1.bf16.msra.mxu0 %v6014
        %6594 = vmatprep.subr.bf16.mxu0 %v6017
        %6595 = vmatpush1.bf16.msra.mxu0 %v6016
        %6596 = vmatprep.subr.bf16.mxu0 %v6019
        %6597 = vmatpush1.bf16.msra.mxu0 %v6018
        %6598 = vmatprep.subr.bf16.mxu0 %v6021
        %6599 = vmatpush1.bf16.msra.mxu0 %v6020
        %6600 = vmatprep.subr.bf16.mxu0 %v6023
        %6601 = vmatpush1.bf16.msra.mxu0 %v6022
        %6602 = vmatprep.subr.bf16.mxu0 %v6025
        %6603 = vmatpush1.bf16.msra.mxu0 %v6024
        %6604 = vmatprep.subr.bf16.mxu0 %v6027
        %6605 = vmatpush1.bf16.msra.mxu0 %v6026
        %6606 = vmatprep.subr.bf16.mxu0 %v6029
        %6607 = vmatpush1.bf16.msra.mxu0 %v6028
        %6608 = vmatprep.subr.bf16.mxu0 %v6031
        %6609 = vmatpush1.bf16.msra.mxu0 %v6030
        %6610 = vmatprep.subr.bf16.mxu0 %v6033
        %6611 = vmatpush1.bf16.msra.mxu0 %v6032
        %6612 = vmatprep.subr.bf16.mxu0 %v6035
        %6613 = vmatpush1.bf16.msra.mxu0 %v6034
        %6614 = vmatprep.subr.bf16.mxu0 %v6037
        %6615 = vmatpush1.bf16.msra.mxu0 %v6036
        %6616 = vmatprep.subr.bf16.mxu0 %v6039
        %6617 = vmatpush1.bf16.msra.mxu0 %v6038
        %6618 = vmatprep.subr.bf16.mxu0 %v6041
        %6619 = vmatpush1.bf16.msra.mxu0 %v6040
        %6620 = vmatprep.subr.bf16.mxu0 %v6043
        %6621 = vmatpush1.bf16.msra.mxu0 %v6042
        %6622 = vmatprep.subr.bf16.mxu0 %v6045
        %6623 = vmatpush1.bf16.msra.mxu0 %v6044
        %6624 = vmatprep.mubr.bf16.mxu0 %v4795
        %6625 = vmatmul.mubr.bf16.gmra.mrb[0].mxu0 %v4794
        %v6626 = vpop.f32.mrb[0].mxu0
        %v6627 = vadd.f32 %v6584, %v6626
        %v6628 = vpop.f32.mrb[0].mxu0
        %v6629 = vadd.f32 %v6586, %v6628
        %v6630 = vpop.f32.mrb[0].mxu0
        %v6631 = vadd.f32 %v6588, %v6630
        %v6632 = vpop.f32.mrb[0].mxu0
        %v6633 = vadd.f32 %v6590, %v6632
        %6634 = vdwg.mxu0
        %6635 = vmatprep.subr.bf16.mxu0 %v6047
        %6636 = vmatpush1.bf16.msra.mxu0 %v6046
        %6637 = vmatprep.subr.bf16.mxu0 %v6049
        %6638 = vmatpush1.bf16.msra.mxu0 %v6048
        %6639 = vmatprep.subr.bf16.mxu0 %v6051
        %6640 = vmatpush1.bf16.msra.mxu0 %v6050
        %6641 = vmatprep.subr.bf16.mxu0 %v6053
        %6642 = vmatpush1.bf16.msra.mxu0 %v6052
        %6643 = vmatprep.subr.bf16.mxu0 %v6055
        %6644 = vmatpush1.bf16.msra.mxu0 %v6054
        %6645 = vmatprep.subr.bf16.mxu0 %v6057
        %6646 = vmatpush1.bf16.msra.mxu0 %v6056
        %6647 = vmatprep.subr.bf16.mxu0 %v6059
        %6648 = vmatpush1.bf16.msra.mxu0 %v6058
        %6649 = vmatprep.subr.bf16.mxu0 %v6061
        %6650 = vmatpush1.bf16.msra.mxu0 %v6060
        %6651 = vmatprep.subr.bf16.mxu0 %v6063
        %6652 = vmatpush1.bf16.msra.mxu0 %v6062
        %6653 = vmatprep.subr.bf16.mxu0 %v6065
        %6654 = vmatpush1.bf16.msra.mxu0 %v6064
        %6655 = vmatprep.subr.bf16.mxu0 %v6067
        %6656 = vmatpush1.bf16.msra.mxu0 %v6066
        %6657 = vmatprep.subr.bf16.mxu0 %v6069
        %6658 = vmatpush1.bf16.msra.mxu0 %v6068
        %6659 = vmatprep.subr.bf16.mxu0 %v6071
        %6660 = vmatpush1.bf16.msra.mxu0 %v6070
        %6661 = vmatprep.subr.bf16.mxu0 %v6073
        %6662 = vmatpush1.bf16.msra.mxu0 %v6072
        %6663 = vmatprep.subr.bf16.mxu0 %v6075
        %6664 = vmatpush1.bf16.msra.mxu0 %v6074
        %6665 = vmatprep.subr.bf16.mxu0 %v6077
        %6666 = vmatpush1.bf16.msra.mxu0 %v6076
        %6667 = vmatprep.mubr.bf16.mxu0 %v4797
        %6668 = vmatmul.mubr.bf16.gmra.mrb[0].mxu0 %v4796
        %v6669 = vpop.f32.mrb[0].mxu0
        %v6670 = vadd.f32 %v6627, %v6669
        %v6671 = vpop.f32.mrb[0].mxu0
        %v6672 = vadd.f32 %v6629, %v6671
        %v6673 = vpop.f32.mrb[0].mxu0
        %v6674 = vadd.f32 %v6631, %v6673
        %v6675 = vpop.f32.mrb[0].mxu0
        %v6676 = vadd.f32 %v6633, %v6675
        %6677 = vdwg.mxu0
        %p6678 = scmp.eq.s32.totalorder %s26, 0
        // Predicated region
        $region57: #{byol_projector.1} parent=39 // pred_check
          %p6679 = pneg %p6678
        $region58: #{byol_projector.1} parent=39 // pred_check_branch
          %6681 = sbr.rel (%p6679) target = $region60
        $region59: #{byol_projector.1} parent=39 // pred_region
          %6682 = vst [vmem:[#allocation2] sm:$0xff] 0.0
          %6683 = vst [vmem:[#allocation2 + $0x8] sm:$0xff] 0.0
          %6684 = vst [vmem:[#allocation2 + $0x10] sm:$0xff] 0.0
          %6685 = vst [vmem:[#allocation2 + $0x18] sm:$0xff] 0.0
        $region60: #{byol_projector.1} parent=39 // pred_fallthru
          _
        %v6686 = vld [vmem:[#allocation2] sm:$0xff]
        %v6687 = vld [vmem:[#allocation2 + $0x8] sm:$0xff]
        %v6688 = vld [vmem:[#allocation2 + $0x10] sm:$0xff]
        %v6689 = vld [vmem:[#allocation2 + $0x18] sm:$0xff]
        %v6690 = vadd.f32 %v6686, %v6670
        %v6691 = vadd.f32 %v6687, %v6672
        %v6692 = vadd.f32 %v6688, %v6674
        %v6693 = vadd.f32 %v6689, %v6676
        %6694 = vst [vmem:[#allocation2] sm:$0xff] %v6690
        %6695 = vst [vmem:[#allocation2 + $0x8] sm:$0xff] %v6691
        %6696 = vst [vmem:[#allocation2 + $0x10] sm:$0xff] %v6692
        %6697 = vst [vmem:[#allocation2 + $0x18] sm:$0xff] %v6693
        %p6698 = scmp.eq.s32.totalorder %s26, 1
        // Predicated region
        $region61: #{byol_projector.1} parent=39 // pred_check
          %p6699 = pneg %p6698
        $region62: #{byol_projector.1} parent=39 // pred_check_branch
          %6701 = sbr.rel (%p6699) target = $region64
        $region63: #{byol_projector.1} parent=39 // pred_region
          %v6702 = vld [vmem:[#allocation2] sm:$0xff]
          %v6703 = vld [vmem:[#allocation2 + $0x8] sm:$0xff]
          %v6704 = vld [vmem:[#allocation2 + $0x10] sm:$0xff]
          %v6705 = vld [vmem:[#allocation2 + $0x18] sm:$0xff]
          %6706 = vst [vmem:[#allocation11] sm:$0xff] %v6702
          %6707 = vst [vmem:[#allocation11 + $0x8] sm:$0xff] %v6703
          %6708 = vst [vmem:[#allocation11 + $0x10] sm:$0xff] %v6704
          %6709 = vst [vmem:[#allocation11 + $0x18] sm:$0xff] %v6705
        $region64: #{byol_projector.1} parent=39 // pred_fallthru
          _
        // Predicated region
        $region65: #{byol_projector.1} parent=39 // pred_check
          %p6710 = pneg %p164
        $region66: #{byol_projector.1} parent=39 // pred_check_branch
          %6712 = sbr.rel (%p6710) target = $region68
        $region67: #{byol_projector.1} parent=39 // pred_region
          %s6714 = ssub.s32 512, 512
          %6715 = vsyncadd [#allocation5], %s6714
          %s6716 = sshll.u32 [#allocation11], 4
          %s6717 = int_to_ptr.vmem [resolvable:$true] %s6716
          %6722 = dma.vmem_to_hbm [thread:$0]  %s6717, 512, %s5, [#allocation5], 256, 256, 16
        $region68: #{byol_projector.1} parent=39 // pred_fallthru
          _
        // Predicated region
        $region69: #{byol_projector.1} parent=39 // pred_check
          %p6723 = pneg %p164
        $region70: #{byol_projector.1} parent=39 // pred_check_branch
          %6725 = sbr.rel (%p6723) target = $region72
        $region71: #{byol_projector.1} parent=39 // pred_region
          %6726 = dma.done [#allocation5], 512
        $region72: #{byol_projector.1} parent=39 // pred_fallthru
          _
      $region40: #{byol_projector.1} parent=5 // pred_fallthru
        _
      %p6727 = scmp.le.s32.totalorder 2, %s21
      // Predicated region
      $region73: #{byol_projector.1} parent=5 // pred_check
        %p6728 = pneg %p6727
      $region74: #{byol_projector.1} parent=5 // pred_check_branch
        %6730 = sbr.rel (%p6728) target = $region76
      $region75: #{byol_projector.1} parent=5 // pred_region
        %s6731 = ssub.s32 %s21, 2
      $region76: #{byol_projector.1} parent=5 // pred_fallthru
        _
    $region6: #{byol_projector.1} parent=1 // loop_footer
      %s25 = sadd.s32 1, %s21
    $region7: #{byol_projector.1} parent=1 // loop_footer_branch
      %20 = sbr.rel target = $region3
    $region8: #{byol_projector.1} parent=1 // loop_exit
      _
    %6732 = vsyncpa [#allocation4], 1
    %s6733 = scalar_lea.sflag [#allocation4], 1
    %6734 = vsyncpa %s6733, 1
    %6735 = vsyncpa [#allocation7], 1
    %s6736 = scalar_lea.sflag [#allocation7], 1
    %6737 = vsyncpa %s6736, 1
    %6738 = vsyncpa [#allocation10], 1
    %s6739 = scalar_lea.sflag [#allocation10], 1
    %6740 = vsyncpa %s6739, 1
    %6741 = vsyncpa [#allocation5], 1
    %s6742 = scalar_lea.sflag [#allocation5], 1
    %6743 = vsyncpa %s6742, 1

</llo_original>
